<compile_context>
chip_gen: v7x
topology: tpu7x:2x2x1
jax: 0.10.0
libtpu: 0.0.40
codegen_flags: <defaults>
</compile_context>

<pallas_src>
import functools

import jax
import jax.numpy as jnp
from jax import lax
from jax.experimental import pallas as pl
from jax.experimental.pallas import tpu as pltpu


def _prod_decoder_kernel(x_ref, wih_ref, b_ref, wbig_ref, ctxwoc_ref, cctx_ref,
                         pext_ref, mask_ref, h0_ref, c0_ref,
                         out_ref, attn_ref, copy_ref,
                         gx_ref,
                         *, T, B, S, rnn):
    """One invocation computes all T decoder steps (B = padded batch, BS = B*S).

    Inputs (VMEM):
      x_ref    : (T*B, in_size)            bf16  time-major flattened decoder inputs
      wih_ref  : (in_size, 4*rnn)          bf16  fused W_ih^T (gate order i,f,g,o)
      b_ref    : (1, 4*rnn)                f32   b_ih + b_hh
      wbig_ref : (rnn, 4*rnn + BS + rnn)   bf16  [ W_hh^T | A_ctx | W_out_h ]
      ctxwoc_ref: (BS, rnn)                bf16  ctx_flat @ W_out_ctx
      cctx_ref : (rnn, BS)                 bf16  (ctx_flat @ W_copy_in)^T
      pext_ref : (BS, S)                   bf16  own-block extraction matrix
      mask_ref : (B, BS)                   f32   block-diag additive length mask (0/-1e9)
      h0/c0    : (B, rnn)                  f32
    Outputs:
      out_ref  : (T, B, rnn) f32 ; attn_ref / copy_ref : (T, B, S) f32
    Scratch:
      gx_ref   : (T*B, 4*rnn) f32
    """
    G = 4 * rnn
    BS = B * S

    # ---- hoisted input projection: ONE fused MXU matmul over all T*B rows ----
    gx_ref[...] = (jnp.dot(x_ref[...], wih_ref[...],
                           preferred_element_type=jnp.float32) + b_ref[...])

    h = h0_ref[...]                       # (B, rnn) f32
    c = c0_ref[...]                       # (B, rnn) f32
    # recurrent gate contribution for step 0 (only the W_hh band of the fused weight)
    hh = jnp.dot(h.astype(jnp.bfloat16), wbig_ref[:, 0:G],
                 preferred_element_type=jnp.float32)            # (B, 4*rnn)

    # T is small & static: fully unrolled so step t's attention side-chain overlaps
    # step t+1's recurrence.  Weight/context tiles are re-read from VMEM each step.
    for t in range(T):
        # --- LSTM step (PyTorch gate order i, f, g, o) ---
        pre = gx_ref[pl.ds(t * B, B), :] + hh                   # (B, 4*rnn) f32
        lane = lax.broadcasted_iota(jnp.int32, pre.shape, 1)
        is_g = (lane >= 2 * rnn) & (lane < 3 * rnn)
        act = jnp.where(is_g, jnp.tanh(pre), jax.nn.sigmoid(pre))
        i_g = act[:, 0:rnn]
        f_g = act[:, rnn:2 * rnn]
        g_g = act[:, 2 * rnn:3 * rnn]
        o_g = act[:, 3 * rnn:4 * rnn]
        c = f_g * c + i_g * g_g
        h = o_g * jnp.tanh(c)

        # --- single fused matmul over h_t: [next-step gates | attn scores | out_h] ---
        wide = jnp.dot(h.astype(jnp.bfloat16), wbig_ref[...],
                       preferred_element_type=jnp.float32)      # (B, G + BS + rnn)
        hh = wide[:, 0:G]                                       # feeds step t+1
        scores = wide[:, G:G + BS] + mask_ref[...]              # (B, BS)
        h_out = wide[:, G + BS:G + BS + rnn]                    # h @ W_out_h

        # --- masked softmax over the own-batch context block (off-block -> exactly 0) ---
        m = jnp.max(scores, axis=-1, keepdims=True)
        e = jnp.exp(scores - m)
        probs = e * pl.reciprocal(jnp.sum(e, axis=-1, keepdims=True), approx=True)
        probs_b = probs.astype(jnp.bfloat16)

        # --- attn_h = tanh(ctx_vec @ W_out_ctx + h @ W_out_h), W_out_ctx folded into ctx ---
        attn_h = jnp.tanh(
            jnp.dot(probs_b, ctxwoc_ref[...], preferred_element_type=jnp.float32)
            + h_out)                                            # (B, rnn)
        # decoder_dropout: eval-mode identity
        out_ref[t] = attn_h
        # own-batch (B, S) block of the attention probabilities
        attn_ref[t] = jnp.dot(probs_b, pext_ref[...],
                              preferred_element_type=jnp.float32)

        # --- copy attention (second 'general' attention, probabilities only) ---
        cs = jnp.dot(attn_h.astype(jnp.bfloat16), cctx_ref[...],
                     preferred_element_type=jnp.float32) + mask_ref[...]
        cm = jnp.max(cs, axis=-1, keepdims=True)
        ce = jnp.exp(cs - cm)
        cprobs = ce * pl.reciprocal(jnp.sum(ce, axis=-1, keepdims=True), approx=True)
        copy_ref[t] = jnp.dot(cprobs.astype(jnp.bfloat16), pext_ref[...],
                              preferred_element_type=jnp.float32)


def prod_decoder_forward(nt_ids, prev_rule_ids, parent_rule_ids, parent_states,
                         context, context_lengths, h0, c0, params):
    """Pallas implementation of ProdDecoder.forward (eval mode, copy_attn=True)."""
    B, T = nt_ids.shape
    S = context.shape[1]
    rnn = h0.shape[-1]
    emb = params['nt_emb'].shape[-1]
    in_size = 3 * emb + rnn

    # --- glue: embedding lookups (padding_idx rows are zero) + concat ---
    nt_e = jnp.take(params['nt_emb'], nt_ids, axis=0)                 # (B, T, emb)
    rule_e = jnp.take(params['rule_emb'], prev_rule_ids, axis=0)      # (B, T, emb)
    prule_e = jnp.take(params['rule_emb'], parent_rule_ids, axis=0)   # (B, T, emb)
    x = jnp.concatenate([nt_e, rule_e, prule_e, parent_states], axis=-1)  # (B, T, in)
    x = jnp.transpose(x, (1, 0, 2)).astype(jnp.float32)               # (T, B, in)

    # --- pad batch to the 8-sublane width (padded rows are discarded afterwards) ---
    Bp = max(8, ((B + 7) // 8) * 8)
    pad_b = Bp - B
    if pad_b:
        x = jnp.pad(x, ((0, 0), (0, pad_b), (0, 0)))
        context_p = jnp.pad(context, ((0, pad_b), (0, 0), (0, 0)))
        lengths_p = jnp.concatenate(
            [context_lengths, jnp.ones((pad_b,), context_lengths.dtype)])
        h0_p = jnp.pad(h0, ((0, pad_b), (0, 0)))
        c0_p = jnp.pad(c0, ((0, pad_b), (0, 0)))
    else:
        context_p, lengths_p, h0_p, c0_p = context, context_lengths, h0, c0

    BS = Bp * S
    G = 4 * rnn

    ctx_flat = context_p.reshape(BS, rnn).astype(jnp.float32)         # (BS, rnn)

    # --- block-diagonal additive length mask ---
    valid = jnp.arange(S)[None, :] < lengths_p[:, None]               # (Bp, S)
    block = jnp.eye(Bp, dtype=bool)[:, :, None] & valid[None, :, :]   # (Bp, Bp, S)
    mask_full = jnp.where(block.reshape(Bp, BS), 0.0, -1e9).astype(jnp.float32)

    # --- fused LSTM input projection weights ---
    wih_all = params['w_ih'].T.astype(jnp.bfloat16)                   # (in, 4*rnn)
    b_all = (params['b_ih'] + params['b_hh']).reshape(1, G).astype(jnp.float32)

    # --- attention projections folded into the context (associativity, done once) ---
    a_ctx = (ctx_flat @ params['w_attn_in']).T                        # (rnn, BS)
    c_ctx = (ctx_flat @ params['w_copy_in']).T                        # (rnn, BS)
    wout = params['w_attn_out']                                       # (rnn, 2*rnn)
    woc = wout[:, :rnn].T                                             # multiplies ctx_vec
    woh = wout[:, rnn:].T                                             # multiplies h
    ctx_woc = (ctx_flat @ woc).astype(jnp.bfloat16)                   # (BS, rnn)

    # --- fused "everything that multiplies h_t" weight: [W_hh^T | A_ctx | W_out_h] ---
    whh_all = params['w_hh'].T.astype(jnp.float32)                    # (rnn, 4*rnn)
    w_big = jnp.concatenate([whh_all, a_ctx, woh], axis=1).astype(jnp.bfloat16)

    # --- own-block extraction matrix (off-block probabilities are exactly 0) ---
    p_ext = jnp.tile(jnp.eye(S, dtype=jnp.bfloat16), (Bp, 1))         # (BS, S)

    x_flat = x.reshape(T * Bp, in_size).astype(jnp.bfloat16)

    kernel = functools.partial(_prod_decoder_kernel, T=T, B=Bp, S=S, rnn=rnn)
    vmem = pl.BlockSpec(memory_space=pltpu.MemorySpace.VMEM)

    out_t, attn_t, copy_t = pl.pallas_call(
        kernel,
        out_shape=(jax.ShapeDtypeStruct((T, Bp, rnn), jnp.float32),
                   jax.ShapeDtypeStruct((T, Bp, S), jnp.float32),
                   jax.ShapeDtypeStruct((T, Bp, S), jnp.float32)),
        in_specs=[vmem] * 10,
        out_specs=(vmem, vmem, vmem),
        scratch_shapes=[pltpu.VMEM((T * Bp, G), jnp.float32)],
        compiler_params=pltpu.CompilerParams(vmem_limit_bytes=32 * 1024 * 1024),
    )(x_flat, wih_all, b_all, w_big, ctx_woc, c_ctx.astype(jnp.bfloat16),
      p_ext, mask_full, h0_p.astype(jnp.float32), c0_p.astype(jnp.float32))

    # --- back to batch-first; drop padded rows (attention blocks already own-batch) ---
    output = jnp.transpose(out_t, (1, 0, 2))[:B]                      # (B, T, rnn)
    attn_scores = jnp.transpose(attn_t, (1, 0, 2))[:B]                # (B, T, S)
    copy_attn_scores = jnp.transpose(copy_t, (1, 0, 2))[:B]           # (B, T, S)
    return output, attn_scores, copy_attn_scores


def prod_decoder_reference(nt_ids, prev_rule_ids, parent_rule_ids, parent_states,
                           context, context_lengths, h0, c0, params):
    """Pure-JAX f32 reference of the same forward (for validation)."""
    B, T = nt_ids.shape
    S = context.shape[1]
    rnn = h0.shape[-1]
    nt_e = jnp.take(params['nt_emb'], nt_ids, axis=0)
    rule_e = jnp.take(params['rule_emb'], prev_rule_ids, axis=0)
    prule_e = jnp.take(params['rule_emb'], parent_rule_ids, axis=0)
    x = jnp.concatenate([nt_e, rule_e, prule_e, parent_states], axis=-1)

    w_ih, w_hh = params['w_ih'], params['w_hh']
    b = params['b_ih'] + params['b_hh']
    wa, wout, wc = params['w_attn_in'], params['w_attn_out'], params['w_copy_in']
    valid = (jnp.arange(S)[None, :] < context_lengths[:, None])
    neg = jnp.where(valid, 0.0, -1e9).astype(jnp.float32)

    def attend(query, w_in):
        q = query @ w_in.T
        s = jnp.einsum('bd,bsd->bs', q, context) + neg
        return jax.nn.softmax(s, axis=-1)

    h, c = h0, c0
    outs, attns, copies = [], [], []
    for t in range(T):
        gates = x[:, t, :] @ w_ih.T + h @ w_hh.T + b
        i_g = jax.nn.sigmoid(gates[:, 0:rnn])
        f_g = jax.nn.sigmoid(gates[:, rnn:2 * rnn])
        g_g = jnp.tanh(gates[:, 2 * rnn:3 * rnn])
        o_g = jax.nn.sigmoid(gates[:, 3 * rnn:4 * rnn])
        c = f_g * c + i_g * g_g
        h = o_g * jnp.tanh(c)
        align = attend(h, wa)
        ctx_vec = jnp.einsum('bs,bsd->bd', align, context)
        attn_h = jnp.tanh(jnp.concatenate([ctx_vec, h], axis=-1) @ wout.T)
        copy_align = attend(attn_h, wc)
        outs.append(attn_h); attns.append(align); copies.append(copy_align)
    return (jnp.stack(outs, axis=1), jnp.stack(attns, axis=1), jnp.stack(copies, axis=1))


def _init_params(key, *, n_nt, n_rules, emb, rnn, pad_idx=0):
    ks = jax.random.split(key, 9)
    scale = 0.1
    in_size = 3 * emb + rnn
    nt_emb = scale * jax.random.normal(ks[0], (n_nt, emb), jnp.float32)
    rule_emb = scale * jax.random.normal(ks[1], (n_rules, emb), jnp.float32)
    nt_emb = nt_emb.at[pad_idx].set(0.0)        # padding_idx rows are zero
    rule_emb = rule_emb.at[pad_idx].set(0.0)
    return {
        'nt_emb': nt_emb,
        'rule_emb': rule_emb,
        'w_ih': scale * jax.random.normal(ks[2], (4 * rnn, in_size), jnp.float32),
        'w_hh': scale * jax.random.normal(ks[3], (4 * rnn, rnn), jnp.float32),
        'b_ih': scale * jax.random.normal(ks[4], (4 * rnn,), jnp.float32),
        'b_hh': scale * jax.random.normal(ks[5], (4 * rnn,), jnp.float32),
        'w_attn_in': scale * jax.random.normal(ks[6], (rnn, rnn), jnp.float32),
        'w_attn_out': scale * jax.random.normal(ks[7], (rnn, 2 * rnn), jnp.float32),
        'w_copy_in': scale * jax.random.normal(ks[8], (rnn, rnn), jnp.float32),
    }


if __name__ == "__main__":
    B, T, S = 4, 6, 8          # batch, target steps, source length
    EMB, RNN = 32, 64          # tgt_word_vec_size, rnn_size (dec_layers = 1)
    N_NT, N_RULES = 50, 90     # vocab sizes

    key = jax.random.PRNGKey(0)
    k_par, k_ids, k_ctx, k_h, k_c, k_ps = jax.random.split(key, 6)

    params = _init_params(k_par, n_nt=N_NT, n_rules=N_RULES, emb=EMB, rnn=RNN)

    k1, k2, k3 = jax.random.split(k_ids, 3)
    nt_ids = jax.random.randint(k1, (B, T), 1, N_NT)
    prev_rule_ids = jax.random.randint(k2, (B, T), 1, N_RULES)
    parent_rule_ids = jax.random.randint(k3, (B, T), 1, N_RULES)

    parent_states = 0.1 * jax.random.normal(k_ps, (B, T, RNN), jnp.float32)
    context = 0.1 * jax.random.normal(k_ctx, (B, S, RNN), jnp.float32)
    context_lengths = jnp.array([S, 5, 7, 3], dtype=jnp.int32)
    h0 = 0.1 * jax.random.normal(k_h, (B, RNN), jnp.float32)   # decState.hidden (layer 0)
    c0 = 0.1 * jax.random.normal(k_c, (B, RNN), jnp.float32)

    args = (nt_ids, prev_rule_ids, parent_rule_ids, parent_states,
            context, context_lengths, h0, c0, params)

    output, attn_scores, copy_attn_scores = jax.jit(prod_decoder_forward)(*args)
    jax.block_until_ready((output, attn_scores, copy_attn_scores))

    assert output.shape == (B, T, RNN)
    assert attn_scores.shape == (B, T, S)
    assert copy_attn_scores.shape == (B, T, S)
    assert bool(jnp.all(jnp.isfinite(output)))
    assert bool(jnp.all(jnp.isfinite(attn_scores)))
    assert bool(jnp.all(jnp.isfinite(copy_attn_scores)))
    # padded source positions must receive ~0 attention mass
    assert bool(jnp.all(attn_scores[1, :, 5:] < 1e-6))
    assert bool(jnp.all(attn_scores[3, :, 3:] < 1e-6))
    # attention rows should still normalize to ~1 over valid positions
    assert bool(jnp.all(jnp.abs(attn_scores.sum(-1) - 1.0) < 1e-2))
    assert bool(jnp.all(jnp.abs(copy_attn_scores.sum(-1) - 1.0) < 1e-2))

    # numerical check against the pure-JAX f32 reference (bf16 MXU tolerance)
    ref_out, ref_attn, ref_copy = jax.jit(prod_decoder_reference)(*args)
    assert float(jnp.max(jnp.abs(output - ref_out))) < 5e-2
    assert float(jnp.max(jnp.abs(attn_scores - ref_attn))) < 3e-2
    assert float(jnp.max(jnp.abs(copy_attn_scores - ref_copy))) < 3e-2

    print("KERNEL_OK")
</pallas_src>

<mosaic_0001>
module attributes {stable_mosaic.version = 11 : i64} {
  func.func @_prod_decoder_kernel(%arg0: memref<48x160xbf16, #tpu.memory_space<vmem>>, %arg1: memref<160x256xbf16, #tpu.memory_space<vmem>>, %arg2: memref<1x256xf32, #tpu.memory_space<vmem>>, %arg3: memref<64x384xbf16, #tpu.memory_space<vmem>>, %arg4: memref<64x64xbf16, #tpu.memory_space<vmem>>, %arg5: memref<64x64xbf16, #tpu.memory_space<vmem>>, %arg6: memref<64x8xbf16, #tpu.memory_space<vmem>>, %arg7: memref<8x64xf32, #tpu.memory_space<vmem>>, %arg8: memref<8x64xf32, #tpu.memory_space<vmem>>, %arg9: memref<8x64xf32, #tpu.memory_space<vmem>>, %arg10: memref<6x8x64xf32, #tpu.memory_space<vmem>>, %arg11: memref<6x8x8xf32, #tpu.memory_space<vmem>>, %arg12: memref<6x8x8xf32, #tpu.memory_space<vmem>>, %arg13: memref<48x256xf32, #tpu.memory_space<vmem>>) attributes {dimension_semantics = [], scalar_prefetch = 0 : i64, scratch_operands = 1 : i64, tpu.core_type = #tpu.core_type<tc>} {
    %c0 = arith.constant 0 : index
    %c0_0 = arith.constant 0 : index
    %0 = vector.load %arg0[%c0, %c0_0] : memref<48x160xbf16, #tpu.memory_space<vmem>>, vector<48x160xbf16>
    %c0_1 = arith.constant 0 : index
    %c0_2 = arith.constant 0 : index
    %1 = vector.load %arg1[%c0_1, %c0_2] : memref<160x256xbf16, #tpu.memory_space<vmem>>, vector<160x256xbf16>
    %cst = arith.constant dense<0.000000e+00> : vector<48x256xf32>
    %2 = tpu.matmul %0, %1, %cst {dimension_numbers = #tpu.dot_dimension_numbers<[1], [0], [0], [1], [0, 0, 1, 1], [], []>} : vector<48x160xbf16>, vector<160x256xbf16>, vector<48x256xf32> -> vector<48x256xf32>
    %c0_3 = arith.constant 0 : index
    %c0_4 = arith.constant 0 : index
    %3 = vector.load %arg2[%c0_3, %c0_4] : memref<1x256xf32, #tpu.memory_space<vmem>>, vector<1x256xf32>
    %4 = vector.broadcast %3 : vector<1x256xf32> to vector<48x256xf32>
    %5 = arith.addf %2, %4 : vector<48x256xf32>
    %c0_5 = arith.constant 0 : index
    %c0_6 = arith.constant 0 : index
    %6 = vector.load %arg13[%c0_5, %c0_6] : memref<48x256xf32, #tpu.memory_space<vmem>>, vector<48x256xf32>
    tpu.vector_store %arg13[%c0_5, %c0_6], %5 {strides = array<i32>} : memref<48x256xf32, #tpu.memory_space<vmem>>, vector<48x256xf32>,
    %c0_7 = arith.constant 0 : index
    %c0_8 = arith.constant 0 : index
    %7 = vector.load %arg8[%c0_7, %c0_8] : memref<8x64xf32, #tpu.memory_space<vmem>>, vector<8x64xf32>
    %c0_9 = arith.constant 0 : index
    %c0_10 = arith.constant 0 : index
    %8 = vector.load %arg9[%c0_9, %c0_10] : memref<8x64xf32, #tpu.memory_space<vmem>>, vector<8x64xf32>
    %9 = arith.truncf %7 : vector<8x64xf32> to vector<8x64xbf16>
    %c0_11 = arith.constant 0 : index
    %c0_12 = arith.constant 0 : index
    %10 = vector.load %arg3[%c0_11, %c0_12] : memref<64x384xbf16, #tpu.memory_space<vmem>>, vector<64x256xbf16>
    %cst_13 = arith.constant dense<0.000000e+00> : vector<8x256xf32>
    %11 = tpu.matmul %9, %10, %cst_13 {dimension_numbers = #tpu.dot_dimension_numbers<[1], [0], [0], [1], [0, 0, 1, 1], [], []>} : vector<8x64xbf16>, vector<64x256xbf16>, vector<8x256xf32> -> vector<8x256xf32>
    %c0_14 = arith.constant 0 : index
    %c0_15 = arith.constant 0 : index
    %12 = vector.load %arg13[%c0_14, %c0_15] : memref<48x256xf32, #tpu.memory_space<vmem>>, vector<8x256xf32>
    %13 = arith.addf %12, %11 : vector<8x256xf32>
    %14 = tpu.iota {dimensions = array<i32: 1>} : vector<8x256xi32>
    %c128_i32 = arith.constant 128 : i32
    %15 = vector.broadcast %c128_i32 : i32 to vector<8x256xi32>
    %16 = arith.cmpi sge, %14, %15 : vector<8x256xi32>
    %c192_i32 = arith.constant 192 : i32
    %17 = vector.broadcast %c192_i32 : i32 to vector<8x256xi32>
    %18 = arith.cmpi slt, %14, %17 : vector<8x256xi32>
    %19 = arith.andi %16, %18 : vector<8x256xi1>
    %20 = math.tanh %13 : vector<8x256xf32>
    %21 = arith.negf %13 : vector<8x256xf32>
    %22 = math.exp %21 : vector<8x256xf32>
    %cst_16 = arith.constant 1.000000e+00 : f32
    %23 = vector.broadcast %cst_16 : f32 to vector<8x256xf32>
    %24 = arith.addf %23, %22 : vector<8x256xf32>
    %25 = arith.divf %23, %24 : vector<8x256xf32>
    %26 = arith.select %19, %20, %25 : vector<8x256xi1>, vector<8x256xf32>
    %27 = vector.extract_strided_slice %26 {offsets = [0, 0], sizes = [8, 64], strides = [1, 1]} : vector<8x256xf32> to vector<8x64xf32>
    %28 = vector.extract_strided_slice %26 {offsets = [0, 64], sizes = [8, 64], strides = [1, 1]} : vector<8x256xf32> to vector<8x64xf32>
    %29 = vector.extract_strided_slice %26 {offsets = [0, 128], sizes = [8, 64], strides = [1, 1]} : vector<8x256xf32> to vector<8x64xf32>
    %30 = vector.extract_strided_slice %26 {offsets = [0, 192], sizes = [8, 64], strides = [1, 1]} : vector<8x256xf32> to vector<8x64xf32>
    %31 = arith.mulf %28, %8 : vector<8x64xf32>
    %32 = arith.mulf %27, %29 : vector<8x64xf32>
    %33 = arith.addf %31, %32 : vector<8x64xf32>
    %34 = math.tanh %33 : vector<8x64xf32>
    %35 = arith.mulf %30, %34 : vector<8x64xf32>
    %36 = arith.truncf %35 : vector<8x64xf32> to vector<8x64xbf16>
    %c0_17 = arith.constant 0 : index
    %c0_18 = arith.constant 0 : index
    %37 = vector.load %arg3[%c0_17, %c0_18] : memref<64x384xbf16, #tpu.memory_space<vmem>>, vector<64x384xbf16>
    %cst_19 = arith.constant dense<0.000000e+00> : vector<8x384xf32>
    %38 = tpu.matmul %36, %37, %cst_19 {dimension_numbers = #tpu.dot_dimension_numbers<[1], [0], [0], [1], [0, 0, 1, 1], [], []>} : vector<8x64xbf16>, vector<64x384xbf16>, vector<8x384xf32> -> vector<8x384xf32>
    %39 = vector.extract_strided_slice %38 {offsets = [0, 0], sizes = [8, 256], strides = [1, 1]} : vector<8x384xf32> to vector<8x256xf32>
    %40 = vector.extract_strided_slice %38 {offsets = [0, 256], sizes = [8, 64], strides = [1, 1]} : vector<8x384xf32> to vector<8x64xf32>
    %c0_20 = arith.constant 0 : index
    %c0_21 = arith.constant 0 : index
    %41 = vector.load %arg7[%c0_20, %c0_21] : memref<8x64xf32, #tpu.memory_space<vmem>>, vector<8x64xf32>
    %42 = arith.addf %40, %41 : vector<8x64xf32>
    %43 = vector.extract_strided_slice %38 {offsets = [0, 320], sizes = [8, 64], strides = [1, 1]} : vector<8x384xf32> to vector<8x64xf32>
    %cst_22 = arith.constant dense<0xFF800000> : vector<8xf32>
    %44 = vector.multi_reduction <maximumf>, %42, %cst_22 [1] : vector<8x64xf32> to vector<8xf32>
    %45 = vector.shape_cast %44 : vector<8xf32> to vector<8x1xf32>
    %46 = vector.broadcast %45 : vector<8x1xf32> to vector<8x64xf32>
    %47 = arith.subf %42, %46 : vector<8x64xf32>
    %48 = math.exp %47 : vector<8x64xf32>
    %cst_23 = arith.constant dense<0.000000e+00> : vector<8xf32>
    %49 = vector.multi_reduction <add>, %48, %cst_23 [1] : vector<8x64xf32> to vector<8xf32>
    %50 = vector.shape_cast %49 : vector<8xf32> to vector<8x1xf32>
    %51 = tpu.reciprocal %50 {approx = true} : vector<8x1xf32> -> vector<8x1xf32>
    %52 = vector.broadcast %51 : vector<8x1xf32> to vector<8x64xf32>
    %53 = arith.mulf %48, %52 : vector<8x64xf32>
    %54 = arith.truncf %53 : vector<8x64xf32> to vector<8x64xbf16>
    %c0_24 = arith.constant 0 : index
    %c0_25 = arith.constant 0 : index
    %55 = vector.load %arg4[%c0_24, %c0_25] : memref<64x64xbf16, #tpu.memory_space<vmem>>, vector<64x64xbf16>
    %cst_26 = arith.constant dense<0.000000e+00> : vector<8x64xf32>
    %56 = tpu.matmul %54, %55, %cst_26 {dimension_numbers = #tpu.dot_dimension_numbers<[1], [0], [0], [1], [0, 0, 1, 1], [], []>} : vector<8x64xbf16>, vector<64x64xbf16>, vector<8x64xf32> -> vector<8x64xf32>
    %57 = arith.addf %56, %43 : vector<8x64xf32>
    %58 = math.tanh %57 : vector<8x64xf32>
    %c0_27 = arith.constant 0 : index
    %c0_28 = arith.constant 0 : index
    %c0_29 = arith.constant 0 : index
    %59 = vector.load %arg10[%c0_27, %c0_28, %c0_29] : memref<6x8x64xf32, #tpu.memory_space<vmem>>, vector<1x8x64xf32>
    %60 = vector.shape_cast %59 : vector<1x8x64xf32> to vector<8x64xf32>
    %61 = vector.shape_cast %58 : vector<8x64xf32> to vector<1x8x64xf32>
    tpu.vector_store %arg10[%c0_27, %c0_28, %c0_29], %61 {strides = array<i32>} : memref<6x8x64xf32, #tpu.memory_space<vmem>>, vector<1x8x64xf32>,
    %c0_30 = arith.constant 0 : index
    %c0_31 = arith.constant 0 : index
    %62 = vector.load %arg6[%c0_30, %c0_31] : memref<64x8xbf16, #tpu.memory_space<vmem>>, vector<64x8xbf16>
    %cst_32 = arith.constant dense<0.000000e+00> : vector<8x8xf32>
    %63 = tpu.matmul %54, %62, %cst_32 {dimension_numbers = #tpu.dot_dimension_numbers<[1], [0], [0], [1], [0, 0, 1, 1], [], []>} : vector<8x64xbf16>, vector<64x8xbf16>, vector<8x8xf32> -> vector<8x8xf32>
    %c0_33 = arith.constant 0 : index
    %c0_34 = arith.constant 0 : index
    %c0_35 = arith.constant 0 : index
    %64 = vector.load %arg11[%c0_33, %c0_34, %c0_35] : memref<6x8x8xf32, #tpu.memory_space<vmem>>, vector<1x8x8xf32>
    %65 = vector.shape_cast %64 : vector<1x8x8xf32> to vector<8x8xf32>
    %66 = vector.shape_cast %63 : vector<8x8xf32> to vector<1x8x8xf32>
    tpu.vector_store %arg11[%c0_33, %c0_34, %c0_35], %66 {strides = array<i32>} : memref<6x8x8xf32, #tpu.memory_space<vmem>>, vector<1x8x8xf32>,
    %67 = arith.truncf %58 : vector<8x64xf32> to vector<8x64xbf16>
    %c0_36 = arith.constant 0 : index
    %c0_37 = arith.constant 0 : index
    %68 = vector.load %arg5[%c0_36, %c0_37] : memref<64x64xbf16, #tpu.memory_space<vmem>>, vector<64x64xbf16>
    %cst_38 = arith.constant dense<0.000000e+00> : vector<8x64xf32>
    %69 = tpu.matmul %67, %68, %cst_38 {dimension_numbers = #tpu.dot_dimension_numbers<[1], [0], [0], [1], [0, 0, 1, 1], [], []>} : vector<8x64xbf16>, vector<64x64xbf16>, vector<8x64xf32> -> vector<8x64xf32>
    %c0_39 = arith.constant 0 : index
    %c0_40 = arith.constant 0 : index
    %70 = vector.load %arg7[%c0_39, %c0_40] : memref<8x64xf32, #tpu.memory_space<vmem>>, vector<8x64xf32>
    %71 = arith.addf %69, %70 : vector<8x64xf32>
    %cst_41 = arith.constant dense<0xFF800000> : vector<8xf32>
    %72 = vector.multi_reduction <maximumf>, %71, %cst_41 [1] : vector<8x64xf32> to vector<8xf32>
    %73 = vector.shape_cast %72 : vector<8xf32> to vector<8x1xf32>
    %74 = vector.broadcast %73 : vector<8x1xf32> to vector<8x64xf32>
    %75 = arith.subf %71, %74 : vector<8x64xf32>
    %76 = math.exp %75 : vector<8x64xf32>
    %cst_42 = arith.constant dense<0.000000e+00> : vector<8xf32>
    %77 = vector.multi_reduction <add>, %76, %cst_42 [1] : vector<8x64xf32> to vector<8xf32>
    %78 = vector.shape_cast %77 : vector<8xf32> to vector<8x1xf32>
    %79 = tpu.reciprocal %78 {approx = true} : vector<8x1xf32> -> vector<8x1xf32>
    %80 = vector.broadcast %79 : vector<8x1xf32> to vector<8x64xf32>
    %81 = arith.mulf %76, %80 : vector<8x64xf32>
    %82 = arith.truncf %81 : vector<8x64xf32> to vector<8x64xbf16>
    %c0_43 = arith.constant 0 : index
    %c0_44 = arith.constant 0 : index
    %83 = vector.load %arg6[%c0_43, %c0_44] : memref<64x8xbf16, #tpu.memory_space<vmem>>, vector<64x8xbf16>
    %cst_45 = arith.constant dense<0.000000e+00> : vector<8x8xf32>
    %84 = tpu.matmul %82, %83, %cst_45 {dimension_numbers = #tpu.dot_dimension_numbers<[1], [0], [0], [1], [0, 0, 1, 1], [], []>} : vector<8x64xbf16>, vector<64x8xbf16>, vector<8x8xf32> -> vector<8x8xf32>
    %c0_46 = arith.constant 0 : index
    %c0_47 = arith.constant 0 : index
    %c0_48 = arith.constant 0 : index
    %85 = vector.load %arg12[%c0_46, %c0_47, %c0_48] : memref<6x8x8xf32, #tpu.memory_space<vmem>>, vector<1x8x8xf32>
    %86 = vector.shape_cast %85 : vector<1x8x8xf32> to vector<8x8xf32>
    %87 = vector.shape_cast %84 : vector<8x8xf32> to vector<1x8x8xf32>
    tpu.vector_store %arg12[%c0_46, %c0_47, %c0_48], %87 {strides = array<i32>} : memref<6x8x8xf32, #tpu.memory_space<vmem>>, vector<1x8x8xf32>,
    %c8 = arith.constant 8 : index
    %c0_49 = arith.constant 0 : index
    %88 = vector.load %arg13[%c8, %c0_49] : memref<48x256xf32, #tpu.memory_space<vmem>>, vector<8x256xf32>
    %89 = arith.addf %88, %39 : vector<8x256xf32>
    %90 = tpu.iota {dimensions = array<i32: 1>} : vector<8x256xi32>
    %c128_i32_50 = arith.constant 128 : i32
    %91 = vector.broadcast %c128_i32_50 : i32 to vector<8x256xi32>
    %92 = arith.cmpi sge, %90, %91 : vector<8x256xi32>
    %c192_i32_51 = arith.constant 192 : i32
    %93 = vector.broadcast %c192_i32_51 : i32 to vector<8x256xi32>
    %94 = arith.cmpi slt, %90, %93 : vector<8x256xi32>
    %95 = arith.andi %92, %94 : vector<8x256xi1>
    %96 = math.tanh %89 : vector<8x256xf32>
    %97 = arith.negf %89 : vector<8x256xf32>
    %98 = math.exp %97 : vector<8x256xf32>
    %cst_52 = arith.constant 1.000000e+00 : f32
    %99 = vector.broadcast %cst_52 : f32 to vector<8x256xf32>
    %100 = arith.addf %99, %98 : vector<8x256xf32>
    %101 = arith.divf %99, %100 : vector<8x256xf32>
    %102 = arith.select %95, %96, %101 : vector<8x256xi1>, vector<8x256xf32>
    %103 = vector.extract_strided_slice %102 {offsets = [0, 0], sizes = [8, 64], strides = [1, 1]} : vector<8x256xf32> to vector<8x64xf32>
    %104 = vector.extract_strided_slice %102 {offsets = [0, 64], sizes = [8, 64], strides = [1, 1]} : vector<8x256xf32> to vector<8x64xf32>
    %105 = vector.extract_strided_slice %102 {offsets = [0, 128], sizes = [8, 64], strides = [1, 1]} : vector<8x256xf32> to vector<8x64xf32>
    %106 = vector.extract_strided_slice %102 {offsets = [0, 192], sizes = [8, 64], strides = [1, 1]} : vector<8x256xf32> to vector<8x64xf32>
    %107 = arith.mulf %104, %33 : vector<8x64xf32>
    %108 = arith.mulf %103, %105 : vector<8x64xf32>
    %109 = arith.addf %107, %108 : vector<8x64xf32>
    %110 = math.tanh %109 : vector<8x64xf32>
    %111 = arith.mulf %106, %110 : vector<8x64xf32>
    %112 = arith.truncf %111 : vector<8x64xf32> to vector<8x64xbf16>
    %c0_53 = arith.constant 0 : index
    %c0_54 = arith.constant 0 : index
    %113 = vector.load %arg3[%c0_53, %c0_54] : memref<64x384xbf16, #tpu.memory_space<vmem>>, vector<64x384xbf16>
    %cst_55 = arith.constant dense<0.000000e+00> : vector<8x384xf32>
    %114 = tpu.matmul %112, %113, %cst_55 {dimension_numbers = #tpu.dot_dimension_numbers<[1], [0], [0], [1], [0, 0, 1, 1], [], []>} : vector<8x64xbf16>, vector<64x384xbf16>, vector<8x384xf32> -> vector<8x384xf32>
    %115 = vector.extract_strided_slice %114 {offsets = [0, 0], sizes = [8, 256], strides = [1, 1]} : vector<8x384xf32> to vector<8x256xf32>
    %116 = vector.extract_strided_slice %114 {offsets = [0, 256], sizes = [8, 64], strides = [1, 1]} : vector<8x384xf32> to vector<8x64xf32>
    %c0_56 = arith.constant 0 : index
    %c0_57 = arith.constant 0 : index
    %117 = vector.load %arg7[%c0_56, %c0_57] : memref<8x64xf32, #tpu.memory_space<vmem>>, vector<8x64xf32>
    %118 = arith.addf %116, %117 : vector<8x64xf32>
    %119 = vector.extract_strided_slice %114 {offsets = [0, 320], sizes = [8, 64], strides = [1, 1]} : vector<8x384xf32> to vector<8x64xf32>
    %cst_58 = arith.constant dense<0xFF800000> : vector<8xf32>
    %120 = vector.multi_reduction <maximumf>, %118, %cst_58 [1] : vector<8x64xf32> to vector<8xf32>
    %121 = vector.shape_cast %120 : vector<8xf32> to vector<8x1xf32>
    %122 = vector.broadcast %121 : vector<8x1xf32> to vector<8x64xf32>
    %123 = arith.subf %118, %122 : vector<8x64xf32>
    %124 = math.exp %123 : vector<8x64xf32>
    %cst_59 = arith.constant dense<0.000000e+00> : vector<8xf32>
    %125 = vector.multi_reduction <add>, %124, %cst_59 [1] : vector<8x64xf32> to vector<8xf32>
    %126 = vector.shape_cast %125 : vector<8xf32> to vector<8x1xf32>
    %127 = tpu.reciprocal %126 {approx = true} : vector<8x1xf32> -> vector<8x1xf32>
    %128 = vector.broadcast %127 : vector<8x1xf32> to vector<8x64xf32>
    %129 = arith.mulf %124, %128 : vector<8x64xf32>
    %130 = arith.truncf %129 : vector<8x64xf32> to vector<8x64xbf16>
    %c0_60 = arith.constant 0 : index
    %c0_61 = arith.constant 0 : index
    %131 = vector.load %arg4[%c0_60, %c0_61] : memref<64x64xbf16, #tpu.memory_space<vmem>>, vector<64x64xbf16>
    %cst_62 = arith.constant dense<0.000000e+00> : vector<8x64xf32>
    %132 = tpu.matmul %130, %131, %cst_62 {dimension_numbers = #tpu.dot_dimension_numbers<[1], [0], [0], [1], [0, 0, 1, 1], [], []>} : vector<8x64xbf16>, vector<64x64xbf16>, vector<8x64xf32> -> vector<8x64xf32>
    %133 = arith.addf %132, %119 : vector<8x64xf32>
    %134 = math.tanh %133 : vector<8x64xf32>
    %c1 = arith.constant 1 : index
    %c0_63 = arith.constant 0 : index
    %c0_64 = arith.constant 0 : index
    %135 = vector.load %arg10[%c1, %c0_63, %c0_64] : memref<6x8x64xf32, #tpu.memory_space<vmem>>, vector<1x8x64xf32>
    %136 = vector.shape_cast %135 : vector<1x8x64xf32> to vector<8x64xf32>
    %137 = vector.shape_cast %134 : vector<8x64xf32> to vector<1x8x64xf32>
    tpu.vector_store %arg10[%c1, %c0_63, %c0_64], %137 {strides = array<i32>} : memref<6x8x64xf32, #tpu.memory_space<vmem>>, vector<1x8x64xf32>,
    %c0_65 = arith.constant 0 : index
    %c0_66 = arith.constant 0 : index
    %138 = vector.load %arg6[%c0_65, %c0_66] : memref<64x8xbf16, #tpu.memory_space<vmem>>, vector<64x8xbf16>
    %cst_67 = arith.constant dense<0.000000e+00> : vector<8x8xf32>
    %139 = tpu.matmul %130, %138, %cst_67 {dimension_numbers = #tpu.dot_dimension_numbers<[1], [0], [0], [1], [0, 0, 1, 1], [], []>} : vector<8x64xbf16>, vector<64x8xbf16>, vector<8x8xf32> -> vector<8x8xf32>
    %c1_68 = arith.constant 1 : index
    %c0_69 = arith.constant 0 : index
    %c0_70 = arith.constant 0 : index
    %140 = vector.load %arg11[%c1_68, %c0_69, %c0_70] : memref<6x8x8xf32, #tpu.memory_space<vmem>>, vector<1x8x8xf32>
    %141 = vector.shape_cast %140 : vector<1x8x8xf32> to vector<8x8xf32>
    %142 = vector.shape_cast %139 : vector<8x8xf32> to vector<1x8x8xf32>
    tpu.vector_store %arg11[%c1_68, %c0_69, %c0_70], %142 {strides = array<i32>} : memref<6x8x8xf32, #tpu.memory_space<vmem>>, vector<1x8x8xf32>,
    %143 = arith.truncf %134 : vector<8x64xf32> to vector<8x64xbf16>
    %c0_71 = arith.constant 0 : index
    %c0_72 = arith.constant 0 : index
    %144 = vector.load %arg5[%c0_71, %c0_72] : memref<64x64xbf16, #tpu.memory_space<vmem>>, vector<64x64xbf16>
    %cst_73 = arith.constant dense<0.000000e+00> : vector<8x64xf32>
    %145 = tpu.matmul %143, %144, %cst_73 {dimension_numbers = #tpu.dot_dimension_numbers<[1], [0], [0], [1], [0, 0, 1, 1], [], []>} : vector<8x64xbf16>, vector<64x64xbf16>, vector<8x64xf32> -> vector<8x64xf32>
    %c0_74 = arith.constant 0 : index
    %c0_75 = arith.constant 0 : index
    %146 = vector.load %arg7[%c0_74, %c0_75] : memref<8x64xf32, #tpu.memory_space<vmem>>, vector<8x64xf32>
    %147 = arith.addf %145, %146 : vector<8x64xf32>
    %cst_76 = arith.constant dense<0xFF800000> : vector<8xf32>
    %148 = vector.multi_reduction <maximumf>, %147, %cst_76 [1] : vector<8x64xf32> to vector<8xf32>
    %149 = vector.shape_cast %148 : vector<8xf32> to vector<8x1xf32>
    %150 = vector.broadcast %149 : vector<8x1xf32> to vector<8x64xf32>
    %151 = arith.subf %147, %150 : vector<8x64xf32>
    %152 = math.exp %151 : vector<8x64xf32>
    %cst_77 = arith.constant dense<0.000000e+00> : vector<8xf32>
    %153 = vector.multi_reduction <add>, %152, %cst_77 [1] : vector<8x64xf32> to vector<8xf32>
    %154 = vector.shape_cast %153 : vector<8xf32> to vector<8x1xf32>
    %155 = tpu.reciprocal %154 {approx = true} : vector<8x1xf32> -> vector<8x1xf32>
    %156 = vector.broadcast %155 : vector<8x1xf32> to vector<8x64xf32>
    %157 = arith.mulf %152, %156 : vector<8x64xf32>
    %158 = arith.truncf %157 : vector<8x64xf32> to vector<8x64xbf16>
    %c0_78 = arith.constant 0 : index
    %c0_79 = arith.constant 0 : index
    %159 = vector.load %arg6[%c0_78, %c0_79] : memref<64x8xbf16, #tpu.memory_space<vmem>>, vector<64x8xbf16>
    %cst_80 = arith.constant dense<0.000000e+00> : vector<8x8xf32>
    %160 = tpu.matmul %158, %159, %cst_80 {dimension_numbers = #tpu.dot_dimension_numbers<[1], [0], [0], [1], [0, 0, 1, 1], [], []>} : vector<8x64xbf16>, vector<64x8xbf16>, vector<8x8xf32> -> vector<8x8xf32>
    %c1_81 = arith.constant 1 : index
    %c0_82 = arith.constant 0 : index
    %c0_83 = arith.constant 0 : index
    %161 = vector.load %arg12[%c1_81, %c0_82, %c0_83] : memref<6x8x8xf32, #tpu.memory_space<vmem>>, vector<1x8x8xf32>
    %162 = vector.shape_cast %161 : vector<1x8x8xf32> to vector<8x8xf32>
    %163 = vector.shape_cast %160 : vector<8x8xf32> to vector<1x8x8xf32>
    tpu.vector_store %arg12[%c1_81, %c0_82, %c0_83], %163 {strides = array<i32>} : memref<6x8x8xf32, #tpu.memory_space<vmem>>, vector<1x8x8xf32>,
    %c16 = arith.constant 16 : index
    %c0_84 = arith.constant 0 : index
    %164 = vector.load %arg13[%c16, %c0_84] : memref<48x256xf32, #tpu.memory_space<vmem>>, vector<8x256xf32>
    %165 = arith.addf %164, %115 : vector<8x256xf32>
    %166 = tpu.iota {dimensions = array<i32: 1>} : vector<8x256xi32>
    %c128_i32_85 = arith.constant 128 : i32
    %167 = vector.broadcast %c128_i32_85 : i32 to vector<8x256xi32>
    %168 = arith.cmpi sge, %166, %167 : vector<8x256xi32>
    %c192_i32_86 = arith.constant 192 : i32
    %169 = vector.broadcast %c192_i32_86 : i32 to vector<8x256xi32>
    %170 = arith.cmpi slt, %166, %169 : vector<8x256xi32>
    %171 = arith.andi %168, %170 : vector<8x256xi1>
    %172 = math.tanh %165 : vector<8x256xf32>
    %173 = arith.negf %165 : vector<8x256xf32>
    %174 = math.exp %173 : vector<8x256xf32>
    %cst_87 = arith.constant 1.000000e+00 : f32
    %175 = vector.broadcast %cst_87 : f32 to vector<8x256xf32>
    %176 = arith.addf %175, %174 : vector<8x256xf32>
    %177 = arith.divf %175, %176 : vector<8x256xf32>
    %178 = arith.select %171, %172, %177 : vector<8x256xi1>, vector<8x256xf32>
    %179 = vector.extract_strided_slice %178 {offsets = [0, 0], sizes = [8, 64], strides = [1, 1]} : vector<8x256xf32> to vector<8x64xf32>
    %180 = vector.extract_strided_slice %178 {offsets = [0, 64], sizes = [8, 64], strides = [1, 1]} : vector<8x256xf32> to vector<8x64xf32>
    %181 = vector.extract_strided_slice %178 {offsets = [0, 128], sizes = [8, 64], strides = [1, 1]} : vector<8x256xf32> to vector<8x64xf32>
    %182 = vector.extract_strided_slice %178 {offsets = [0, 192], sizes = [8, 64], strides = [1, 1]} : vector<8x256xf32> to vector<8x64xf32>
    %183 = arith.mulf %180, %109 : vector<8x64xf32>
    %184 = arith.mulf %179, %181 : vector<8x64xf32>
    %185 = arith.addf %183, %184 : vector<8x64xf32>
    %186 = math.tanh %185 : vector<8x64xf32>
    %187 = arith.mulf %182, %186 : vector<8x64xf32>
    %188 = arith.truncf %187 : vector<8x64xf32> to vector<8x64xbf16>
    %c0_88 = arith.constant 0 : index
    %c0_89 = arith.constant 0 : index
    %189 = vector.load %arg3[%c0_88, %c0_89] : memref<64x384xbf16, #tpu.memory_space<vmem>>, vector<64x384xbf16>
    %cst_90 = arith.constant dense<0.000000e+00> : vector<8x384xf32>
    %190 = tpu.matmul %188, %189, %cst_90 {dimension_numbers = #tpu.dot_dimension_numbers<[1], [0], [0], [1], [0, 0, 1, 1], [], []>} : vector<8x64xbf16>, vector<64x384xbf16>, vector<8x384xf32> -> vector<8x384xf32>
    %191 = vector.extract_strided_slice %190 {offsets = [0, 0], sizes = [8, 256], strides = [1, 1]} : vector<8x384xf32> to vector<8x256xf32>
    %192 = vector.extract_strided_slice %190 {offsets = [0, 256], sizes = [8, 64], strides = [1, 1]} : vector<8x384xf32> to vector<8x64xf32>
    %c0_91 = arith.constant 0 : index
    %c0_92 = arith.constant 0 : index
    %193 = vector.load %arg7[%c0_91, %c0_92] : memref<8x64xf32, #tpu.memory_space<vmem>>, vector<8x64xf32>
    %194 = arith.addf %192, %193 : vector<8x64xf32>
    %195 = vector.extract_strided_slice %190 {offsets = [0, 320], sizes = [8, 64], strides = [1, 1]} : vector<8x384xf32> to vector<8x64xf32>
    %cst_93 = arith.constant dense<0xFF800000> : vector<8xf32>
    %196 = vector.multi_reduction <maximumf>, %194, %cst_93 [1] : vector<8x64xf32> to vector<8xf32>
    %197 = vector.shape_cast %196 : vector<8xf32> to vector<8x1xf32>
    %198 = vector.broadcast %197 : vector<8x1xf32> to vector<8x64xf32>
    %199 = arith.subf %194, %198 : vector<8x64xf32>
    %200 = math.exp %199 : vector<8x64xf32>
    %cst_94 = arith.constant dense<0.000000e+00> : vector<8xf32>
    %201 = vector.multi_reduction <add>, %200, %cst_94 [1] : vector<8x64xf32> to vector<8xf32>
    %202 = vector.shape_cast %201 : vector<8xf32> to vector<8x1xf32>
    %203 = tpu.reciprocal %202 {approx = true} : vector<8x1xf32> -> vector<8x1xf32>
    %204 = vector.broadcast %203 : vector<8x1xf32> to vector<8x64xf32>
    %205 = arith.mulf %200, %204 : vector<8x64xf32>
    %206 = arith.truncf %205 : vector<8x64xf32> to vector<8x64xbf16>
    %c0_95 = arith.constant 0 : index
    %c0_96 = arith.constant 0 : index
    %207 = vector.load %arg4[%c0_95, %c0_96] : memref<64x64xbf16, #tpu.memory_space<vmem>>, vector<64x64xbf16>
    %cst_97 = arith.constant dense<0.000000e+00> : vector<8x64xf32>
    %208 = tpu.matmul %206, %207, %cst_97 {dimension_numbers = #tpu.dot_dimension_numbers<[1], [0], [0], [1], [0, 0, 1, 1], [], []>} : vector<8x64xbf16>, vector<64x64xbf16>, vector<8x64xf32> -> vector<8x64xf32>
    %209 = arith.addf %208, %195 : vector<8x64xf32>
    %210 = math.tanh %209 : vector<8x64xf32>
    %c2 = arith.constant 2 : index
    %c0_98 = arith.constant 0 : index
    %c0_99 = arith.constant 0 : index
    %211 = vector.load %arg10[%c2, %c0_98, %c0_99] : memref<6x8x64xf32, #tpu.memory_space<vmem>>, vector<1x8x64xf32>
    %212 = vector.shape_cast %211 : vector<1x8x64xf32> to vector<8x64xf32>
    %213 = vector.shape_cast %210 : vector<8x64xf32> to vector<1x8x64xf32>
    tpu.vector_store %arg10[%c2, %c0_98, %c0_99], %213 {strides = array<i32>} : memref<6x8x64xf32, #tpu.memory_space<vmem>>, vector<1x8x64xf32>,
    %c0_100 = arith.constant 0 : index
    %c0_101 = arith.constant 0 : index
    %214 = vector.load %arg6[%c0_100, %c0_101] : memref<64x8xbf16, #tpu.memory_space<vmem>>, vector<64x8xbf16>
    %cst_102 = arith.constant dense<0.000000e+00> : vector<8x8xf32>
    %215 = tpu.matmul %206, %214, %cst_102 {dimension_numbers = #tpu.dot_dimension_numbers<[1], [0], [0], [1], [0, 0, 1, 1], [], []>} : vector<8x64xbf16>, vector<64x8xbf16>, vector<8x8xf32> -> vector<8x8xf32>
    %c2_103 = arith.constant 2 : index
    %c0_104 = arith.constant 0 : index
    %c0_105 = arith.constant 0 : index
    %216 = vector.load %arg11[%c2_103, %c0_104, %c0_105] : memref<6x8x8xf32, #tpu.memory_space<vmem>>, vector<1x8x8xf32>
    %217 = vector.shape_cast %216 : vector<1x8x8xf32> to vector<8x8xf32>
    %218 = vector.shape_cast %215 : vector<8x8xf32> to vector<1x8x8xf32>
    tpu.vector_store %arg11[%c2_103, %c0_104, %c0_105], %218 {strides = array<i32>} : memref<6x8x8xf32, #tpu.memory_space<vmem>>, vector<1x8x8xf32>,
    %219 = arith.truncf %210 : vector<8x64xf32> to vector<8x64xbf16>
    %c0_106 = arith.constant 0 : index
    %c0_107 = arith.constant 0 : index
    %220 = vector.load %arg5[%c0_106, %c0_107] : memref<64x64xbf16, #tpu.memory_space<vmem>>, vector<64x64xbf16>
    %cst_108 = arith.constant dense<0.000000e+00> : vector<8x64xf32>
    %221 = tpu.matmul %219, %220, %cst_108 {dimension_numbers = #tpu.dot_dimension_numbers<[1], [0], [0], [1], [0, 0, 1, 1], [], []>} : vector<8x64xbf16>, vector<64x64xbf16>, vector<8x64xf32> -> vector<8x64xf32>
    %c0_109 = arith.constant 0 : index
    %c0_110 = arith.constant 0 : index
    %222 = vector.load %arg7[%c0_109, %c0_110] : memref<8x64xf32, #tpu.memory_space<vmem>>, vector<8x64xf32>
    %223 = arith.addf %221, %222 : vector<8x64xf32>
    %cst_111 = arith.constant dense<0xFF800000> : vector<8xf32>
    %224 = vector.multi_reduction <maximumf>, %223, %cst_111 [1] : vector<8x64xf32> to vector<8xf32>
    %225 = vector.shape_cast %224 : vector<8xf32> to vector<8x1xf32>
    %226 = vector.broadcast %225 : vector<8x1xf32> to vector<8x64xf32>
    %227 = arith.subf %223, %226 : vector<8x64xf32>
    %228 = math.exp %227 : vector<8x64xf32>
    %cst_112 = arith.constant dense<0.000000e+00> : vector<8xf32>
    %229 = vector.multi_reduction <add>, %228, %cst_112 [1] : vector<8x64xf32> to vector<8xf32>
    %230 = vector.shape_cast %229 : vector<8xf32> to vector<8x1xf32>
    %231 = tpu.reciprocal %230 {approx = true} : vector<8x1xf32> -> vector<8x1xf32>
    %232 = vector.broadcast %231 : vector<8x1xf32> to vector<8x64xf32>
    %233 = arith.mulf %228, %232 : vector<8x64xf32>
    %234 = arith.truncf %233 : vector<8x64xf32> to vector<8x64xbf16>
    %c0_113 = arith.constant 0 : index
    %c0_114 = arith.constant 0 : index
    %235 = vector.load %arg6[%c0_113, %c0_114] : memref<64x8xbf16, #tpu.memory_space<vmem>>, vector<64x8xbf16>
    %cst_115 = arith.constant dense<0.000000e+00> : vector<8x8xf32>
    %236 = tpu.matmul %234, %235, %cst_115 {dimension_numbers = #tpu.dot_dimension_numbers<[1], [0], [0], [1], [0, 0, 1, 1], [], []>} : vector<8x64xbf16>, vector<64x8xbf16>, vector<8x8xf32> -> vector<8x8xf32>
    %c2_116 = arith.constant 2 : index
    %c0_117 = arith.constant 0 : index
    %c0_118 = arith.constant 0 : index
    %237 = vector.load %arg12[%c2_116, %c0_117, %c0_118] : memref<6x8x8xf32, #tpu.memory_space<vmem>>, vector<1x8x8xf32>
    %238 = vector.shape_cast %237 : vector<1x8x8xf32> to vector<8x8xf32>
    %239 = vector.shape_cast %236 : vector<8x8xf32> to vector<1x8x8xf32>
    tpu.vector_store %arg12[%c2_116, %c0_117, %c0_118], %239 {strides = array<i32>} : memref<6x8x8xf32, #tpu.memory_space<vmem>>, vector<1x8x8xf32>,
    %c24 = arith.constant 24 : index
    %c0_119 = arith.constant 0 : index
    %240 = vector.load %arg13[%c24, %c0_119] : memref<48x256xf32, #tpu.memory_space<vmem>>, vector<8x256xf32>
    %241 = arith.addf %240, %191 : vector<8x256xf32>
    %242 = tpu.iota {dimensions = array<i32: 1>} : vector<8x256xi32>
    %c128_i32_120 = arith.constant 128 : i32
    %243 = vector.broadcast %c128_i32_120 : i32 to vector<8x256xi32>
    %244 = arith.cmpi sge, %242, %243 : vector<8x256xi32>
    %c192_i32_121 = arith.constant 192 : i32
    %245 = vector.broadcast %c192_i32_121 : i32 to vector<8x256xi32>
    %246 = arith.cmpi slt, %242, %245 : vector<8x256xi32>
    %247 = arith.andi %244, %246 : vector<8x256xi1>
    %248 = math.tanh %241 : vector<8x256xf32>
    %249 = arith.negf %241 : vector<8x256xf32>
    %250 = math.exp %249 : vector<8x256xf32>
    %cst_122 = arith.constant 1.000000e+00 : f32
    %251 = vector.broadcast %cst_122 : f32 to vector<8x256xf32>
    %252 = arith.addf %251, %250 : vector<8x256xf32>
    %253 = arith.divf %251, %252 : vector<8x256xf32>
    %254 = arith.select %247, %248, %253 : vector<8x256xi1>, vector<8x256xf32>
    %255 = vector.extract_strided_slice %254 {offsets = [0, 0], sizes = [8, 64], strides = [1, 1]} : vector<8x256xf32> to vector<8x64xf32>
    %256 = vector.extract_strided_slice %254 {offsets = [0, 64], sizes = [8, 64], strides = [1, 1]} : vector<8x256xf32> to vector<8x64xf32>
    %257 = vector.extract_strided_slice %254 {offsets = [0, 128], sizes = [8, 64], strides = [1, 1]} : vector<8x256xf32> to vector<8x64xf32>
    %258 = vector.extract_strided_slice %254 {offsets = [0, 192], sizes = [8, 64], strides = [1, 1]} : vector<8x256xf32> to vector<8x64xf32>
    %259 = arith.mulf %256, %185 : vector<8x64xf32>
    %260 = arith.mulf %255, %257 : vector<8x64xf32>
    %261 = arith.addf %259, %260 : vector<8x64xf32>
    %262 = math.tanh %261 : vector<8x64xf32>
    %263 = arith.mulf %258, %262 : vector<8x64xf32>
    %264 = arith.truncf %263 : vector<8x64xf32> to vector<8x64xbf16>
    %c0_123 = arith.constant 0 : index
    %c0_124 = arith.constant 0 : index
    %265 = vector.load %arg3[%c0_123, %c0_124] : memref<64x384xbf16, #tpu.memory_space<vmem>>, vector<64x384xbf16>
    %cst_125 = arith.constant dense<0.000000e+00> : vector<8x384xf32>
    %266 = tpu.matmul %264, %265, %cst_125 {dimension_numbers = #tpu.dot_dimension_numbers<[1], [0], [0], [1], [0, 0, 1, 1], [], []>} : vector<8x64xbf16>, vector<64x384xbf16>, vector<8x384xf32> -> vector<8x384xf32>
    %267 = vector.extract_strided_slice %266 {offsets = [0, 0], sizes = [8, 256], strides = [1, 1]} : vector<8x384xf32> to vector<8x256xf32>
    %268 = vector.extract_strided_slice %266 {offsets = [0, 256], sizes = [8, 64], strides = [1, 1]} : vector<8x384xf32> to vector<8x64xf32>
    %c0_126 = arith.constant 0 : index
    %c0_127 = arith.constant 0 : index
    %269 = vector.load %arg7[%c0_126, %c0_127] : memref<8x64xf32, #tpu.memory_space<vmem>>, vector<8x64xf32>
    %270 = arith.addf %268, %269 : vector<8x64xf32>
    %271 = vector.extract_strided_slice %266 {offsets = [0, 320], sizes = [8, 64], strides = [1, 1]} : vector<8x384xf32> to vector<8x64xf32>
    %cst_128 = arith.constant dense<0xFF800000> : vector<8xf32>
    %272 = vector.multi_reduction <maximumf>, %270, %cst_128 [1] : vector<8x64xf32> to vector<8xf32>
    %273 = vector.shape_cast %272 : vector<8xf32> to vector<8x1xf32>
    %274 = vector.broadcast %273 : vector<8x1xf32> to vector<8x64xf32>
    %275 = arith.subf %270, %274 : vector<8x64xf32>
    %276 = math.exp %275 : vector<8x64xf32>
    %cst_129 = arith.constant dense<0.000000e+00> : vector<8xf32>
    %277 = vector.multi_reduction <add>, %276, %cst_129 [1] : vector<8x64xf32> to vector<8xf32>
    %278 = vector.shape_cast %277 : vector<8xf32> to vector<8x1xf32>
    %279 = tpu.reciprocal %278 {approx = true} : vector<8x1xf32> -> vector<8x1xf32>
    %280 = vector.broadcast %279 : vector<8x1xf32> to vector<8x64xf32>
    %281 = arith.mulf %276, %280 : vector<8x64xf32>
    %282 = arith.truncf %281 : vector<8x64xf32> to vector<8x64xbf16>
    %c0_130 = arith.constant 0 : index
    %c0_131 = arith.constant 0 : index
    %283 = vector.load %arg4[%c0_130, %c0_131] : memref<64x64xbf16, #tpu.memory_space<vmem>>, vector<64x64xbf16>
    %cst_132 = arith.constant dense<0.000000e+00> : vector<8x64xf32>
    %284 = tpu.matmul %282, %283, %cst_132 {dimension_numbers = #tpu.dot_dimension_numbers<[1], [0], [0], [1], [0, 0, 1, 1], [], []>} : vector<8x64xbf16>, vector<64x64xbf16>, vector<8x64xf32> -> vector<8x64xf32>
    %285 = arith.addf %284, %271 : vector<8x64xf32>
    %286 = math.tanh %285 : vector<8x64xf32>
    %c3 = arith.constant 3 : index
    %c0_133 = arith.constant 0 : index
    %c0_134 = arith.constant 0 : index
    %287 = vector.load %arg10[%c3, %c0_133, %c0_134] : memref<6x8x64xf32, #tpu.memory_space<vmem>>, vector<1x8x64xf32>
    %288 = vector.shape_cast %287 : vector<1x8x64xf32> to vector<8x64xf32>
    %289 = vector.shape_cast %286 : vector<8x64xf32> to vector<1x8x64xf32>
    tpu.vector_store %arg10[%c3, %c0_133, %c0_134], %289 {strides = array<i32>} : memref<6x8x64xf32, #tpu.memory_space<vmem>>, vector<1x8x64xf32>,
    %c0_135 = arith.constant 0 : index
    %c0_136 = arith.constant 0 : index
    %290 = vector.load %arg6[%c0_135, %c0_136] : memref<64x8xbf16, #tpu.memory_space<vmem>>, vector<64x8xbf16>
    %cst_137 = arith.constant dense<0.000000e+00> : vector<8x8xf32>
    %291 = tpu.matmul %282, %290, %cst_137 {dimension_numbers = #tpu.dot_dimension_numbers<[1], [0], [0], [1], [0, 0, 1, 1], [], []>} : vector<8x64xbf16>, vector<64x8xbf16>, vector<8x8xf32> -> vector<8x8xf32>
    %c3_138 = arith.constant 3 : index
    %c0_139 = arith.constant 0 : index
    %c0_140 = arith.constant 0 : index
    %292 = vector.load %arg11[%c3_138, %c0_139, %c0_140] : memref<6x8x8xf32, #tpu.memory_space<vmem>>, vector<1x8x8xf32>
    %293 = vector.shape_cast %292 : vector<1x8x8xf32> to vector<8x8xf32>
    %294 = vector.shape_cast %291 : vector<8x8xf32> to vector<1x8x8xf32>
    tpu.vector_store %arg11[%c3_138, %c0_139, %c0_140], %294 {strides = array<i32>} : memref<6x8x8xf32, #tpu.memory_space<vmem>>, vector<1x8x8xf32>,
    %295 = arith.truncf %286 : vector<8x64xf32> to vector<8x64xbf16>
    %c0_141 = arith.constant 0 : index
    %c0_142 = arith.constant 0 : index
    %296 = vector.load %arg5[%c0_141, %c0_142] : memref<64x64xbf16, #tpu.memory_space<vmem>>, vector<64x64xbf16>
    %cst_143 = arith.constant dense<0.000000e+00> : vector<8x64xf32>
    %297 = tpu.matmul %295, %296, %cst_143 {dimension_numbers = #tpu.dot_dimension_numbers<[1], [0], [0], [1], [0, 0, 1, 1], [], []>} : vector<8x64xbf16>, vector<64x64xbf16>, vector<8x64xf32> -> vector<8x64xf32>
    %c0_144 = arith.constant 0 : index
    %c0_145 = arith.constant 0 : index
    %298 = vector.load %arg7[%c0_144, %c0_145] : memref<8x64xf32, #tpu.memory_space<vmem>>, vector<8x64xf32>
    %299 = arith.addf %297, %298 : vector<8x64xf32>
    %cst_146 = arith.constant dense<0xFF800000> : vector<8xf32>
    %300 = vector.multi_reduction <maximumf>, %299, %cst_146 [1] : vector<8x64xf32> to vector<8xf32>
    %301 = vector.shape_cast %300 : vector<8xf32> to vector<8x1xf32>
    %302 = vector.broadcast %301 : vector<8x1xf32> to vector<8x64xf32>
    %303 = arith.subf %299, %302 : vector<8x64xf32>
    %304 = math.exp %303 : vector<8x64xf32>
    %cst_147 = arith.constant dense<0.000000e+00> : vector<8xf32>
    %305 = vector.multi_reduction <add>, %304, %cst_147 [1] : vector<8x64xf32> to vector<8xf32>
    %306 = vector.shape_cast %305 : vector<8xf32> to vector<8x1xf32>
    %307 = tpu.reciprocal %306 {approx = true} : vector<8x1xf32> -> vector<8x1xf32>
    %308 = vector.broadcast %307 : vector<8x1xf32> to vector<8x64xf32>
    %309 = arith.mulf %304, %308 : vector<8x64xf32>
    %310 = arith.truncf %309 : vector<8x64xf32> to vector<8x64xbf16>
    %c0_148 = arith.constant 0 : index
    %c0_149 = arith.constant 0 : index
    %311 = vector.load %arg6[%c0_148, %c0_149] : memref<64x8xbf16, #tpu.memory_space<vmem>>, vector<64x8xbf16>
    %cst_150 = arith.constant dense<0.000000e+00> : vector<8x8xf32>
    %312 = tpu.matmul %310, %311, %cst_150 {dimension_numbers = #tpu.dot_dimension_numbers<[1], [0], [0], [1], [0, 0, 1, 1], [], []>} : vector<8x64xbf16>, vector<64x8xbf16>, vector<8x8xf32> -> vector<8x8xf32>
    %c3_151 = arith.constant 3 : index
    %c0_152 = arith.constant 0 : index
    %c0_153 = arith.constant 0 : index
    %313 = vector.load %arg12[%c3_151, %c0_152, %c0_153] : memref<6x8x8xf32, #tpu.memory_space<vmem>>, vector<1x8x8xf32>
    %314 = vector.shape_cast %313 : vector<1x8x8xf32> to vector<8x8xf32>
    %315 = vector.shape_cast %312 : vector<8x8xf32> to vector<1x8x8xf32>
    tpu.vector_store %arg12[%c3_151, %c0_152, %c0_153], %315 {strides = array<i32>} : memref<6x8x8xf32, #tpu.memory_space<vmem>>, vector<1x8x8xf32>,
    %c32 = arith.constant 32 : index
    %c0_154 = arith.constant 0 : index
    %316 = vector.load %arg13[%c32, %c0_154] : memref<48x256xf32, #tpu.memory_space<vmem>>, vector<8x256xf32>
    %317 = arith.addf %316, %267 : vector<8x256xf32>
    %318 = tpu.iota {dimensions = array<i32: 1>} : vector<8x256xi32>
    %c128_i32_155 = arith.constant 128 : i32
    %319 = vector.broadcast %c128_i32_155 : i32 to vector<8x256xi32>
    %320 = arith.cmpi sge, %318, %319 : vector<8x256xi32>
    %c192_i32_156 = arith.constant 192 : i32
    %321 = vector.broadcast %c192_i32_156 : i32 to vector<8x256xi32>
    %322 = arith.cmpi slt, %318, %321 : vector<8x256xi32>
    %323 = arith.andi %320, %322 : vector<8x256xi1>
    %324 = math.tanh %317 : vector<8x256xf32>
    %325 = arith.negf %317 : vector<8x256xf32>
    %326 = math.exp %325 : vector<8x256xf32>
    %cst_157 = arith.constant 1.000000e+00 : f32
    %327 = vector.broadcast %cst_157 : f32 to vector<8x256xf32>
    %328 = arith.addf %327, %326 : vector<8x256xf32>
    %329 = arith.divf %327, %328 : vector<8x256xf32>
    %330 = arith.select %323, %324, %329 : vector<8x256xi1>, vector<8x256xf32>
    %331 = vector.extract_strided_slice %330 {offsets = [0, 0], sizes = [8, 64], strides = [1, 1]} : vector<8x256xf32> to vector<8x64xf32>
    %332 = vector.extract_strided_slice %330 {offsets = [0, 64], sizes = [8, 64], strides = [1, 1]} : vector<8x256xf32> to vector<8x64xf32>
    %333 = vector.extract_strided_slice %330 {offsets = [0, 128], sizes = [8, 64], strides = [1, 1]} : vector<8x256xf32> to vector<8x64xf32>
    %334 = vector.extract_strided_slice %330 {offsets = [0, 192], sizes = [8, 64], strides = [1, 1]} : vector<8x256xf32> to vector<8x64xf32>
    %335 = arith.mulf %332, %261 : vector<8x64xf32>
    %336 = arith.mulf %331, %333 : vector<8x64xf32>
    %337 = arith.addf %335, %336 : vector<8x64xf32>
    %338 = math.tanh %337 : vector<8x64xf32>
    %339 = arith.mulf %334, %338 : vector<8x64xf32>
    %340 = arith.truncf %339 : vector<8x64xf32> to vector<8x64xbf16>
    %c0_158 = arith.constant 0 : index
    %c0_159 = arith.constant 0 : index
    %341 = vector.load %arg3[%c0_158, %c0_159] : memref<64x384xbf16, #tpu.memory_space<vmem>>, vector<64x384xbf16>
    %cst_160 = arith.constant dense<0.000000e+00> : vector<8x384xf32>
    %342 = tpu.matmul %340, %341, %cst_160 {dimension_numbers = #tpu.dot_dimension_numbers<[1], [0], [0], [1], [0, 0, 1, 1], [], []>} : vector<8x64xbf16>, vector<64x384xbf16>, vector<8x384xf32> -> vector<8x384xf32>
    %343 = vector.extract_strided_slice %342 {offsets = [0, 0], sizes = [8, 256], strides = [1, 1]} : vector<8x384xf32> to vector<8x256xf32>
    %344 = vector.extract_strided_slice %342 {offsets = [0, 256], sizes = [8, 64], strides = [1, 1]} : vector<8x384xf32> to vector<8x64xf32>
    %c0_161 = arith.constant 0 : index
    %c0_162 = arith.constant 0 : index
    %345 = vector.load %arg7[%c0_161, %c0_162] : memref<8x64xf32, #tpu.memory_space<vmem>>, vector<8x64xf32>
    %346 = arith.addf %344, %345 : vector<8x64xf32>
    %347 = vector.extract_strided_slice %342 {offsets = [0, 320], sizes = [8, 64], strides = [1, 1]} : vector<8x384xf32> to vector<8x64xf32>
    %cst_163 = arith.constant dense<0xFF800000> : vector<8xf32>
    %348 = vector.multi_reduction <maximumf>, %346, %cst_163 [1] : vector<8x64xf32> to vector<8xf32>
    %349 = vector.shape_cast %348 : vector<8xf32> to vector<8x1xf32>
    %350 = vector.broadcast %349 : vector<8x1xf32> to vector<8x64xf32>
    %351 = arith.subf %346, %350 : vector<8x64xf32>
    %352 = math.exp %351 : vector<8x64xf32>
    %cst_164 = arith.constant dense<0.000000e+00> : vector<8xf32>
    %353 = vector.multi_reduction <add>, %352, %cst_164 [1] : vector<8x64xf32> to vector<8xf32>
    %354 = vector.shape_cast %353 : vector<8xf32> to vector<8x1xf32>
    %355 = tpu.reciprocal %354 {approx = true} : vector<8x1xf32> -> vector<8x1xf32>
    %356 = vector.broadcast %355 : vector<8x1xf32> to vector<8x64xf32>
    %357 = arith.mulf %352, %356 : vector<8x64xf32>
    %358 = arith.truncf %357 : vector<8x64xf32> to vector<8x64xbf16>
    %c0_165 = arith.constant 0 : index
    %c0_166 = arith.constant 0 : index
    %359 = vector.load %arg4[%c0_165, %c0_166] : memref<64x64xbf16, #tpu.memory_space<vmem>>, vector<64x64xbf16>
    %cst_167 = arith.constant dense<0.000000e+00> : vector<8x64xf32>
    %360 = tpu.matmul %358, %359, %cst_167 {dimension_numbers = #tpu.dot_dimension_numbers<[1], [0], [0], [1], [0, 0, 1, 1], [], []>} : vector<8x64xbf16>, vector<64x64xbf16>, vector<8x64xf32> -> vector<8x64xf32>
    %361 = arith.addf %360, %347 : vector<8x64xf32>
    %362 = math.tanh %361 : vector<8x64xf32>
    %c4 = arith.constant 4 : index
    %c0_168 = arith.constant 0 : index
    %c0_169 = arith.constant 0 : index
    %363 = vector.load %arg10[%c4, %c0_168, %c0_169] : memref<6x8x64xf32, #tpu.memory_space<vmem>>, vector<1x8x64xf32>
    %364 = vector.shape_cast %363 : vector<1x8x64xf32> to vector<8x64xf32>
    %365 = vector.shape_cast %362 : vector<8x64xf32> to vector<1x8x64xf32>
    tpu.vector_store %arg10[%c4, %c0_168, %c0_169], %365 {strides = array<i32>} : memref<6x8x64xf32, #tpu.memory_space<vmem>>, vector<1x8x64xf32>,
    %c0_170 = arith.constant 0 : index
    %c0_171 = arith.constant 0 : index
    %366 = vector.load %arg6[%c0_170, %c0_171] : memref<64x8xbf16, #tpu.memory_space<vmem>>, vector<64x8xbf16>
    %cst_172 = arith.constant dense<0.000000e+00> : vector<8x8xf32>
    %367 = tpu.matmul %358, %366, %cst_172 {dimension_numbers = #tpu.dot_dimension_numbers<[1], [0], [0], [1], [0, 0, 1, 1], [], []>} : vector<8x64xbf16>, vector<64x8xbf16>, vector<8x8xf32> -> vector<8x8xf32>
    %c4_173 = arith.constant 4 : index
    %c0_174 = arith.constant 0 : index
    %c0_175 = arith.constant 0 : index
    %368 = vector.load %arg11[%c4_173, %c0_174, %c0_175] : memref<6x8x8xf32, #tpu.memory_space<vmem>>, vector<1x8x8xf32>
    %369 = vector.shape_cast %368 : vector<1x8x8xf32> to vector<8x8xf32>
    %370 = vector.shape_cast %367 : vector<8x8xf32> to vector<1x8x8xf32>
    tpu.vector_store %arg11[%c4_173, %c0_174, %c0_175], %370 {strides = array<i32>} : memref<6x8x8xf32, #tpu.memory_space<vmem>>, vector<1x8x8xf32>,
    %371 = arith.truncf %362 : vector<8x64xf32> to vector<8x64xbf16>
    %c0_176 = arith.constant 0 : index
    %c0_177 = arith.constant 0 : index
    %372 = vector.load %arg5[%c0_176, %c0_177] : memref<64x64xbf16, #tpu.memory_space<vmem>>, vector<64x64xbf16>
    %cst_178 = arith.constant dense<0.000000e+00> : vector<8x64xf32>
    %373 = tpu.matmul %371, %372, %cst_178 {dimension_numbers = #tpu.dot_dimension_numbers<[1], [0], [0], [1], [0, 0, 1, 1], [], []>} : vector<8x64xbf16>, vector<64x64xbf16>, vector<8x64xf32> -> vector<8x64xf32>
    %c0_179 = arith.constant 0 : index
    %c0_180 = arith.constant 0 : index
    %374 = vector.load %arg7[%c0_179, %c0_180] : memref<8x64xf32, #tpu.memory_space<vmem>>, vector<8x64xf32>
    %375 = arith.addf %373, %374 : vector<8x64xf32>
    %cst_181 = arith.constant dense<0xFF800000> : vector<8xf32>
    %376 = vector.multi_reduction <maximumf>, %375, %cst_181 [1] : vector<8x64xf32> to vector<8xf32>
    %377 = vector.shape_cast %376 : vector<8xf32> to vector<8x1xf32>
    %378 = vector.broadcast %377 : vector<8x1xf32> to vector<8x64xf32>
    %379 = arith.subf %375, %378 : vector<8x64xf32>
    %380 = math.exp %379 : vector<8x64xf32>
    %cst_182 = arith.constant dense<0.000000e+00> : vector<8xf32>
    %381 = vector.multi_reduction <add>, %380, %cst_182 [1] : vector<8x64xf32> to vector<8xf32>
    %382 = vector.shape_cast %381 : vector<8xf32> to vector<8x1xf32>
    %383 = tpu.reciprocal %382 {approx = true} : vector<8x1xf32> -> vector<8x1xf32>
    %384 = vector.broadcast %383 : vector<8x1xf32> to vector<8x64xf32>
    %385 = arith.mulf %380, %384 : vector<8x64xf32>
    %386 = arith.truncf %385 : vector<8x64xf32> to vector<8x64xbf16>
    %c0_183 = arith.constant 0 : index
    %c0_184 = arith.constant 0 : index
    %387 = vector.load %arg6[%c0_183, %c0_184] : memref<64x8xbf16, #tpu.memory_space<vmem>>, vector<64x8xbf16>
    %cst_185 = arith.constant dense<0.000000e+00> : vector<8x8xf32>
    %388 = tpu.matmul %386, %387, %cst_185 {dimension_numbers = #tpu.dot_dimension_numbers<[1], [0], [0], [1], [0, 0, 1, 1], [], []>} : vector<8x64xbf16>, vector<64x8xbf16>, vector<8x8xf32> -> vector<8x8xf32>
    %c4_186 = arith.constant 4 : index
    %c0_187 = arith.constant 0 : index
    %c0_188 = arith.constant 0 : index
    %389 = vector.load %arg12[%c4_186, %c0_187, %c0_188] : memref<6x8x8xf32, #tpu.memory_space<vmem>>, vector<1x8x8xf32>
    %390 = vector.shape_cast %389 : vector<1x8x8xf32> to vector<8x8xf32>
    %391 = vector.shape_cast %388 : vector<8x8xf32> to vector<1x8x8xf32>
    tpu.vector_store %arg12[%c4_186, %c0_187, %c0_188], %391 {strides = array<i32>} : memref<6x8x8xf32, #tpu.memory_space<vmem>>, vector<1x8x8xf32>,
    %c40 = arith.constant 40 : index
    %c0_189 = arith.constant 0 : index
    %392 = vector.load %arg13[%c40, %c0_189] : memref<48x256xf32, #tpu.memory_space<vmem>>, vector<8x256xf32>
    %393 = arith.addf %392, %343 : vector<8x256xf32>
    %394 = tpu.iota {dimensions = array<i32: 1>} : vector<8x256xi32>
    %c128_i32_190 = arith.constant 128 : i32
    %395 = vector.broadcast %c128_i32_190 : i32 to vector<8x256xi32>
    %396 = arith.cmpi sge, %394, %395 : vector<8x256xi32>
    %c192_i32_191 = arith.constant 192 : i32
    %397 = vector.broadcast %c192_i32_191 : i32 to vector<8x256xi32>
    %398 = arith.cmpi slt, %394, %397 : vector<8x256xi32>
    %399 = arith.andi %396, %398 : vector<8x256xi1>
    %400 = math.tanh %393 : vector<8x256xf32>
    %401 = arith.negf %393 : vector<8x256xf32>
    %402 = math.exp %401 : vector<8x256xf32>
    %cst_192 = arith.constant 1.000000e+00 : f32
    %403 = vector.broadcast %cst_192 : f32 to vector<8x256xf32>
    %404 = arith.addf %403, %402 : vector<8x256xf32>
    %405 = arith.divf %403, %404 : vector<8x256xf32>
    %406 = arith.select %399, %400, %405 : vector<8x256xi1>, vector<8x256xf32>
    %407 = vector.extract_strided_slice %406 {offsets = [0, 0], sizes = [8, 64], strides = [1, 1]} : vector<8x256xf32> to vector<8x64xf32>
    %408 = vector.extract_strided_slice %406 {offsets = [0, 64], sizes = [8, 64], strides = [1, 1]} : vector<8x256xf32> to vector<8x64xf32>
    %409 = vector.extract_strided_slice %406 {offsets = [0, 128], sizes = [8, 64], strides = [1, 1]} : vector<8x256xf32> to vector<8x64xf32>
    %410 = vector.extract_strided_slice %406 {offsets = [0, 192], sizes = [8, 64], strides = [1, 1]} : vector<8x256xf32> to vector<8x64xf32>
    %411 = arith.mulf %408, %337 : vector<8x64xf32>
    %412 = arith.mulf %407, %409 : vector<8x64xf32>
    %413 = arith.addf %411, %412 : vector<8x64xf32>
    %414 = math.tanh %413 : vector<8x64xf32>
    %415 = arith.mulf %410, %414 : vector<8x64xf32>
    %416 = arith.truncf %415 : vector<8x64xf32> to vector<8x64xbf16>
    %c0_193 = arith.constant 0 : index
    %c0_194 = arith.constant 0 : index
    %417 = vector.load %arg3[%c0_193, %c0_194] : memref<64x384xbf16, #tpu.memory_space<vmem>>, vector<64x384xbf16>
    %cst_195 = arith.constant dense<0.000000e+00> : vector<8x384xf32>
    %418 = tpu.matmul %416, %417, %cst_195 {dimension_numbers = #tpu.dot_dimension_numbers<[1], [0], [0], [1], [0, 0, 1, 1], [], []>} : vector<8x64xbf16>, vector<64x384xbf16>, vector<8x384xf32> -> vector<8x384xf32>
    %419 = vector.extract_strided_slice %418 {offsets = [0, 256], sizes = [8, 64], strides = [1, 1]} : vector<8x384xf32> to vector<8x64xf32>
    %c0_196 = arith.constant 0 : index
    %c0_197 = arith.constant 0 : index
    %420 = vector.load %arg7[%c0_196, %c0_197] : memref<8x64xf32, #tpu.memory_space<vmem>>, vector<8x64xf32>
    %421 = arith.addf %419, %420 : vector<8x64xf32>
    %422 = vector.extract_strided_slice %418 {offsets = [0, 320], sizes = [8, 64], strides = [1, 1]} : vector<8x384xf32> to vector<8x64xf32>
    %cst_198 = arith.constant dense<0xFF800000> : vector<8xf32>
    %423 = vector.multi_reduction <maximumf>, %421, %cst_198 [1] : vector<8x64xf32> to vector<8xf32>
    %424 = vector.shape_cast %423 : vector<8xf32> to vector<8x1xf32>
    %425 = vector.broadcast %424 : vector<8x1xf32> to vector<8x64xf32>
    %426 = arith.subf %421, %425 : vector<8x64xf32>
    %427 = math.exp %426 : vector<8x64xf32>
    %cst_199 = arith.constant dense<0.000000e+00> : vector<8xf32>
    %428 = vector.multi_reduction <add>, %427, %cst_199 [1] : vector<8x64xf32> to vector<8xf32>
    %429 = vector.shape_cast %428 : vector<8xf32> to vector<8x1xf32>
    %430 = tpu.reciprocal %429 {approx = true} : vector<8x1xf32> -> vector<8x1xf32>
    %431 = vector.broadcast %430 : vector<8x1xf32> to vector<8x64xf32>
    %432 = arith.mulf %427, %431 : vector<8x64xf32>
    %433 = arith.truncf %432 : vector<8x64xf32> to vector<8x64xbf16>
    %c0_200 = arith.constant 0 : index
    %c0_201 = arith.constant 0 : index
    %434 = vector.load %arg4[%c0_200, %c0_201] : memref<64x64xbf16, #tpu.memory_space<vmem>>, vector<64x64xbf16>
    %cst_202 = arith.constant dense<0.000000e+00> : vector<8x64xf32>
    %435 = tpu.matmul %433, %434, %cst_202 {dimension_numbers = #tpu.dot_dimension_numbers<[1], [0], [0], [1], [0, 0, 1, 1], [], []>} : vector<8x64xbf16>, vector<64x64xbf16>, vector<8x64xf32> -> vector<8x64xf32>
    %436 = arith.addf %435, %422 : vector<8x64xf32>
    %437 = math.tanh %436 : vector<8x64xf32>
    %c5 = arith.constant 5 : index
    %c0_203 = arith.constant 0 : index
    %c0_204 = arith.constant 0 : index
    %438 = vector.load %arg10[%c5, %c0_203, %c0_204] : memref<6x8x64xf32, #tpu.memory_space<vmem>>, vector<1x8x64xf32>
    %439 = vector.shape_cast %438 : vector<1x8x64xf32> to vector<8x64xf32>
    %440 = vector.shape_cast %437 : vector<8x64xf32> to vector<1x8x64xf32>
    tpu.vector_store %arg10[%c5, %c0_203, %c0_204], %440 {strides = array<i32>} : memref<6x8x64xf32, #tpu.memory_space<vmem>>, vector<1x8x64xf32>,
    %c0_205 = arith.constant 0 : index
    %c0_206 = arith.constant 0 : index
    %441 = vector.load %arg6[%c0_205, %c0_206] : memref<64x8xbf16, #tpu.memory_space<vmem>>, vector<64x8xbf16>
    %cst_207 = arith.constant dense<0.000000e+00> : vector<8x8xf32>
    %442 = tpu.matmul %433, %441, %cst_207 {dimension_numbers = #tpu.dot_dimension_numbers<[1], [0], [0], [1], [0, 0, 1, 1], [], []>} : vector<8x64xbf16>, vector<64x8xbf16>, vector<8x8xf32> -> vector<8x8xf32>
    %c5_208 = arith.constant 5 : index
    %c0_209 = arith.constant 0 : index
    %c0_210 = arith.constant 0 : index
    %443 = vector.load %arg11[%c5_208, %c0_209, %c0_210] : memref<6x8x8xf32, #tpu.memory_space<vmem>>, vector<1x8x8xf32>
    %444 = vector.shape_cast %443 : vector<1x8x8xf32> to vector<8x8xf32>
    %445 = vector.shape_cast %442 : vector<8x8xf32> to vector<1x8x8xf32>
    tpu.vector_store %arg11[%c5_208, %c0_209, %c0_210], %445 {strides = array<i32>} : memref<6x8x8xf32, #tpu.memory_space<vmem>>, vector<1x8x8xf32>,
    %446 = arith.truncf %437 : vector<8x64xf32> to vector<8x64xbf16>
    %c0_211 = arith.constant 0 : index
    %c0_212 = arith.constant 0 : index
    %447 = vector.load %arg5[%c0_211, %c0_212] : memref<64x64xbf16, #tpu.memory_space<vmem>>, vector<64x64xbf16>
    %cst_213 = arith.constant dense<0.000000e+00> : vector<8x64xf32>
    %448 = tpu.matmul %446, %447, %cst_213 {dimension_numbers = #tpu.dot_dimension_numbers<[1], [0], [0], [1], [0, 0, 1, 1], [], []>} : vector<8x64xbf16>, vector<64x64xbf16>, vector<8x64xf32> -> vector<8x64xf32>
    %c0_214 = arith.constant 0 : index
    %c0_215 = arith.constant 0 : index
    %449 = vector.load %arg7[%c0_214, %c0_215] : memref<8x64xf32, #tpu.memory_space<vmem>>, vector<8x64xf32>
    %450 = arith.addf %448, %449 : vector<8x64xf32>
    %cst_216 = arith.constant dense<0xFF800000> : vector<8xf32>
    %451 = vector.multi_reduction <maximumf>, %450, %cst_216 [1] : vector<8x64xf32> to vector<8xf32>
    %452 = vector.shape_cast %451 : vector<8xf32> to vector<8x1xf32>
    %453 = vector.broadcast %452 : vector<8x1xf32> to vector<8x64xf32>
    %454 = arith.subf %450, %453 : vector<8x64xf32>
    %455 = math.exp %454 : vector<8x64xf32>
    %cst_217 = arith.constant dense<0.000000e+00> : vector<8xf32>
    %456 = vector.multi_reduction <add>, %455, %cst_217 [1] : vector<8x64xf32> to vector<8xf32>
    %457 = vector.shape_cast %456 : vector<8xf32> to vector<8x1xf32>
    %458 = tpu.reciprocal %457 {approx = true} : vector<8x1xf32> -> vector<8x1xf32>
    %459 = vector.broadcast %458 : vector<8x1xf32> to vector<8x64xf32>
    %460 = arith.mulf %455, %459 : vector<8x64xf32>
    %461 = arith.truncf %460 : vector<8x64xf32> to vector<8x64xbf16>
    %c0_218 = arith.constant 0 : index
    %c0_219 = arith.constant 0 : index
    %462 = vector.load %arg6[%c0_218, %c0_219] : memref<64x8xbf16, #tpu.memory_space<vmem>>, vector<64x8xbf16>
    %cst_220 = arith.constant dense<0.000000e+00> : vector<8x8xf32>
    %463 = tpu.matmul %461, %462, %cst_220 {dimension_numbers = #tpu.dot_dimension_numbers<[1], [0], [0], [1], [0, 0, 1, 1], [], []>} : vector<8x64xbf16>, vector<64x8xbf16>, vector<8x8xf32> -> vector<8x8xf32>
    %c5_221 = arith.constant 5 : index
    %c0_222 = arith.constant 0 : index
    %c0_223 = arith.constant 0 : index
    %464 = vector.load %arg12[%c5_221, %c0_222, %c0_223] : memref<6x8x8xf32, #tpu.memory_space<vmem>>, vector<1x8x8xf32>
    %465 = vector.shape_cast %464 : vector<1x8x8xf32> to vector<8x8xf32>
    %466 = vector.shape_cast %463 : vector<8x8xf32> to vector<1x8x8xf32>
    tpu.vector_store %arg12[%c5_221, %c0_222, %c0_223], %466 {strides = array<i32>} : memref<6x8x8xf32, #tpu.memory_space<vmem>>, vector<1x8x8xf32>,
    return
  }
}

</mosaic_0001>

<llo_original>
// kernel: lt.6
$region0: #{lt.6}
  #allocation0 [shape = 's32[1]{0}', space=sflag, size = 0x4, scoped, tag = 'scoped memory for lt.6']
  %s0 = inlined_call_operand.vmem [shape: s32[64], index: 0, kind: input, shape index: {}]
  %s1 = inlined_call_operand.vmem [shape: s32[64], index: 1, kind: input, shape index: {}]
  %s2 = inlined_call_operand.vmem [shape: pred[64], index: 2, kind: output, shape index: {}]
  %v3 = vld [vmem:[%s0] sm:$0x1]
  %v4 = vld [vmem:[%s1] sm:$0x1]
  %5 = xla_tuple %v3, %v4
  %6 = xla_tuple %5
  %vm7 = vcmp.lt.s32.totalorder %v3, %v4
  %v8 = vsel %vm7, 1, 0
  %9 = xla_tuple %v8
  %v10 = vpack.c.b16 0, %v8
  %v11 = vpack.c.b8 0, %v10
  %13 = vst [vmem:[%s2] sm:$0x1] %v11

// kernel: prod_decoder_forward.1
$region0: #{prod_decoder_forward.1}
  #allocation0 [shape = 'u32[]', space=smem, size = 0x4, offset = 0x4, fixed_abs, tag = 'smem constant byte address 0x4 - core index']
  #allocation1 [shape = 'u32[144,128]{1,0:T(1,128)}', space=vmem, size = 0x12000, scoped, tag = 'internal scratch']
  #allocation2 [shape = 'f32[48,256]{1,0:T(8,128)}', space=vmem, size = 0xc000, scoped, tag = 'scratch operand']
  %s0 = inlined_call_operand.vmem [shape: bf16[48,160], index: 0, kind: input, shape index: {}]
  %s1 = inlined_call_operand.vmem [shape: bf16[160,256], index: 1, kind: input, shape index: {}]
  %s2 = inlined_call_operand.vmem [shape: f32[1,256], index: 2, kind: input, shape index: {}]
  %s3 = inlined_call_operand.vmem [shape: bf16[64,384], index: 3, kind: input, shape index: {}]
  %s4 = inlined_call_operand.vmem [shape: bf16[64,64], index: 4, kind: input, shape index: {}]
  %s5 = inlined_call_operand.vmem [shape: bf16[64,64], index: 5, kind: input, shape index: {}]
  %s6 = inlined_call_operand.vmem [shape: bf16[64,8], index: 6, kind: input, shape index: {}]
  %s7 = inlined_call_operand.vmem [shape: f32[8,64], index: 7, kind: input, shape index: {}]
  %s8 = inlined_call_operand.vmem [shape: f32[8,64], index: 8, kind: input, shape index: {}]
  %s9 = inlined_call_operand.vmem [shape: f32[8,64], index: 9, kind: input, shape index: {}]
  %s10 = inlined_call_operand.vmem [shape: f32[6,8,64], index: 10, kind: output, shape index: {0}]
  %s11 = inlined_call_operand.vmem [shape: f32[6,8,8], index: 11, kind: output, shape index: {1}]
  %s12 = inlined_call_operand.vmem [shape: f32[6,8,8], index: 12, kind: output, shape index: {2}]
  %13 = xla_tuple %s10, %s11, %s12
  %s14 = sld [smem:[#allocation0]]
  $region66: #{prod_decoder_forward.1} parent=0
    _
  %s16 = ssub.s32 1, %s14
  %s17 = scalar_select 0, %s16, %s14
  // Predicated region
  $region2: #{prod_decoder_forward.1} parent=0 // pred_check
    _
  $region3: #{prod_decoder_forward.1} parent=0 // pred_check_branch
    %19 = sbr.rel (0) target = $region5
  $region4: #{prod_decoder_forward.1} parent=0 // pred_region
    _
  $region5: #{prod_decoder_forward.1} parent=0 // pred_fallthru
    _
  // Predicated region
  $region6: #{prod_decoder_forward.1} parent=0 // pred_check
    _
  $region7: #{prod_decoder_forward.1} parent=0 // pred_check_branch
    %21 = sbr.rel (0) target = $region9
  $region8: #{prod_decoder_forward.1} parent=0 // pred_region
    _
  $region9: #{prod_decoder_forward.1} parent=0 // pred_fallthru
    _
  // Predicated region
  $region10: #{prod_decoder_forward.1} parent=0 // pred_check
    _
  $region11: #{prod_decoder_forward.1} parent=0 // pred_check_branch
    %23 = sbr.rel (0) target = $region13
  $region12: #{prod_decoder_forward.1} parent=0 // pred_region
    _
  $region13: #{prod_decoder_forward.1} parent=0 // pred_fallthru
    _
  // Predicated region
  $region14: #{prod_decoder_forward.1} parent=0 // pred_check
    _
  $region15: #{prod_decoder_forward.1} parent=0 // pred_check_branch
    %25 = sbr.rel (0) target = $region17
  $region16: #{prod_decoder_forward.1} parent=0 // pred_region
    _
  $region17: #{prod_decoder_forward.1} parent=0 // pred_fallthru
    _
  // Predicated region
  $region18: #{prod_decoder_forward.1} parent=0 // pred_check
    _
  $region19: #{prod_decoder_forward.1} parent=0 // pred_check_branch
    %27 = sbr.rel (0) target = $region21
  $region20: #{prod_decoder_forward.1} parent=0 // pred_region
    _
  $region21: #{prod_decoder_forward.1} parent=0 // pred_fallthru
    _
  // Predicated region
  $region22: #{prod_decoder_forward.1} parent=0 // pred_check
    _
  $region23: #{prod_decoder_forward.1} parent=0 // pred_check_branch
    %29 = sbr.rel (0) target = $region25
  $region24: #{prod_decoder_forward.1} parent=0 // pred_region
    _
  $region25: #{prod_decoder_forward.1} parent=0 // pred_fallthru
    _
  // Predicated region
  $region26: #{prod_decoder_forward.1} parent=0 // pred_check
    _
  $region27: #{prod_decoder_forward.1} parent=0 // pred_check_branch
    %31 = sbr.rel (0) target = $region29
  $region28: #{prod_decoder_forward.1} parent=0 // pred_region
    _
  $region29: #{prod_decoder_forward.1} parent=0 // pred_fallthru
    _
  // Predicated region
  $region30: #{prod_decoder_forward.1} parent=0 // pred_check
    _
  $region31: #{prod_decoder_forward.1} parent=0 // pred_check_branch
    %33 = sbr.rel (0) target = $region33
  $region32: #{prod_decoder_forward.1} parent=0 // pred_region
    _
  $region33: #{prod_decoder_forward.1} parent=0 // pred_fallthru
    _
  // Predicated region
  $region34: #{prod_decoder_forward.1} parent=0 // pred_check
    _
  $region35: #{prod_decoder_forward.1} parent=0 // pred_check_branch
    %35 = sbr.rel (0) target = $region37
  $region36: #{prod_decoder_forward.1} parent=0 // pred_region
    _
  $region37: #{prod_decoder_forward.1} parent=0 // pred_fallthru
    _
  // Predicated region
  $region38: #{prod_decoder_forward.1} parent=0 // pred_check
    _
  $region39: #{prod_decoder_forward.1} parent=0 // pred_check_branch
    %37 = sbr.rel (0) target = $region41
  $region40: #{prod_decoder_forward.1} parent=0 // pred_region
    _
  $region41: #{prod_decoder_forward.1} parent=0 // pred_fallthru
    _
  %v39 = vld [vmem:[%s0] sm:$0xff]
  %v40 = vld [vmem:[%s0 + $0x8] sm:$0xff]
  %v41 = vld [vmem:[%s0 + $0x10] sm:$0xff]
  %v42 = vld [vmem:[%s0 + $0x18] sm:$0xff]
  %v43 = vld [vmem:[%s0 + $0x20] sm:$0xff]
  %v44 = vld [vmem:[%s0 + $0x28] sm:$0xff]
  %v45 = vld [vmem:[%s1] sm:$0xff]
  %v46 = vld [vmem:[%s1 + $0x8] sm:$0xff]
  %v47 = vld [vmem:[%s1 + $0x10] sm:$0xff]
  %v48 = vld [vmem:[%s1 + $0x18] sm:$0xff]
  %v49 = vld [vmem:[%s1 + $0x20] sm:$0xff]
  %v50 = vld [vmem:[%s1 + $0x28] sm:$0xff]
  %v51 = vld [vmem:[%s1 + $0x30] sm:$0xff]
  %v52 = vld [vmem:[%s1 + $0x38] sm:$0xff]
  %v53 = vld [vmem:[%s1 + $0x40] sm:$0xff]
  %v54 = vld [vmem:[%s1 + $0x48] sm:$0xff]
  %v55 = vld [vmem:[%s1 + $0x50] sm:$0xff]
  %v56 = vld [vmem:[%s1 + $0x58] sm:$0xff]
  %v57 = vld [vmem:[%s1 + $0x60] sm:$0xff]
  %v58 = vld [vmem:[%s1 + $0x68] sm:$0xff]
  %v59 = vld [vmem:[%s1 + $0x70] sm:$0xff]
  %v60 = vld [vmem:[%s1 + $0x78] sm:$0xff]
  %v61 = vld [vmem:[%s1 + $0x80] sm:$0xff]
  %v62 = vld [vmem:[%s1 + $0x88] sm:$0xff]
  %v63 = vld [vmem:[%s1 + $0x90] sm:$0xff]
  %v64 = vld [vmem:[%s1 + $0x98] sm:$0xff]
  %v65 = vld [vmem:[%s2] sm:$0x3]
  %v67 = vlaneseq
  %v68 = vshrl.u32 %v67, 7
  %v69 = vsub.s32 0, %v68
  %v70 = vrot.slane %v65, %v69
  %v71 = vlaneseq
  %v72 = vshrl.u32 %v71, 7
  %v73 = vsub.s32 1, %v72
  %v74 = vrot.slane %v65, %v73
  %v83 = vunpack.c.l.b16 %v39
  %v84 = vunpack.c.h.b16 %v39
  %v85 = vunpack.c.l.b16 %v40
  %v86 = vunpack.c.h.b16 %v40
  %v87 = vunpack.c.l.b16 %v41
  %v88 = vunpack.c.h.b16 %v41
  %v89 = vunpack.c.l.b16 %v42
  %v90 = vunpack.c.h.b16 %v42
  %v91 = vunpack.c.l.b16 %v43
  %v92 = vunpack.c.h.b16 %v43
  %v93 = vunpack.c.l.b16 %v44
  %v94 = vunpack.c.h.b16 %v44
  %v95 = vpack.c.b16 %v85, %v83
  %v96 = vpack.c.b16 %v86, %v84
  %v97 = vpack.c.b16 %v89, %v87
  %v98 = vpack.c.b16 %v90, %v88
  %v99 = vpack.c.b16 %v93, %v91
  %v100 = vpack.c.b16 %v94, %v92
  %v124 = vunpack.c.l.b16 %v45
  %v125 = vunpack.c.h.b16 %v45
  %v126 = vunpack.c.l.b16 %v46
  %v127 = vunpack.c.h.b16 %v46
  %v128 = vunpack.c.l.b16 %v47
  %v129 = vunpack.c.h.b16 %v47
  %v130 = vunpack.c.l.b16 %v48
  %v131 = vunpack.c.h.b16 %v48
  %v132 = vunpack.c.l.b16 %v49
  %v133 = vunpack.c.h.b16 %v49
  %v134 = vunpack.c.l.b16 %v50
  %v135 = vunpack.c.h.b16 %v50
  %v136 = vunpack.c.l.b16 %v51
  %v137 = vunpack.c.h.b16 %v51
  %v138 = vunpack.c.l.b16 %v52
  %v139 = vunpack.c.h.b16 %v52
  %v140 = vunpack.c.l.b16 %v53
  %v141 = vunpack.c.h.b16 %v53
  %v142 = vunpack.c.l.b16 %v54
  %v143 = vunpack.c.h.b16 %v54
  %v144 = vunpack.c.l.b16 %v55
  %v145 = vunpack.c.h.b16 %v55
  %v146 = vunpack.c.l.b16 %v56
  %v147 = vunpack.c.h.b16 %v56
  %v148 = vunpack.c.l.b16 %v57
  %v149 = vunpack.c.h.b16 %v57
  %v150 = vunpack.c.l.b16 %v58
  %v151 = vunpack.c.h.b16 %v58
  %v152 = vunpack.c.l.b16 %v59
  %v153 = vunpack.c.h.b16 %v59
  %v154 = vunpack.c.l.b16 %v60
  %v155 = vunpack.c.h.b16 %v60
  %v156 = vunpack.c.l.b16 %v61
  %v157 = vunpack.c.h.b16 %v61
  %v158 = vunpack.c.l.b16 %v62
  %v159 = vunpack.c.h.b16 %v62
  %v160 = vunpack.c.l.b16 %v63
  %v161 = vunpack.c.h.b16 %v63
  %v162 = vunpack.c.l.b16 %v64
  %v163 = vunpack.c.h.b16 %v64
  %v164 = vpack.c.b16 %v126, %v124
  %v165 = vpack.c.b16 %v127, %v125
  %v166 = vpack.c.b16 %v130, %v128
  %v167 = vpack.c.b16 %v131, %v129
  %v168 = vpack.c.b16 %v134, %v132
  %v169 = vpack.c.b16 %v135, %v133
  %v170 = vpack.c.b16 %v138, %v136
  %v171 = vpack.c.b16 %v139, %v137
  %v172 = vpack.c.b16 %v142, %v140
  %v173 = vpack.c.b16 %v143, %v141
  %v174 = vpack.c.b16 %v146, %v144
  %v175 = vpack.c.b16 %v147, %v145
  %v176 = vpack.c.b16 %v150, %v148
  %v177 = vpack.c.b16 %v151, %v149
  %v178 = vpack.c.b16 %v154, %v152
  %v179 = vpack.c.b16 %v155, %v153
  %v180 = vpack.c.b16 %v158, %v156
  %v181 = vpack.c.b16 %v159, %v157
  %v182 = vpack.c.b16 %v162, %v160
  %v183 = vpack.c.b16 %v163, %v161
  %vm204 = vcmask 261120
  %v206 = vsel %vm204, %v96, 0
  %v209 = vsel %vm204, %v98, 0
  %v212 = vsel %vm204, %v100, 0
  %214 = vmatprep.subr.bf16.mxu0 %v165
  %215 = vmatpush1.bf16.msra.mxu0 %v164
  %216 = vmatprep.subr.bf16.mxu0 %v167
  %217 = vmatpush1.bf16.msra.mxu0 %v166
  %218 = vmatprep.subr.bf16.mxu0 %v169
  %219 = vmatpush1.bf16.msra.mxu0 %v168
  %220 = vmatprep.subr.bf16.mxu0 %v171
  %221 = vmatpush1.bf16.msra.mxu0 %v170
  %222 = vmatprep.subr.bf16.mxu0 %v173
  %223 = vmatpush1.bf16.msra.mxu0 %v172
  %224 = vmatprep.subr.bf16.mxu0 %v175
  %225 = vmatpush1.bf16.msra.mxu0 %v174
  %226 = vmatprep.subr.bf16.mxu0 %v177
  %227 = vmatpush1.bf16.msra.mxu0 %v176
  %228 = vmatprep.subr.bf16.mxu0 %v179
  %229 = vmatpush1.bf16.msra.mxu0 %v178
  %230 = vmatprep.subr.bf16.mxu0 %v181
  %231 = vmatpush1.bf16.msra.mxu0 %v180
  %232 = vmatprep.subr.bf16.mxu0 %v183
  %233 = vmatpush1.bf16.msra.mxu0 %v182
  %234 = vmatprep.subr.bf16.mxu0 0
  %235 = vmatpush1.bf16.msra.mxu0 0
  %236 = vmatprep.subr.bf16.mxu0 0
  %237 = vmatpush1.bf16.msra.mxu0 0
  %238 = vmatprep.subr.bf16.mxu0 0
  %239 = vmatpush1.bf16.msra.mxu0 0
  %240 = vmatprep.subr.bf16.mxu0 0
  %241 = vmatpush1.bf16.msra.mxu0 0
  %242 = vmatprep.subr.bf16.mxu0 0
  %243 = vmatpush1.bf16.msra.mxu0 0
  %244 = vmatprep.subr.bf16.mxu0 0
  %245 = vmatpush1.bf16.msra.mxu0 0
  %246 = vmatprep.mubr.bf16.mxu0 %v206
  %247 = vmatmul.mubr.bf16.gmra.mrb[0].mxu0 %v95
  %v248 = vpop.f32.mrb[0].mxu0
  %v249 = vadd.f32 %v70, %v248
  %v250 = vpop.f32.mrb[0].mxu0
  %v251 = vadd.f32 %v74, %v250
  %v252 = vpop.f32.mrb[0].mxu0
  %v253 = vadd.f32 %v70, %v252
  %v254 = vpop.f32.mrb[0].mxu0
  %v255 = vadd.f32 %v74, %v254
  %256 = vmatprep.mubr.bf16.mxu0 %v209
  %257 = vmatmul.mubr.bf16.gmra.mrb[0].mxu0 %v97
  %v258 = vpop.f32.mrb[0].mxu0
  %v259 = vadd.f32 %v70, %v258
  %v260 = vpop.f32.mrb[0].mxu0
  %v261 = vadd.f32 %v74, %v260
  %v262 = vpop.f32.mrb[0].mxu0
  %v263 = vadd.f32 %v70, %v262
  %v264 = vpop.f32.mrb[0].mxu0
  %v265 = vadd.f32 %v74, %v264
  %266 = vmatprep.mubr.bf16.mxu0 %v212
  %267 = vmatmul.mubr.bf16.gmra.mrb[0].mxu0 %v99
  %v268 = vpop.f32.mrb[0].mxu0
  %v269 = vadd.f32 %v70, %v268
  %v270 = vpop.f32.mrb[0].mxu0
  %v271 = vadd.f32 %v74, %v270
  %v272 = vpop.f32.mrb[0].mxu0
  %v273 = vadd.f32 %v70, %v272
  %v274 = vpop.f32.mrb[0].mxu0
  %v275 = vadd.f32 %v74, %v274
  %276 = vdwg.mxu0
  %277 = vst [vmem:[#allocation2] sm:$0xff] %v249
  %278 = vst [vmem:[#allocation2 + $0x8] sm:$0xff] %v251
  %279 = vst [vmem:[#allocation2 + $0x10] sm:$0xff] %v253
  %280 = vst [vmem:[#allocation2 + $0x18] sm:$0xff] %v255
  %281 = vst [vmem:[#allocation2 + $0x20] sm:$0xff] %v259
  %282 = vst [vmem:[#allocation2 + $0x28] sm:$0xff] %v261
  %283 = vst [vmem:[#allocation2 + $0x30] sm:$0xff] %v263
  %284 = vst [vmem:[#allocation2 + $0x38] sm:$0xff] %v265
  %285 = vst [vmem:[#allocation2 + $0x40] sm:$0xff] %v269
  %286 = vst [vmem:[#allocation2 + $0x48] sm:$0xff] %v271
  %287 = vst [vmem:[#allocation2 + $0x50] sm:$0xff] %v273
  %288 = vst [vmem:[#allocation2 + $0x58] sm:$0xff] %v275
  %v289 = vld [vmem:[%s8] sm:$0xff]
  %v290 = vld [vmem:[%s9] sm:$0xff]
  %v291 = vpack.c.bf16 %v289, %v289
  %v292 = vld [vmem:[%s3] sm:$0xff]
  %v293 = vld [vmem:[%s3 + $0xc] sm:$0xff]
  %v294 = vld [vmem:[%s3 + $0x18] sm:$0xff]
  %v295 = vld [vmem:[%s3 + $0x24] sm:$0xff]
  %v296 = vld [vmem:[%s3 + $0x30] sm:$0xff]
  %v297 = vld [vmem:[%s3 + $0x3c] sm:$0xff]
  %v298 = vld [vmem:[%s3 + $0x48] sm:$0xff]
  %v299 = vld [vmem:[%s3 + $0x54] sm:$0xff]
  %v308 = vunpack.c.l.b16 %v292
  %v309 = vunpack.c.h.b16 %v292
  %v310 = vunpack.c.l.b16 %v293
  %v311 = vunpack.c.h.b16 %v293
  %v312 = vunpack.c.l.b16 %v294
  %v313 = vunpack.c.h.b16 %v294
  %v314 = vunpack.c.l.b16 %v295
  %v315 = vunpack.c.h.b16 %v295
  %v316 = vunpack.c.l.b16 %v296
  %v317 = vunpack.c.h.b16 %v296
  %v318 = vunpack.c.l.b16 %v297
  %v319 = vunpack.c.h.b16 %v297
  %v320 = vunpack.c.l.b16 %v298
  %v321 = vunpack.c.h.b16 %v298
  %v322 = vunpack.c.l.b16 %v299
  %v323 = vunpack.c.h.b16 %v299
  %v324 = vpack.c.b16 %v310, %v308
  %v325 = vpack.c.b16 %v311, %v309
  %v326 = vpack.c.b16 %v314, %v312
  %v327 = vpack.c.b16 %v315, %v313
  %v328 = vpack.c.b16 %v318, %v316
  %v329 = vpack.c.b16 %v319, %v317
  %v330 = vpack.c.b16 %v322, %v320
  %v331 = vpack.c.b16 %v323, %v321
  %vm340 = vcmask 523264
  %v342 = vsel %vm340, %v291, 0
  %344 = vmatprep.subr.bf16.mxu0 %v325
  %345 = vmatpush1.bf16.msra.mxu0 %v324
  %346 = vmatprep.subr.bf16.mxu0 %v327
  %347 = vmatpush1.bf16.msra.mxu0 %v326
  %348 = vmatprep.subr.bf16.mxu0 %v329
  %349 = vmatpush1.bf16.msra.mxu0 %v328
  %350 = vmatprep.subr.bf16.mxu0 %v331
  %351 = vmatpush1.bf16.msra.mxu0 %v330
  %352 = vmatprep.subr.bf16.mxu0 0
  %353 = vmatpush1.bf16.msra.mxu0 0
  %354 = vmatprep.subr.bf16.mxu0 0
  %355 = vmatpush1.bf16.msra.mxu0 0
  %356 = vmatprep.subr.bf16.mxu0 0
  %357 = vmatpush1.bf16.msra.mxu0 0
  %358 = vmatprep.subr.bf16.mxu0 0
  %359 = vmatpush1.bf16.msra.mxu0 0
  %360 = vmatprep.subr.bf16.mxu0 0
  %361 = vmatpush1.bf16.msra.mxu0 0
  %362 = vmatprep.subr.bf16.mxu0 0
  %363 = vmatpush1.bf16.msra.mxu0 0
  %364 = vmatprep.subr.bf16.mxu0 0
  %365 = vmatpush1.bf16.msra.mxu0 0
  %366 = vmatprep.subr.bf16.mxu0 0
  %367 = vmatpush1.bf16.msra.mxu0 0
  %368 = vmatprep.subr.bf16.mxu0 0
  %369 = vmatpush1.bf16.msra.mxu0 0
  %370 = vmatprep.subr.bf16.mxu0 0
  %371 = vmatpush1.bf16.msra.mxu0 0
  %372 = vmatprep.subr.bf16.mxu0 0
  %373 = vmatpush1.bf16.msra.mxu0 0
  %374 = vmatprep.subr.bf16.mxu0 0
  %375 = vmatpush1.bf16.msra.mxu0 0
  %376 = vmatprep.mubr.bf16.mxu0 0
  %377 = vmatmul.mubr.bf16.gmra.mrb[0].mxu0 %v342
  %v378 = vpop.f32.mrb[0].mxu0
  %v379 = vadd.f32 0.0, %v378
  %v380 = vpop.f32.mrb[0].mxu0
  %v381 = vadd.f32 0.0, %v380
  %v382 = vpop.f32.mrb[0].mxu0
  %v383 = vpop.f32.mrb[0].mxu0
  %384 = vdwg.mxu0
  %v385 = vld [vmem:[#allocation2] sm:$0xff]
  %v386 = vld [vmem:[#allocation2 + $0x8] sm:$0xff]
  %v387 = vadd.f32 %v385, %v379
  %v388 = vadd.f32 %v386, %v381
  %v389 = vlaneseq
  %v390 = vand.u32 %v389, 127
  %v391 = vadd.s32 %v390, 128
  %vm392 = vcmp.ge.s32.totalorder %v390, 128
  %vm393 = vcmp.ge.s32.totalorder %v391, 128
  %vm394 = vcmp.lt.s32.totalorder %v390, 192
  %vm395 = vcmp.lt.s32.totalorder %v391, 192
  %vm396 = vmand %vm392, %vm394
  %vm397 = vmand %vm393, %vm395
  %v398 = vtanh.pop %v387
  %v399 = vtanh.pop %v388
  %v400 = vxor.u32 %v387, 2147483648
  %v401 = vxor.u32 %v388, 2147483648
  %v402 = vmul.f32 %v400, 1.442695
  %v403 = vpow.pop %v402
  %v404 = vmul.f32 %v401, 1.442695
  %v405 = vpow.pop %v404
  %v406 = vadd.f32 %v403, 1.0
  %v407 = vadd.f32 %v405, 1.0
  %v408 = vrcp.pop %v406
  %v409 = vmul.f32 1.0, %v408
  %v410 = vrcp.pop %v407
  %v411 = vmul.f32 1.0, %v410
  %v412 = vsel %vm396, %v398, %v409
  %v413 = vsel %vm397, %v399, %v411
  %415 = vrot.lane.b32.xlu0 %v290, 64
  %v416 = vpop.permute.xlu0 %415
  %v418 = vmul.f32 %v412, %v416
  %v419 = vmul.f32 %v412, %v413
  %421 = vrot.lane.b32.xlu0 %v419, 64
  %v422 = vpop.permute.xlu0 %421
  %v424 = vadd.f32 %v418, %v422
  %v425 = vtanh.pop %v424
  %v426 = vmul.f32 %v413, %v425
  %v427 = vpack.c.bf16 %v426, %v426
  %v428 = vld [vmem:[%s3] sm:$0xff]
  %v429 = vld [vmem:[%s3 + $0x8] sm:$0xf]
  %v430 = vld [vmem:[%s3 + $0xc] sm:$0xff]
  %v431 = vld [vmem:[%s3 + $0x14] sm:$0xf]
  %v432 = vld [vmem:[%s3 + $0x18] sm:$0xff]
  %v433 = vld [vmem:[%s3 + $0x20] sm:$0xf]
  %v434 = vld [vmem:[%s3 + $0x24] sm:$0xff]
  %v435 = vld [vmem:[%s3 + $0x2c] sm:$0xf]
  %v436 = vld [vmem:[%s3 + $0x30] sm:$0xff]
  %v437 = vld [vmem:[%s3 + $0x38] sm:$0xf]
  %v438 = vld [vmem:[%s3 + $0x3c] sm:$0xff]
  %v439 = vld [vmem:[%s3 + $0x44] sm:$0xf]
  %v440 = vld [vmem:[%s3 + $0x48] sm:$0xff]
  %v441 = vld [vmem:[%s3 + $0x50] sm:$0xf]
  %v442 = vld [vmem:[%s3 + $0x54] sm:$0xff]
  %v443 = vld [vmem:[%s3 + $0x5c] sm:$0xf]
  %445 = vrot.lane.b32.xlu0 %v427, 64
  %v446 = vpop.permute.xlu0 %445
  %v463 = vunpack.c.l.b16 %v428
  %v464 = vunpack.c.h.b16 %v428
  %v465 = vunpack.c.l.b16 %v429
  %v466 = vunpack.c.l.b16 %v430
  %v467 = vunpack.c.h.b16 %v430
  %v468 = vunpack.c.l.b16 %v431
  %v469 = vunpack.c.l.b16 %v432
  %v470 = vunpack.c.h.b16 %v432
  %v471 = vunpack.c.l.b16 %v433
  %v472 = vunpack.c.l.b16 %v434
  %v473 = vunpack.c.h.b16 %v434
  %v474 = vunpack.c.l.b16 %v435
  %v475 = vunpack.c.l.b16 %v436
  %v476 = vunpack.c.h.b16 %v436
  %v477 = vunpack.c.l.b16 %v437
  %v478 = vunpack.c.l.b16 %v438
  %v479 = vunpack.c.h.b16 %v438
  %v480 = vunpack.c.l.b16 %v439
  %v481 = vunpack.c.l.b16 %v440
  %v482 = vunpack.c.h.b16 %v440
  %v483 = vunpack.c.l.b16 %v441
  %v484 = vunpack.c.l.b16 %v442
  %v485 = vunpack.c.h.b16 %v442
  %v486 = vunpack.c.l.b16 %v443
  %v487 = vpack.c.b16 %v466, %v463
  %v488 = vpack.c.b16 %v467, %v464
  %v489 = vpack.c.b16 %v468, %v465
  %v490 = vpack.c.b16 %v472, %v469
  %v491 = vpack.c.b16 %v473, %v470
  %v492 = vpack.c.b16 %v474, %v471
  %v493 = vpack.c.b16 %v478, %v475
  %v494 = vpack.c.b16 %v479, %v476
  %v495 = vpack.c.b16 %v480, %v477
  %v496 = vpack.c.b16 %v484, %v481
  %v497 = vpack.c.b16 %v485, %v482
  %v498 = vpack.c.b16 %v486, %v483
  %v512 = vsel %vm340, %v446, 0
  %514 = vmatprep.subr.bf16.mxu0 %v488
  %515 = vmatpush1.bf16.msra.mxu0 %v487
  %516 = vmatprep.subr.bf16.mxu0 %v491
  %517 = vmatpush1.bf16.msra.mxu0 %v490
  %518 = vmatprep.subr.bf16.mxu0 %v494
  %519 = vmatpush1.bf16.msra.mxu0 %v493
  %520 = vmatprep.subr.bf16.mxu0 %v497
  %521 = vmatpush1.bf16.msra.mxu0 %v496
  %522 = vmatprep.subr.bf16.mxu0 0
  %523 = vmatpush1.bf16.msra.mxu0 0
  %524 = vmatprep.subr.bf16.mxu0 0
  %525 = vmatpush1.bf16.msra.mxu0 0
  %526 = vmatprep.subr.bf16.mxu0 0
  %527 = vmatpush1.bf16.msra.mxu0 0
  %528 = vmatprep.subr.bf16.mxu0 0
  %529 = vmatpush1.bf16.msra.mxu0 0
  %530 = vmatprep.subr.bf16.mxu0 0
  %531 = vmatpush1.bf16.msra.mxu0 0
  %532 = vmatprep.subr.bf16.mxu0 0
  %533 = vmatpush1.bf16.msra.mxu0 0
  %534 = vmatprep.subr.bf16.mxu0 0
  %535 = vmatpush1.bf16.msra.mxu0 0
  %536 = vmatprep.subr.bf16.mxu0 0
  %537 = vmatpush1.bf16.msra.mxu0 0
  %538 = vmatprep.subr.bf16.mxu0 0
  %539 = vmatpush1.bf16.msra.mxu0 0
  %540 = vmatprep.subr.bf16.mxu0 0
  %541 = vmatpush1.bf16.msra.mxu0 0
  %542 = vmatprep.subr.bf16.mxu0 0
  %543 = vmatpush1.bf16.msra.mxu0 0
  %544 = vmatprep.subr.bf16.mxu0 0
  %545 = vmatpush1.bf16.msra.mxu0 0
  %546 = vmatprep.mubr.bf16.mxu0 0
  %547 = vmatmul.mubr.bf16.gmra.mrb[0].mxu0 %v512
  %v548 = vpop.f32.mrb[0].mxu0
  %v549 = vadd.f32 0.0, %v548
  %v550 = vpop.f32.mrb[0].mxu0
  %v551 = vadd.f32 0.0, %v550
  %v552 = vpop.f32.mrb[0].mxu0
  %v553 = vpop.f32.mrb[0].mxu0
  %554 = vdwg.mxu0
  %555 = vmatprep.subr.bf16.mxu0 0
  %556 = vmatpush1.bf16.msra.mxu0 %v489
  %557 = vmatprep.subr.bf16.mxu0 0
  %558 = vmatpush1.bf16.msra.mxu0 %v492
  %559 = vmatprep.subr.bf16.mxu0 0
  %560 = vmatpush1.bf16.msra.mxu0 %v495
  %561 = vmatprep.subr.bf16.mxu0 0
  %562 = vmatpush1.bf16.msra.mxu0 %v498
  %563 = vmatprep.subr.bf16.mxu0 0
  %564 = vmatpush1.bf16.msra.mxu0 0
  %565 = vmatprep.subr.bf16.mxu0 0
  %566 = vmatpush1.bf16.msra.mxu0 0
  %567 = vmatprep.subr.bf16.mxu0 0
  %568 = vmatpush1.bf16.msra.mxu0 0
  %569 = vmatprep.subr.bf16.mxu0 0
  %570 = vmatpush1.bf16.msra.mxu0 0
  %571 = vmatprep.subr.bf16.mxu0 0
  %572 = vmatpush1.bf16.msra.mxu0 0
  %573 = vmatprep.subr.bf16.mxu0 0
  %574 = vmatpush1.bf16.msra.mxu0 0
  %575 = vmatprep.subr.bf16.mxu0 0
  %576 = vmatpush1.bf16.msra.mxu0 0
  %577 = vmatprep.subr.bf16.mxu0 0
  %578 = vmatpush1.bf16.msra.mxu0 0
  %579 = vmatprep.subr.bf16.mxu0 0
  %580 = vmatpush1.bf16.msra.mxu0 0
  %581 = vmatprep.subr.bf16.mxu0 0
  %582 = vmatpush1.bf16.msra.mxu0 0
  %583 = vmatprep.subr.bf16.mxu0 0
  %584 = vmatpush1.bf16.msra.mxu0 0
  %585 = vmatprep.subr.bf16.mxu0 0
  %586 = vmatpush1.bf16.msra.mxu0 0
  %587 = vmatprep.mubr.bf16.mxu0 0
  %588 = vmatmul.mubr.bf16.gmra.mrb[0].mxu0 %v512
  %v589 = vpop.f32.mrb[0].mxu0
  %v590 = vadd.f32 0.0, %v589
  %v591 = vpop.f32.mrb[0].mxu0
  %v592 = vpop.f32.mrb[0].mxu0
  %v593 = vpop.f32.mrb[0].mxu0
  %594 = vdwg.mxu0
  %v595 = vld [vmem:[%s7] sm:$0xff]
  %v596 = vadd.f32 %v590, %v595
  %v597 = vsel %vm340, %v596, -inf
  %598 = vmax.xlane.f32.xlu0 %v597
  %v599 = vpop.xlane.xlu0 %598
  %v600 = vsub.f32 %v596, %v599
  %v601 = vmul.f32 %v600, 1.442695
  %v602 = vpow.pop %v601
  %v603 = vsel %vm340, %v602, 0.0
  %604 = vadd.xlane.f32.xlu0 %v603
  %v605 = vpop.xlane.xlu0 %604
  %v606 = vrcp.pop %v605
  %v607 = vmul.f32 %v602, %v606
  %v608 = vpack.c.bf16 %v607, %v607
  %v609 = vld [vmem:[%s4] sm:$0xf]
  %v610 = vld [vmem:[%s4 + $0x4] sm:$0xf]
  %v611 = vld [vmem:[%s4 + $0x8] sm:$0xf]
  %v612 = vld [vmem:[%s4 + $0xc] sm:$0xf]
  %v613 = vld [vmem:[%s4 + $0x10] sm:$0xf]
  %v614 = vld [vmem:[%s4 + $0x14] sm:$0xf]
  %v615 = vld [vmem:[%s4 + $0x18] sm:$0xf]
  %v616 = vld [vmem:[%s4 + $0x1c] sm:$0xf]
  %v625 = vunpack.c.l.b16 %v609
  %v626 = vunpack.c.l.b16 %v610
  %v627 = vunpack.c.l.b16 %v611
  %v628 = vunpack.c.l.b16 %v612
  %v629 = vunpack.c.l.b16 %v613
  %v630 = vunpack.c.l.b16 %v614
  %v631 = vunpack.c.l.b16 %v615
  %v632 = vunpack.c.l.b16 %v616
  %v633 = vpack.c.b16 %v626, %v625
  %v634 = vpack.c.b16 %v628, %v627
  %v635 = vpack.c.b16 %v630, %v629
  %v636 = vpack.c.b16 %v632, %v631
  %642 = vrot.lane.b32.xlu0 %v590, 64
  %v643 = vpop.permute.xlu0 %642
  %v646 = vsel %vm340, %v608, 0
  %648 = vmatprep.subr.bf16.mxu0 0
  %649 = vmatpush1.bf16.msra.mxu0 %v633
  %650 = vmatprep.subr.bf16.mxu0 0
  %651 = vmatpush1.bf16.msra.mxu0 %v634
  %652 = vmatprep.subr.bf16.mxu0 0
  %653 = vmatpush1.bf16.msra.mxu0 %v635
  %654 = vmatprep.subr.bf16.mxu0 0
  %655 = vmatpush1.bf16.msra.mxu0 %v636
  %656 = vmatprep.subr.bf16.mxu0 0
  %657 = vmatpush1.bf16.msra.mxu0 0
  %658 = vmatprep.subr.bf16.mxu0 0
  %659 = vmatpush1.bf16.msra.mxu0 0
  %660 = vmatprep.subr.bf16.mxu0 0
  %661 = vmatpush1.bf16.msra.mxu0 0
  %662 = vmatprep.subr.bf16.mxu0 0
  %663 = vmatpush1.bf16.msra.mxu0 0
  %664 = vmatprep.subr.bf16.mxu0 0
  %665 = vmatpush1.bf16.msra.mxu0 0
  %666 = vmatprep.subr.bf16.mxu0 0
  %667 = vmatpush1.bf16.msra.mxu0 0
  %668 = vmatprep.subr.bf16.mxu0 0
  %669 = vmatpush1.bf16.msra.mxu0 0
  %670 = vmatprep.subr.bf16.mxu0 0
  %671 = vmatpush1.bf16.msra.mxu0 0
  %672 = vmatprep.subr.bf16.mxu0 0
  %673 = vmatpush1.bf16.msra.mxu0 0
  %674 = vmatprep.subr.bf16.mxu0 0
  %675 = vmatpush1.bf16.msra.mxu0 0
  %676 = vmatprep.subr.bf16.mxu0 0
  %677 = vmatpush1.bf16.msra.mxu0 0
  %678 = vmatprep.subr.bf16.mxu0 0
  %679 = vmatpush1.bf16.msra.mxu0 0
  %680 = vmatprep.mubr.bf16.mxu0 0
  %681 = vmatmul.mubr.bf16.gmra.mrb[0].mxu0 %v646
  %v682 = vpop.f32.mrb[0].mxu0
  %v683 = vadd.f32 %v643, %v682
  %v684 = vpop.f32.mrb[0].mxu0
  %v685 = vpop.f32.mrb[0].mxu0
  %v686 = vpop.f32.mrb[0].mxu0
  %687 = vdwg.mxu0
  %v688 = vtanh.pop %v683
  %689 = vst.msk [vmem:[%s10] sm:$0xff] %vm340, %v688
  %v690 = vld [vmem:[%s6] sm:$0xf]
  %v691 = vld [vmem:[%s6 + $0x4] sm:$0xf]
  %v692 = vld [vmem:[%s6 + $0x8] sm:$0xf]
  %v693 = vld [vmem:[%s6 + $0xc] sm:$0xf]
  %v694 = vld [vmem:[%s6 + $0x10] sm:$0xf]
  %v695 = vld [vmem:[%s6 + $0x14] sm:$0xf]
  %v696 = vld [vmem:[%s6 + $0x18] sm:$0xf]
  %v697 = vld [vmem:[%s6 + $0x1c] sm:$0xf]
  %v706 = vunpack.c.l.b16 %v690
  %v707 = vunpack.c.l.b16 %v691
  %v708 = vunpack.c.l.b16 %v692
  %v709 = vunpack.c.l.b16 %v693
  %v710 = vunpack.c.l.b16 %v694
  %v711 = vunpack.c.l.b16 %v695
  %v712 = vunpack.c.l.b16 %v696
  %v713 = vunpack.c.l.b16 %v697
  %v714 = vpack.c.b16 %v707, %v706
  %v715 = vpack.c.b16 %v709, %v708
  %v716 = vpack.c.b16 %v711, %v710
  %v717 = vpack.c.b16 %v713, %v712
  %722 = vmatprep.subr.bf16.mxu0 0
  %723 = vmatpush1.bf16.msra.mxu0 %v714
  %724 = vmatprep.subr.bf16.mxu0 0
  %725 = vmatpush1.bf16.msra.mxu0 %v715
  %726 = vmatprep.subr.bf16.mxu0 0
  %727 = vmatpush1.bf16.msra.mxu0 %v716
  %728 = vmatprep.subr.bf16.mxu0 0
  %729 = vmatpush1.bf16.msra.mxu0 %v717
  %730 = vmatprep.subr.bf16.mxu0 0
  %731 = vmatpush1.bf16.msra.mxu0 0
  %732 = vmatprep.subr.bf16.mxu0 0
  %733 = vmatpush1.bf16.msra.mxu0 0
  %734 = vmatprep.subr.bf16.mxu0 0
  %735 = vmatpush1.bf16.msra.mxu0 0
  %736 = vmatprep.subr.bf16.mxu0 0
  %737 = vmatpush1.bf16.msra.mxu0 0
  %738 = vmatprep.subr.bf16.mxu0 0
  %739 = vmatpush1.bf16.msra.mxu0 0
  %740 = vmatprep.subr.bf16.mxu0 0
  %741 = vmatpush1.bf16.msra.mxu0 0
  %742 = vmatprep.subr.bf16.mxu0 0
  %743 = vmatpush1.bf16.msra.mxu0 0
  %744 = vmatprep.subr.bf16.mxu0 0
  %745 = vmatpush1.bf16.msra.mxu0 0
  %746 = vmatprep.subr.bf16.mxu0 0
  %747 = vmatpush1.bf16.msra.mxu0 0
  %748 = vmatprep.subr.bf16.mxu0 0
  %749 = vmatpush1.bf16.msra.mxu0 0
  %750 = vmatprep.subr.bf16.mxu0 0
  %751 = vmatpush1.bf16.msra.mxu0 0
  %752 = vmatprep.subr.bf16.mxu0 0
  %753 = vmatpush1.bf16.msra.mxu0 0
  %754 = vmatprep.mubr.bf16.mxu0 0
  %755 = vmatmul.mubr.bf16.gmra.mrb[0].mxu0 %v646
  %v756 = vpop.f32.mrb[0].mxu0
  %v757 = vadd.f32 0.0, %v756
  %v758 = vpop.f32.mrb[0].mxu0
  %v759 = vpop.f32.mrb[0].mxu0
  %v760 = vpop.f32.mrb[0].mxu0
  %761 = vdwg.mxu0
  %vm762 = vcmask 64512
  %763 = vst.msk [vmem:[%s11] sm:$0xff] %vm762, %v757
  %v764 = vpack.c.bf16 %v688, %v688
  %v765 = vld [vmem:[%s5] sm:$0xf]
  %v766 = vld [vmem:[%s5 + $0x4] sm:$0xf]
  %v767 = vld [vmem:[%s5 + $0x8] sm:$0xf]
  %v768 = vld [vmem:[%s5 + $0xc] sm:$0xf]
  %v769 = vld [vmem:[%s5 + $0x10] sm:$0xf]
  %v770 = vld [vmem:[%s5 + $0x14] sm:$0xf]
  %v771 = vld [vmem:[%s5 + $0x18] sm:$0xf]
  %v772 = vld [vmem:[%s5 + $0x1c] sm:$0xf]
  %v773 = vld [vmem:[%s7] sm:$0xff]
  %v782 = vunpack.c.l.b16 %v765
  %v783 = vunpack.c.l.b16 %v766
  %v784 = vunpack.c.l.b16 %v767
  %v785 = vunpack.c.l.b16 %v768
  %v786 = vunpack.c.l.b16 %v769
  %v787 = vunpack.c.l.b16 %v770
  %v788 = vunpack.c.l.b16 %v771
  %v789 = vunpack.c.l.b16 %v772
  %v790 = vpack.c.b16 %v783, %v782
  %v791 = vpack.c.b16 %v785, %v784
  %v792 = vpack.c.b16 %v787, %v786
  %v793 = vpack.c.b16 %v789, %v788
  %v799 = vsel %vm340, %v764, 0
  %801 = vmatprep.subr.bf16.mxu0 0
  %802 = vmatpush1.bf16.msra.mxu0 %v790
  %803 = vmatprep.subr.bf16.mxu0 0
  %804 = vmatpush1.bf16.msra.mxu0 %v791
  %805 = vmatprep.subr.bf16.mxu0 0
  %806 = vmatpush1.bf16.msra.mxu0 %v792
  %807 = vmatprep.subr.bf16.mxu0 0
  %808 = vmatpush1.bf16.msra.mxu0 %v793
  %809 = vmatprep.subr.bf16.mxu0 0
  %810 = vmatpush1.bf16.msra.mxu0 0
  %811 = vmatprep.subr.bf16.mxu0 0
  %812 = vmatpush1.bf16.msra.mxu0 0
  %813 = vmatprep.subr.bf16.mxu0 0
  %814 = vmatpush1.bf16.msra.mxu0 0
  %815 = vmatprep.subr.bf16.mxu0 0
  %816 = vmatpush1.bf16.msra.mxu0 0
  %817 = vmatprep.subr.bf16.mxu0 0
  %818 = vmatpush1.bf16.msra.mxu0 0
  %819 = vmatprep.subr.bf16.mxu0 0
  %820 = vmatpush1.bf16.msra.mxu0 0
  %821 = vmatprep.subr.bf16.mxu0 0
  %822 = vmatpush1.bf16.msra.mxu0 0
  %823 = vmatprep.subr.bf16.mxu0 0
  %824 = vmatpush1.bf16.msra.mxu0 0
  %825 = vmatprep.subr.bf16.mxu0 0
  %826 = vmatpush1.bf16.msra.mxu0 0
  %827 = vmatprep.subr.bf16.mxu0 0
  %828 = vmatpush1.bf16.msra.mxu0 0
  %829 = vmatprep.subr.bf16.mxu0 0
  %830 = vmatpush1.bf16.msra.mxu0 0
  %831 = vmatprep.subr.bf16.mxu0 0
  %832 = vmatpush1.bf16.msra.mxu0 0
  %833 = vmatprep.mubr.bf16.mxu0 0
  %834 = vmatmul.mubr.bf16.gmra.mrb[0].mxu0 %v799
  %v835 = vpop.f32.mrb[0].mxu0
  %v836 = vadd.f32 %v773, %v835
  %v837 = vpop.f32.mrb[0].mxu0
  %v838 = vpop.f32.mrb[0].mxu0
  %v839 = vpop.f32.mrb[0].mxu0
  %840 = vdwg.mxu0
  %v841 = vsel %vm340, %v836, -inf
  %842 = vmax.xlane.f32.xlu0 %v841
  %v843 = vpop.xlane.xlu0 %842
  %v844 = vsub.f32 %v836, %v843
  %v845 = vmul.f32 %v844, 1.442695
  %v846 = vpow.pop %v845
  %v847 = vsel %vm340, %v846, 0.0
  %848 = vadd.xlane.f32.xlu0 %v847
  %v849 = vpop.xlane.xlu0 %848
  %v850 = vrcp.pop %v849
  %v851 = vmul.f32 %v846, %v850
  %v852 = vpack.c.bf16 %v851, %v851
  %v853 = vld [vmem:[%s6] sm:$0xf]
  %v854 = vld [vmem:[%s6 + $0x4] sm:$0xf]
  %v855 = vld [vmem:[%s6 + $0x8] sm:$0xf]
  %v856 = vld [vmem:[%s6 + $0xc] sm:$0xf]
  %v857 = vld [vmem:[%s6 + $0x10] sm:$0xf]
  %v858 = vld [vmem:[%s6 + $0x14] sm:$0xf]
  %v859 = vld [vmem:[%s6 + $0x18] sm:$0xf]
  %v860 = vld [vmem:[%s6 + $0x1c] sm:$0xf]
  %v869 = vunpack.c.l.b16 %v853
  %v870 = vunpack.c.l.b16 %v854
  %v871 = vunpack.c.l.b16 %v855
  %v872 = vunpack.c.l.b16 %v856
  %v873 = vunpack.c.l.b16 %v857
  %v874 = vunpack.c.l.b16 %v858
  %v875 = vunpack.c.l.b16 %v859
  %v876 = vunpack.c.l.b16 %v860
  %v877 = vpack.c.b16 %v870, %v869
  %v878 = vpack.c.b16 %v872, %v871
  %v879 = vpack.c.b16 %v874, %v873
  %v880 = vpack.c.b16 %v876, %v875
  %v886 = vsel %vm340, %v852, 0
  %888 = vmatprep.subr.bf16.mxu0 0
  %889 = vmatpush1.bf16.msra.mxu0 %v877
  %890 = vmatprep.subr.bf16.mxu0 0
  %891 = vmatpush1.bf16.msra.mxu0 %v878
  %892 = vmatprep.subr.bf16.mxu0 0
  %893 = vmatpush1.bf16.msra.mxu0 %v879
  %894 = vmatprep.subr.bf16.mxu0 0
  %895 = vmatpush1.bf16.msra.mxu0 %v880
  %896 = vmatprep.subr.bf16.mxu0 0
  %897 = vmatpush1.bf16.msra.mxu0 0
  %898 = vmatprep.subr.bf16.mxu0 0
  %899 = vmatpush1.bf16.msra.mxu0 0
  %900 = vmatprep.subr.bf16.mxu0 0
  %901 = vmatpush1.bf16.msra.mxu0 0
  %902 = vmatprep.subr.bf16.mxu0 0
  %903 = vmatpush1.bf16.msra.mxu0 0
  %904 = vmatprep.subr.bf16.mxu0 0
  %905 = vmatpush1.bf16.msra.mxu0 0
  %906 = vmatprep.subr.bf16.mxu0 0
  %907 = vmatpush1.bf16.msra.mxu0 0
  %908 = vmatprep.subr.bf16.mxu0 0
  %909 = vmatpush1.bf16.msra.mxu0 0
  %910 = vmatprep.subr.bf16.mxu0 0
  %911 = vmatpush1.bf16.msra.mxu0 0
  %912 = vmatprep.subr.bf16.mxu0 0
  %913 = vmatpush1.bf16.msra.mxu0 0
  %914 = vmatprep.subr.bf16.mxu0 0
  %915 = vmatpush1.bf16.msra.mxu0 0
  %916 = vmatprep.subr.bf16.mxu0 0
  %917 = vmatpush1.bf16.msra.mxu0 0
  %918 = vmatprep.subr.bf16.mxu0 0
  %919 = vmatpush1.bf16.msra.mxu0 0
  %920 = vmatprep.mubr.bf16.mxu0 0
  %921 = vmatmul.mubr.bf16.gmra.mrb[0].mxu0 %v886
  %v922 = vpop.f32.mrb[0].mxu0
  %v923 = vadd.f32 0.0, %v922
  %v924 = vpop.f32.mrb[0].mxu0
  %v925 = vpop.f32.mrb[0].mxu0
  %v926 = vpop.f32.mrb[0].mxu0
  %927 = vdwg.mxu0
  %928 = vst.msk [vmem:[%s12] sm:$0xff] %vm762, %v923
  %v929 = vld [vmem:[#allocation2 + $0x10] sm:$0xff]
  %v930 = vld [vmem:[#allocation2 + $0x18] sm:$0xff]
  %v931 = vadd.f32 %v929, %v549
  %v932 = vadd.f32 %v930, %v551
  %v933 = vtanh.pop %v931
  %v934 = vtanh.pop %v932
  %v935 = vxor.u32 %v931, 2147483648
  %v936 = vxor.u32 %v932, 2147483648
  %v937 = vmul.f32 %v935, 1.442695
  %v938 = vpow.pop %v937
  %v939 = vmul.f32 %v936, 1.442695
  %v940 = vpow.pop %v939
  %v941 = vadd.f32 %v938, 1.0
  %v942 = vadd.f32 %v940, 1.0
  %v943 = vrcp.pop %v941
  %v944 = vmul.f32 1.0, %v943
  %v945 = vrcp.pop %v942
  %v946 = vmul.f32 1.0, %v945
  %v947 = vsel %vm396, %v933, %v944
  %v948 = vsel %vm397, %v934, %v946
  %v949 = vmul.f32 %v947, %v424
  %v950 = vmul.f32 %v947, %v948
  %952 = vrot.lane.b32.xlu0 %v950, 64
  %v953 = vpop.permute.xlu0 %952
  %v955 = vadd.f32 %v949, %v953
  %v956 = vtanh.pop %v955
  %v957 = vmul.f32 %v948, %v956
  %v958 = vpack.c.bf16 %v957, %v957
  %v959 = vld [vmem:[%s3] sm:$0xff]
  %v960 = vld [vmem:[%s3 + $0x8] sm:$0xf]
  %v961 = vld [vmem:[%s3 + $0xc] sm:$0xff]
  %v962 = vld [vmem:[%s3 + $0x14] sm:$0xf]
  %v963 = vld [vmem:[%s3 + $0x18] sm:$0xff]
  %v964 = vld [vmem:[%s3 + $0x20] sm:$0xf]
  %v965 = vld [vmem:[%s3 + $0x24] sm:$0xff]
  %v966 = vld [vmem:[%s3 + $0x2c] sm:$0xf]
  %v967 = vld [vmem:[%s3 + $0x30] sm:$0xff]
  %v968 = vld [vmem:[%s3 + $0x38] sm:$0xf]
  %v969 = vld [vmem:[%s3 + $0x3c] sm:$0xff]
  %v970 = vld [vmem:[%s3 + $0x44] sm:$0xf]
  %v971 = vld [vmem:[%s3 + $0x48] sm:$0xff]
  %v972 = vld [vmem:[%s3 + $0x50] sm:$0xf]
  %v973 = vld [vmem:[%s3 + $0x54] sm:$0xff]
  %v974 = vld [vmem:[%s3 + $0x5c] sm:$0xf]
  %976 = vrot.lane.b32.xlu0 %v958, 64
  %v977 = vpop.permute.xlu0 %976
  %v994 = vunpack.c.l.b16 %v959
  %v995 = vunpack.c.h.b16 %v959
  %v996 = vunpack.c.l.b16 %v960
  %v997 = vunpack.c.l.b16 %v961
  %v998 = vunpack.c.h.b16 %v961
  %v999 = vunpack.c.l.b16 %v962
  %v1000 = vunpack.c.l.b16 %v963
  %v1001 = vunpack.c.h.b16 %v963
  %v1002 = vunpack.c.l.b16 %v964
  %v1003 = vunpack.c.l.b16 %v965
  %v1004 = vunpack.c.h.b16 %v965
  %v1005 = vunpack.c.l.b16 %v966
  %v1006 = vunpack.c.l.b16 %v967
  %v1007 = vunpack.c.h.b16 %v967
  %v1008 = vunpack.c.l.b16 %v968
  %v1009 = vunpack.c.l.b16 %v969
  %v1010 = vunpack.c.h.b16 %v969
  %v1011 = vunpack.c.l.b16 %v970
  %v1012 = vunpack.c.l.b16 %v971
  %v1013 = vunpack.c.h.b16 %v971
  %v1014 = vunpack.c.l.b16 %v972
  %v1015 = vunpack.c.l.b16 %v973
  %v1016 = vunpack.c.h.b16 %v973
  %v1017 = vunpack.c.l.b16 %v974
  %v1018 = vpack.c.b16 %v997, %v994
  %v1019 = vpack.c.b16 %v998, %v995
  %v1020 = vpack.c.b16 %v999, %v996
  %v1021 = vpack.c.b16 %v1003, %v1000
  %v1022 = vpack.c.b16 %v1004, %v1001
  %v1023 = vpack.c.b16 %v1005, %v1002
  %v1024 = vpack.c.b16 %v1009, %v1006
  %v1025 = vpack.c.b16 %v1010, %v1007
  %v1026 = vpack.c.b16 %v1011, %v1008
  %v1027 = vpack.c.b16 %v1015, %v1012
  %v1028 = vpack.c.b16 %v1016, %v1013
  %v1029 = vpack.c.b16 %v1017, %v1014
  %v1043 = vsel %vm340, %v977, 0
  %1045 = vmatprep.subr.bf16.mxu0 %v1019
  %1046 = vmatpush1.bf16.msra.mxu0 %v1018
  %1047 = vmatprep.subr.bf16.mxu0 %v1022
  %1048 = vmatpush1.bf16.msra.mxu0 %v1021
  %1049 = vmatprep.subr.bf16.mxu0 %v1025
  %1050 = vmatpush1.bf16.msra.mxu0 %v1024
  %1051 = vmatprep.subr.bf16.mxu0 %v1028
  %1052 = vmatpush1.bf16.msra.mxu0 %v1027
  %1053 = vmatprep.subr.bf16.mxu0 0
  %1054 = vmatpush1.bf16.msra.mxu0 0
  %1055 = vmatprep.subr.bf16.mxu0 0
  %1056 = vmatpush1.bf16.msra.mxu0 0
  %1057 = vmatprep.subr.bf16.mxu0 0
  %1058 = vmatpush1.bf16.msra.mxu0 0
  %1059 = vmatprep.subr.bf16.mxu0 0
  %1060 = vmatpush1.bf16.msra.mxu0 0
  %1061 = vmatprep.subr.bf16.mxu0 0
  %1062 = vmatpush1.bf16.msra.mxu0 0
  %1063 = vmatprep.subr.bf16.mxu0 0
  %1064 = vmatpush1.bf16.msra.mxu0 0
  %1065 = vmatprep.subr.bf16.mxu0 0
  %1066 = vmatpush1.bf16.msra.mxu0 0
  %1067 = vmatprep.subr.bf16.mxu0 0
  %1068 = vmatpush1.bf16.msra.mxu0 0
  %1069 = vmatprep.subr.bf16.mxu0 0
  %1070 = vmatpush1.bf16.msra.mxu0 0
  %1071 = vmatprep.subr.bf16.mxu0 0
  %1072 = vmatpush1.bf16.msra.mxu0 0
  %1073 = vmatprep.subr.bf16.mxu0 0
  %1074 = vmatpush1.bf16.msra.mxu0 0
  %1075 = vmatprep.subr.bf16.mxu0 0
  %1076 = vmatpush1.bf16.msra.mxu0 0
  %1077 = vmatprep.mubr.bf16.mxu0 0
  %1078 = vmatmul.mubr.bf16.gmra.mrb[0].mxu0 %v1043
  %v1079 = vpop.f32.mrb[0].mxu0
  %v1080 = vadd.f32 0.0, %v1079
  %v1081 = vpop.f32.mrb[0].mxu0
  %v1082 = vadd.f32 0.0, %v1081
  %v1083 = vpop.f32.mrb[0].mxu0
  %v1084 = vpop.f32.mrb[0].mxu0
  %1085 = vdwg.mxu0
  %1086 = vmatprep.subr.bf16.mxu0 0
  %1087 = vmatpush1.bf16.msra.mxu0 %v1020
  %1088 = vmatprep.subr.bf16.mxu0 0
  %1089 = vmatpush1.bf16.msra.mxu0 %v1023
  %1090 = vmatprep.subr.bf16.mxu0 0
  %1091 = vmatpush1.bf16.msra.mxu0 %v1026
  %1092 = vmatprep.subr.bf16.mxu0 0
  %1093 = vmatpush1.bf16.msra.mxu0 %v1029
  %1094 = vmatprep.subr.bf16.mxu0 0
  %1095 = vmatpush1.bf16.msra.mxu0 0
  %1096 = vmatprep.subr.bf16.mxu0 0
  %1097 = vmatpush1.bf16.msra.mxu0 0
  %1098 = vmatprep.subr.bf16.mxu0 0
  %1099 = vmatpush1.bf16.msra.mxu0 0
  %1100 = vmatprep.subr.bf16.mxu0 0
  %1101 = vmatpush1.bf16.msra.mxu0 0
  %1102 = vmatprep.subr.bf16.mxu0 0
  %1103 = vmatpush1.bf16.msra.mxu0 0
  %1104 = vmatprep.subr.bf16.mxu0 0
  %1105 = vmatpush1.bf16.msra.mxu0 0
  %1106 = vmatprep.subr.bf16.mxu0 0
  %1107 = vmatpush1.bf16.msra.mxu0 0
  %1108 = vmatprep.subr.bf16.mxu0 0
  %1109 = vmatpush1.bf16.msra.mxu0 0
  %1110 = vmatprep.subr.bf16.mxu0 0
  %1111 = vmatpush1.bf16.msra.mxu0 0
  %1112 = vmatprep.subr.bf16.mxu0 0
  %1113 = vmatpush1.bf16.msra.mxu0 0
  %1114 = vmatprep.subr.bf16.mxu0 0
  %1115 = vmatpush1.bf16.msra.mxu0 0
  %1116 = vmatprep.subr.bf16.mxu0 0
  %1117 = vmatpush1.bf16.msra.mxu0 0
  %1118 = vmatprep.mubr.bf16.mxu0 0
  %1119 = vmatmul.mubr.bf16.gmra.mrb[0].mxu0 %v1043
  %v1120 = vpop.f32.mrb[0].mxu0
  %v1121 = vadd.f32 0.0, %v1120
  %v1122 = vpop.f32.mrb[0].mxu0
  %v1123 = vpop.f32.mrb[0].mxu0
  %v1124 = vpop.f32.mrb[0].mxu0
  %1125 = vdwg.mxu0
  %v1126 = vld [vmem:[%s7] sm:$0xff]
  %v1127 = vadd.f32 %v1121, %v1126
  %v1128 = vsel %vm340, %v1127, -inf
  %1129 = vmax.xlane.f32.xlu0 %v1128
  %v1130 = vpop.xlane.xlu0 %1129
  %v1131 = vsub.f32 %v1127, %v1130
  %v1132 = vmul.f32 %v1131, 1.442695
  %v1133 = vpow.pop %v1132
  %v1134 = vsel %vm340, %v1133, 0.0
  %1135 = vadd.xlane.f32.xlu0 %v1134
  %v1136 = vpop.xlane.xlu0 %1135
  %v1137 = vrcp.pop %v1136
  %v1138 = vmul.f32 %v1133, %v1137
  %v1139 = vpack.c.bf16 %v1138, %v1138
  %v1140 = vld [vmem:[%s4] sm:$0xf]
  %v1141 = vld [vmem:[%s4 + $0x4] sm:$0xf]
  %v1142 = vld [vmem:[%s4 + $0x8] sm:$0xf]
  %v1143 = vld [vmem:[%s4 + $0xc] sm:$0xf]
  %v1144 = vld [vmem:[%s4 + $0x10] sm:$0xf]
  %v1145 = vld [vmem:[%s4 + $0x14] sm:$0xf]
  %v1146 = vld [vmem:[%s4 + $0x18] sm:$0xf]
  %v1147 = vld [vmem:[%s4 + $0x1c] sm:$0xf]
  %v1156 = vunpack.c.l.b16 %v1140
  %v1157 = vunpack.c.l.b16 %v1141
  %v1158 = vunpack.c.l.b16 %v1142
  %v1159 = vunpack.c.l.b16 %v1143
  %v1160 = vunpack.c.l.b16 %v1144
  %v1161 = vunpack.c.l.b16 %v1145
  %v1162 = vunpack.c.l.b16 %v1146
  %v1163 = vunpack.c.l.b16 %v1147
  %v1164 = vpack.c.b16 %v1157, %v1156
  %v1165 = vpack.c.b16 %v1159, %v1158
  %v1166 = vpack.c.b16 %v1161, %v1160
  %v1167 = vpack.c.b16 %v1163, %v1162
  %1173 = vrot.lane.b32.xlu0 %v1121, 64
  %v1174 = vpop.permute.xlu0 %1173
  %v1177 = vsel %vm340, %v1139, 0
  %1179 = vmatprep.subr.bf16.mxu0 0
  %1180 = vmatpush1.bf16.msra.mxu0 %v1164
  %1181 = vmatprep.subr.bf16.mxu0 0
  %1182 = vmatpush1.bf16.msra.mxu0 %v1165
  %1183 = vmatprep.subr.bf16.mxu0 0
  %1184 = vmatpush1.bf16.msra.mxu0 %v1166
  %1185 = vmatprep.subr.bf16.mxu0 0
  %1186 = vmatpush1.bf16.msra.mxu0 %v1167
  %1187 = vmatprep.subr.bf16.mxu0 0
  %1188 = vmatpush1.bf16.msra.mxu0 0
  %1189 = vmatprep.subr.bf16.mxu0 0
  %1190 = vmatpush1.bf16.msra.mxu0 0
  %1191 = vmatprep.subr.bf16.mxu0 0
  %1192 = vmatpush1.bf16.msra.mxu0 0
  %1193 = vmatprep.subr.bf16.mxu0 0
  %1194 = vmatpush1.bf16.msra.mxu0 0
  %1195 = vmatprep.subr.bf16.mxu0 0
  %1196 = vmatpush1.bf16.msra.mxu0 0
  %1197 = vmatprep.subr.bf16.mxu0 0
  %1198 = vmatpush1.bf16.msra.mxu0 0
  %1199 = vmatprep.subr.bf16.mxu0 0
  %1200 = vmatpush1.bf16.msra.mxu0 0
  %1201 = vmatprep.subr.bf16.mxu0 0
  %1202 = vmatpush1.bf16.msra.mxu0 0
  %1203 = vmatprep.subr.bf16.mxu0 0
  %1204 = vmatpush1.bf16.msra.mxu0 0
  %1205 = vmatprep.subr.bf16.mxu0 0
  %1206 = vmatpush1.bf16.msra.mxu0 0
  %1207 = vmatprep.subr.bf16.mxu0 0
  %1208 = vmatpush1.bf16.msra.mxu0 0
  %1209 = vmatprep.subr.bf16.mxu0 0
  %1210 = vmatpush1.bf16.msra.mxu0 0
  %1211 = vmatprep.mubr.bf16.mxu0 0
  %1212 = vmatmul.mubr.bf16.gmra.mrb[0].mxu0 %v1177
  %v1213 = vpop.f32.mrb[0].mxu0
  %v1214 = vadd.f32 %v1174, %v1213
  %v1215 = vpop.f32.mrb[0].mxu0
  %v1216 = vpop.f32.mrb[0].mxu0
  %v1217 = vpop.f32.mrb[0].mxu0
  %1218 = vdwg.mxu0
  %v1219 = vtanh.pop %v1214
  %s1220 = scalar_lea.vmem %s10, 8
  %1221 = vst.msk [vmem:[%s1220] sm:$0xff] %vm340, %v1219
  %v1222 = vld [vmem:[%s6] sm:$0xf]
  %v1223 = vld [vmem:[%s6 + $0x4] sm:$0xf]
  %v1224 = vld [vmem:[%s6 + $0x8] sm:$0xf]
  %v1225 = vld [vmem:[%s6 + $0xc] sm:$0xf]
  %v1226 = vld [vmem:[%s6 + $0x10] sm:$0xf]
  %v1227 = vld [vmem:[%s6 + $0x14] sm:$0xf]
  %v1228 = vld [vmem:[%s6 + $0x18] sm:$0xf]
  %v1229 = vld [vmem:[%s6 + $0x1c] sm:$0xf]
  %v1238 = vunpack.c.l.b16 %v1222
  %v1239 = vunpack.c.l.b16 %v1223
  %v1240 = vunpack.c.l.b16 %v1224
  %v1241 = vunpack.c.l.b16 %v1225
  %v1242 = vunpack.c.l.b16 %v1226
  %v1243 = vunpack.c.l.b16 %v1227
  %v1244 = vunpack.c.l.b16 %v1228
  %v1245 = vunpack.c.l.b16 %v1229
  %v1246 = vpack.c.b16 %v1239, %v1238
  %v1247 = vpack.c.b16 %v1241, %v1240
  %v1248 = vpack.c.b16 %v1243, %v1242
  %v1249 = vpack.c.b16 %v1245, %v1244
  %1254 = vmatprep.subr.bf16.mxu0 0
  %1255 = vmatpush1.bf16.msra.mxu0 %v1246
  %1256 = vmatprep.subr.bf16.mxu0 0
  %1257 = vmatpush1.bf16.msra.mxu0 %v1247
  %1258 = vmatprep.subr.bf16.mxu0 0
  %1259 = vmatpush1.bf16.msra.mxu0 %v1248
  %1260 = vmatprep.subr.bf16.mxu0 0
  %1261 = vmatpush1.bf16.msra.mxu0 %v1249
  %1262 = vmatprep.subr.bf16.mxu0 0
  %1263 = vmatpush1.bf16.msra.mxu0 0
  %1264 = vmatprep.subr.bf16.mxu0 0
  %1265 = vmatpush1.bf16.msra.mxu0 0
  %1266 = vmatprep.subr.bf16.mxu0 0
  %1267 = vmatpush1.bf16.msra.mxu0 0
  %1268 = vmatprep.subr.bf16.mxu0 0
  %1269 = vmatpush1.bf16.msra.mxu0 0
  %1270 = vmatprep.subr.bf16.mxu0 0
  %1271 = vmatpush1.bf16.msra.mxu0 0
  %1272 = vmatprep.subr.bf16.mxu0 0
  %1273 = vmatpush1.bf16.msra.mxu0 0
  %1274 = vmatprep.subr.bf16.mxu0 0
  %1275 = vmatpush1.bf16.msra.mxu0 0
  %1276 = vmatprep.subr.bf16.mxu0 0
  %1277 = vmatpush1.bf16.msra.mxu0 0
  %1278 = vmatprep.subr.bf16.mxu0 0
  %1279 = vmatpush1.bf16.msra.mxu0 0
  %1280 = vmatprep.subr.bf16.mxu0 0
  %1281 = vmatpush1.bf16.msra.mxu0 0
  %1282 = vmatprep.subr.bf16.mxu0 0
  %1283 = vmatpush1.bf16.msra.mxu0 0
  %1284 = vmatprep.subr.bf16.mxu0 0
  %1285 = vmatpush1.bf16.msra.mxu0 0
  %1286 = vmatprep.mubr.bf16.mxu0 0
  %1287 = vmatmul.mubr.bf16.gmra.mrb[0].mxu0 %v1177
  %v1288 = vpop.f32.mrb[0].mxu0
  %v1289 = vadd.f32 0.0, %v1288
  %v1290 = vpop.f32.mrb[0].mxu0
  %v1291 = vpop.f32.mrb[0].mxu0
  %v1292 = vpop.f32.mrb[0].mxu0
  %1293 = vdwg.mxu0
  %s1294 = scalar_lea.vmem %s11, 8
  %1295 = vst.msk [vmem:[%s1294] sm:$0xff] %vm762, %v1289
  %v1296 = vpack.c.bf16 %v1219, %v1219
  %v1297 = vld [vmem:[%s5] sm:$0xf]
  %v1298 = vld [vmem:[%s5 + $0x4] sm:$0xf]
  %v1299 = vld [vmem:[%s5 + $0x8] sm:$0xf]
  %v1300 = vld [vmem:[%s5 + $0xc] sm:$0xf]
  %v1301 = vld [vmem:[%s5 + $0x10] sm:$0xf]
  %v1302 = vld [vmem:[%s5 + $0x14] sm:$0xf]
  %v1303 = vld [vmem:[%s5 + $0x18] sm:$0xf]
  %v1304 = vld [vmem:[%s5 + $0x1c] sm:$0xf]
  %v1305 = vld [vmem:[%s7] sm:$0xff]
  %v1314 = vunpack.c.l.b16 %v1297
  %v1315 = vunpack.c.l.b16 %v1298
  %v1316 = vunpack.c.l.b16 %v1299
  %v1317 = vunpack.c.l.b16 %v1300
  %v1318 = vunpack.c.l.b16 %v1301
  %v1319 = vunpack.c.l.b16 %v1302
  %v1320 = vunpack.c.l.b16 %v1303
  %v1321 = vunpack.c.l.b16 %v1304
  %v1322 = vpack.c.b16 %v1315, %v1314
  %v1323 = vpack.c.b16 %v1317, %v1316
  %v1324 = vpack.c.b16 %v1319, %v1318
  %v1325 = vpack.c.b16 %v1321, %v1320
  %v1331 = vsel %vm340, %v1296, 0
  %1333 = vmatprep.subr.bf16.mxu0 0
  %1334 = vmatpush1.bf16.msra.mxu0 %v1322
  %1335 = vmatprep.subr.bf16.mxu0 0
  %1336 = vmatpush1.bf16.msra.mxu0 %v1323
  %1337 = vmatprep.subr.bf16.mxu0 0
  %1338 = vmatpush1.bf16.msra.mxu0 %v1324
  %1339 = vmatprep.subr.bf16.mxu0 0
  %1340 = vmatpush1.bf16.msra.mxu0 %v1325
  %1341 = vmatprep.subr.bf16.mxu0 0
  %1342 = vmatpush1.bf16.msra.mxu0 0
  %1343 = vmatprep.subr.bf16.mxu0 0
  %1344 = vmatpush1.bf16.msra.mxu0 0
  %1345 = vmatprep.subr.bf16.mxu0 0
  %1346 = vmatpush1.bf16.msra.mxu0 0
  %1347 = vmatprep.subr.bf16.mxu0 0
  %1348 = vmatpush1.bf16.msra.mxu0 0
  %1349 = vmatprep.subr.bf16.mxu0 0
  %1350 = vmatpush1.bf16.msra.mxu0 0
  %1351 = vmatprep.subr.bf16.mxu0 0
  %1352 = vmatpush1.bf16.msra.mxu0 0
  %1353 = vmatprep.subr.bf16.mxu0 0
  %1354 = vmatpush1.bf16.msra.mxu0 0
  %1355 = vmatprep.subr.bf16.mxu0 0
  %1356 = vmatpush1.bf16.msra.mxu0 0
  %1357 = vmatprep.subr.bf16.mxu0 0
  %1358 = vmatpush1.bf16.msra.mxu0 0
  %1359 = vmatprep.subr.bf16.mxu0 0
  %1360 = vmatpush1.bf16.msra.mxu0 0
  %1361 = vmatprep.subr.bf16.mxu0 0
  %1362 = vmatpush1.bf16.msra.mxu0 0
  %1363 = vmatprep.subr.bf16.mxu0 0
  %1364 = vmatpush1.bf16.msra.mxu0 0
  %1365 = vmatprep.mubr.bf16.mxu0 0
  %1366 = vmatmul.mubr.bf16.gmra.mrb[0].mxu0 %v1331
  %v1367 = vpop.f32.mrb[0].mxu0
  %v1368 = vadd.f32 %v1305, %v1367
  %v1369 = vpop.f32.mrb[0].mxu0
  %v1370 = vpop.f32.mrb[0].mxu0
  %v1371 = vpop.f32.mrb[0].mxu0
  %1372 = vdwg.mxu0
  %v1373 = vsel %vm340, %v1368, -inf
  %1374 = vmax.xlane.f32.xlu0 %v1373
  %v1375 = vpop.xlane.xlu0 %1374
  %v1376 = vsub.f32 %v1368, %v1375
  %v1377 = vmul.f32 %v1376, 1.442695
  %v1378 = vpow.pop %v1377
  %v1379 = vsel %vm340, %v1378, 0.0
  %1380 = vadd.xlane.f32.xlu0 %v1379
  %v1381 = vpop.xlane.xlu0 %1380
  %v1382 = vrcp.pop %v1381
  %v1383 = vmul.f32 %v1378, %v1382
  %v1384 = vpack.c.bf16 %v1383, %v1383
  %v1385 = vld [vmem:[%s6] sm:$0xf]
  %v1386 = vld [vmem:[%s6 + $0x4] sm:$0xf]
  %v1387 = vld [vmem:[%s6 + $0x8] sm:$0xf]
  %v1388 = vld [vmem:[%s6 + $0xc] sm:$0xf]
  %v1389 = vld [vmem:[%s6 + $0x10] sm:$0xf]
  %v1390 = vld [vmem:[%s6 + $0x14] sm:$0xf]
  %v1391 = vld [vmem:[%s6 + $0x18] sm:$0xf]
  %v1392 = vld [vmem:[%s6 + $0x1c] sm:$0xf]
  %v1401 = vunpack.c.l.b16 %v1385
  %v1402 = vunpack.c.l.b16 %v1386
  %v1403 = vunpack.c.l.b16 %v1387
  %v1404 = vunpack.c.l.b16 %v1388
  %v1405 = vunpack.c.l.b16 %v1389
  %v1406 = vunpack.c.l.b16 %v1390
  %v1407 = vunpack.c.l.b16 %v1391
  %v1408 = vunpack.c.l.b16 %v1392
  %v1409 = vpack.c.b16 %v1402, %v1401
  %v1410 = vpack.c.b16 %v1404, %v1403
  %v1411 = vpack.c.b16 %v1406, %v1405
  %v1412 = vpack.c.b16 %v1408, %v1407
  %v1418 = vsel %vm340, %v1384, 0
  %1420 = vmatprep.subr.bf16.mxu0 0
  %1421 = vmatpush1.bf16.msra.mxu0 %v1409
  %1422 = vmatprep.subr.bf16.mxu0 0
  %1423 = vmatpush1.bf16.msra.mxu0 %v1410
  %1424 = vmatprep.subr.bf16.mxu0 0
  %1425 = vmatpush1.bf16.msra.mxu0 %v1411
  %1426 = vmatprep.subr.bf16.mxu0 0
  %1427 = vmatpush1.bf16.msra.mxu0 %v1412
  %1428 = vmatprep.subr.bf16.mxu0 0
  %1429 = vmatpush1.bf16.msra.mxu0 0
  %1430 = vmatprep.subr.bf16.mxu0 0
  %1431 = vmatpush1.bf16.msra.mxu0 0
  %1432 = vmatprep.subr.bf16.mxu0 0
  %1433 = vmatpush1.bf16.msra.mxu0 0
  %1434 = vmatprep.subr.bf16.mxu0 0
  %1435 = vmatpush1.bf16.msra.mxu0 0
  %1436 = vmatprep.subr.bf16.mxu0 0
  %1437 = vmatpush1.bf16.msra.mxu0 0
  %1438 = vmatprep.subr.bf16.mxu0 0
  %1439 = vmatpush1.bf16.msra.mxu0 0
  %1440 = vmatprep.subr.bf16.mxu0 0
  %1441 = vmatpush1.bf16.msra.mxu0 0
  %1442 = vmatprep.subr.bf16.mxu0 0
  %1443 = vmatpush1.bf16.msra.mxu0 0
  %1444 = vmatprep.subr.bf16.mxu0 0
  %1445 = vmatpush1.bf16.msra.mxu0 0
  %1446 = vmatprep.subr.bf16.mxu0 0
  %1447 = vmatpush1.bf16.msra.mxu0 0
  %1448 = vmatprep.subr.bf16.mxu0 0
  %1449 = vmatpush1.bf16.msra.mxu0 0
  %1450 = vmatprep.subr.bf16.mxu0 0
  %1451 = vmatpush1.bf16.msra.mxu0 0
  %1452 = vmatprep.mubr.bf16.mxu0 0
  %1453 = vmatmul.mubr.bf16.gmra.mrb[0].mxu0 %v1418
  %v1454 = vpop.f32.mrb[0].mxu0
  %v1455 = vadd.f32 0.0, %v1454
  %v1456 = vpop.f32.mrb[0].mxu0
  %v1457 = vpop.f32.mrb[0].mxu0
  %v1458 = vpop.f32.mrb[0].mxu0
  %1459 = vdwg.mxu0
  %s1460 = scalar_lea.vmem %s12, 8
  %1461 = vst.msk [vmem:[%s1460] sm:$0xff] %vm762, %v1455
  %v1462 = vld [vmem:[#allocation2 + $0x20] sm:$0xff]
  %v1463 = vld [vmem:[#allocation2 + $0x28] sm:$0xff]
  %v1464 = vadd.f32 %v1462, %v1080
  %v1465 = vadd.f32 %v1463, %v1082
  %v1466 = vtanh.pop %v1464
  %v1467 = vtanh.pop %v1465
  %v1468 = vxor.u32 %v1464, 2147483648
  %v1469 = vxor.u32 %v1465, 2147483648
  %v1470 = vmul.f32 %v1468, 1.442695
  %v1471 = vpow.pop %v1470
  %v1472 = vmul.f32 %v1469, 1.442695
  %v1473 = vpow.pop %v1472
  %v1474 = vadd.f32 %v1471, 1.0
  %v1475 = vadd.f32 %v1473, 1.0
  %v1476 = vrcp.pop %v1474
  %v1477 = vmul.f32 1.0, %v1476
  %v1478 = vrcp.pop %v1475
  %v1479 = vmul.f32 1.0, %v1478
  %v1480 = vsel %vm396, %v1466, %v1477
  %v1481 = vsel %vm397, %v1467, %v1479
  %v1482 = vmul.f32 %v1480, %v955
  %v1483 = vmul.f32 %v1480, %v1481
  %1485 = vrot.lane.b32.xlu0 %v1483, 64
  %v1486 = vpop.permute.xlu0 %1485
  %v1488 = vadd.f32 %v1482, %v1486
  %v1489 = vtanh.pop %v1488
  %v1490 = vmul.f32 %v1481, %v1489
  %v1491 = vpack.c.bf16 %v1490, %v1490
  %v1492 = vld [vmem:[%s3] sm:$0xff]
  %v1493 = vld [vmem:[%s3 + $0x8] sm:$0xf]
  %v1494 = vld [vmem:[%s3 + $0xc] sm:$0xff]
  %v1495 = vld [vmem:[%s3 + $0x14] sm:$0xf]
  %v1496 = vld [vmem:[%s3 + $0x18] sm:$0xff]
  %v1497 = vld [vmem:[%s3 + $0x20] sm:$0xf]
  %v1498 = vld [vmem:[%s3 + $0x24] sm:$0xff]
  %v1499 = vld [vmem:[%s3 + $0x2c] sm:$0xf]
  %v1500 = vld [vmem:[%s3 + $0x30] sm:$0xff]
  %v1501 = vld [vmem:[%s3 + $0x38] sm:$0xf]
  %v1502 = vld [vmem:[%s3 + $0x3c] sm:$0xff]
  %v1503 = vld [vmem:[%s3 + $0x44] sm:$0xf]
  %v1504 = vld [vmem:[%s3 + $0x48] sm:$0xff]
  %v1505 = vld [vmem:[%s3 + $0x50] sm:$0xf]
  %v1506 = vld [vmem:[%s3 + $0x54] sm:$0xff]
  %v1507 = vld [vmem:[%s3 + $0x5c] sm:$0xf]
  %1509 = vrot.lane.b32.xlu0 %v1491, 64
  %v1510 = vpop.permute.xlu0 %1509
  %v1527 = vunpack.c.l.b16 %v1492
  %v1528 = vunpack.c.h.b16 %v1492
  %v1529 = vunpack.c.l.b16 %v1493
  %v1530 = vunpack.c.l.b16 %v1494
  %v1531 = vunpack.c.h.b16 %v1494
  %v1532 = vunpack.c.l.b16 %v1495
  %v1533 = vunpack.c.l.b16 %v1496
  %v1534 = vunpack.c.h.b16 %v1496
  %v1535 = vunpack.c.l.b16 %v1497
  %v1536 = vunpack.c.l.b16 %v1498
  %v1537 = vunpack.c.h.b16 %v1498
  %v1538 = vunpack.c.l.b16 %v1499
  %v1539 = vunpack.c.l.b16 %v1500
  %v1540 = vunpack.c.h.b16 %v1500
  %v1541 = vunpack.c.l.b16 %v1501
  %v1542 = vunpack.c.l.b16 %v1502
  %v1543 = vunpack.c.h.b16 %v1502
  %v1544 = vunpack.c.l.b16 %v1503
  %v1545 = vunpack.c.l.b16 %v1504
  %v1546 = vunpack.c.h.b16 %v1504
  %v1547 = vunpack.c.l.b16 %v1505
  %v1548 = vunpack.c.l.b16 %v1506
  %v1549 = vunpack.c.h.b16 %v1506
  %v1550 = vunpack.c.l.b16 %v1507
  %v1551 = vpack.c.b16 %v1530, %v1527
  %v1552 = vpack.c.b16 %v1531, %v1528
  %v1553 = vpack.c.b16 %v1532, %v1529
  %v1554 = vpack.c.b16 %v1536, %v1533
  %v1555 = vpack.c.b16 %v1537, %v1534
  %v1556 = vpack.c.b16 %v1538, %v1535
  %v1557 = vpack.c.b16 %v1542, %v1539
  %v1558 = vpack.c.b16 %v1543, %v1540
  %v1559 = vpack.c.b16 %v1544, %v1541
  %v1560 = vpack.c.b16 %v1548, %v1545
  %v1561 = vpack.c.b16 %v1549, %v1546
  %v1562 = vpack.c.b16 %v1550, %v1547
  %v1576 = vsel %vm340, %v1510, 0
  %1578 = vmatprep.subr.bf16.mxu0 %v1552
  %1579 = vmatpush1.bf16.msra.mxu0 %v1551
  %1580 = vmatprep.subr.bf16.mxu0 %v1555
  %1581 = vmatpush1.bf16.msra.mxu0 %v1554
  %1582 = vmatprep.subr.bf16.mxu0 %v1558
  %1583 = vmatpush1.bf16.msra.mxu0 %v1557
  %1584 = vmatprep.subr.bf16.mxu0 %v1561
  %1585 = vmatpush1.bf16.msra.mxu0 %v1560
  %1586 = vmatprep.subr.bf16.mxu0 0
  %1587 = vmatpush1.bf16.msra.mxu0 0
  %1588 = vmatprep.subr.bf16.mxu0 0
  %1589 = vmatpush1.bf16.msra.mxu0 0
  %1590 = vmatprep.subr.bf16.mxu0 0
  %1591 = vmatpush1.bf16.msra.mxu0 0
  %1592 = vmatprep.subr.bf16.mxu0 0
  %1593 = vmatpush1.bf16.msra.mxu0 0
  %1594 = vmatprep.subr.bf16.mxu0 0
  %1595 = vmatpush1.bf16.msra.mxu0 0
  %1596 = vmatprep.subr.bf16.mxu0 0
  %1597 = vmatpush1.bf16.msra.mxu0 0
  %1598 = vmatprep.subr.bf16.mxu0 0
  %1599 = vmatpush1.bf16.msra.mxu0 0
  %1600 = vmatprep.subr.bf16.mxu0 0
  %1601 = vmatpush1.bf16.msra.mxu0 0
  %1602 = vmatprep.subr.bf16.mxu0 0
  %1603 = vmatpush1.bf16.msra.mxu0 0
  %1604 = vmatprep.subr.bf16.mxu0 0
  %1605 = vmatpush1.bf16.msra.mxu0 0
  %1606 = vmatprep.subr.bf16.mxu0 0
  %1607 = vmatpush1.bf16.msra.mxu0 0
  %1608 = vmatprep.subr.bf16.mxu0 0
  %1609 = vmatpush1.bf16.msra.mxu0 0
  %1610 = vmatprep.mubr.bf16.mxu0 0
  %1611 = vmatmul.mubr.bf16.gmra.mrb[0].mxu0 %v1576
  %v1612 = vpop.f32.mrb[0].mxu0
  %v1613 = vadd.f32 0.0, %v1612
  %v1614 = vpop.f32.mrb[0].mxu0
  %v1615 = vadd.f32 0.0, %v1614
  %v1616 = vpop.f32.mrb[0].mxu0
  %v1617 = vpop.f32.mrb[0].mxu0
  %1618 = vdwg.mxu0
  %1619 = vmatprep.subr.bf16.mxu0 0
  %1620 = vmatpush1.bf16.msra.mxu0 %v1553
  %1621 = vmatprep.subr.bf16.mxu0 0
  %1622 = vmatpush1.bf16.msra.mxu0 %v1556
  %1623 = vmatprep.subr.bf16.mxu0 0
  %1624 = vmatpush1.bf16.msra.mxu0 %v1559
  %1625 = vmatprep.subr.bf16.mxu0 0
  %1626 = vmatpush1.bf16.msra.mxu0 %v1562
  %1627 = vmatprep.subr.bf16.mxu0 0
  %1628 = vmatpush1.bf16.msra.mxu0 0
  %1629 = vmatprep.subr.bf16.mxu0 0
  %1630 = vmatpush1.bf16.msra.mxu0 0
  %1631 = vmatprep.subr.bf16.mxu0 0
  %1632 = vmatpush1.bf16.msra.mxu0 0
  %1633 = vmatprep.subr.bf16.mxu0 0
  %1634 = vmatpush1.bf16.msra.mxu0 0
  %1635 = vmatprep.subr.bf16.mxu0 0
  %1636 = vmatpush1.bf16.msra.mxu0 0
  %1637 = vmatprep.subr.bf16.mxu0 0
  %1638 = vmatpush1.bf16.msra.mxu0 0
  %1639 = vmatprep.subr.bf16.mxu0 0
  %1640 = vmatpush1.bf16.msra.mxu0 0
  %1641 = vmatprep.subr.bf16.mxu0 0
  %1642 = vmatpush1.bf16.msra.mxu0 0
  %1643 = vmatprep.subr.bf16.mxu0 0
  %1644 = vmatpush1.bf16.msra.mxu0 0
  %1645 = vmatprep.subr.bf16.mxu0 0
  %1646 = vmatpush1.bf16.msra.mxu0 0
  %1647 = vmatprep.subr.bf16.mxu0 0
  %1648 = vmatpush1.bf16.msra.mxu0 0
  %1649 = vmatprep.subr.bf16.mxu0 0
  %1650 = vmatpush1.bf16.msra.mxu0 0
  %1651 = vmatprep.mubr.bf16.mxu0 0
  %1652 = vmatmul.mubr.bf16.gmra.mrb[0].mxu0 %v1576
  %v1653 = vpop.f32.mrb[0].mxu0
  %v1654 = vadd.f32 0.0, %v1653
  %v1655 = vpop.f32.mrb[0].mxu0
  %v1656 = vpop.f32.mrb[0].mxu0
  %v1657 = vpop.f32.mrb[0].mxu0
  %1658 = vdwg.mxu0
  %v1659 = vld [vmem:[%s7] sm:$0xff]
  %v1660 = vadd.f32 %v1654, %v1659
  %v1661 = vsel %vm340, %v1660, -inf
  %1662 = vmax.xlane.f32.xlu0 %v1661
  %v1663 = vpop.xlane.xlu0 %1662
  %v1664 = vsub.f32 %v1660, %v1663
  %v1665 = vmul.f32 %v1664, 1.442695
  %v1666 = vpow.pop %v1665
  %v1667 = vsel %vm340, %v1666, 0.0
  %1668 = vadd.xlane.f32.xlu0 %v1667
  %v1669 = vpop.xlane.xlu0 %1668
  %v1670 = vrcp.pop %v1669
  %v1671 = vmul.f32 %v1666, %v1670
  %v1672 = vpack.c.bf16 %v1671, %v1671
  %v1673 = vld [vmem:[%s4] sm:$0xf]
  %v1674 = vld [vmem:[%s4 + $0x4] sm:$0xf]
  %v1675 = vld [vmem:[%s4 + $0x8] sm:$0xf]
  %v1676 = vld [vmem:[%s4 + $0xc] sm:$0xf]
  %v1677 = vld [vmem:[%s4 + $0x10] sm:$0xf]
  %v1678 = vld [vmem:[%s4 + $0x14] sm:$0xf]
  %v1679 = vld [vmem:[%s4 + $0x18] sm:$0xf]
  %v1680 = vld [vmem:[%s4 + $0x1c] sm:$0xf]
  %v1689 = vunpack.c.l.b16 %v1673
  %v1690 = vunpack.c.l.b16 %v1674
  %v1691 = vunpack.c.l.b16 %v1675
  %v1692 = vunpack.c.l.b16 %v1676
  %v1693 = vunpack.c.l.b16 %v1677
  %v1694 = vunpack.c.l.b16 %v1678
  %v1695 = vunpack.c.l.b16 %v1679
  %v1696 = vunpack.c.l.b16 %v1680
  %v1697 = vpack.c.b16 %v1690, %v1689
  %v1698 = vpack.c.b16 %v1692, %v1691
  %v1699 = vpack.c.b16 %v1694, %v1693
  %v1700 = vpack.c.b16 %v1696, %v1695
  %1706 = vrot.lane.b32.xlu0 %v1654, 64
  %v1707 = vpop.permute.xlu0 %1706
  %v1710 = vsel %vm340, %v1672, 0
  %1712 = vmatprep.subr.bf16.mxu0 0
  %1713 = vmatpush1.bf16.msra.mxu0 %v1697
  %1714 = vmatprep.subr.bf16.mxu0 0
  %1715 = vmatpush1.bf16.msra.mxu0 %v1698
  %1716 = vmatprep.subr.bf16.mxu0 0
  %1717 = vmatpush1.bf16.msra.mxu0 %v1699
  %1718 = vmatprep.subr.bf16.mxu0 0
  %1719 = vmatpush1.bf16.msra.mxu0 %v1700
  %1720 = vmatprep.subr.bf16.mxu0 0
  %1721 = vmatpush1.bf16.msra.mxu0 0
  %1722 = vmatprep.subr.bf16.mxu0 0
  %1723 = vmatpush1.bf16.msra.mxu0 0
  %1724 = vmatprep.subr.bf16.mxu0 0
  %1725 = vmatpush1.bf16.msra.mxu0 0
  %1726 = vmatprep.subr.bf16.mxu0 0
  %1727 = vmatpush1.bf16.msra.mxu0 0
  %1728 = vmatprep.subr.bf16.mxu0 0
  %1729 = vmatpush1.bf16.msra.mxu0 0
  %1730 = vmatprep.subr.bf16.mxu0 0
  %1731 = vmatpush1.bf16.msra.mxu0 0
  %1732 = vmatprep.subr.bf16.mxu0 0
  %1733 = vmatpush1.bf16.msra.mxu0 0
  %1734 = vmatprep.subr.bf16.mxu0 0
  %1735 = vmatpush1.bf16.msra.mxu0 0
  %1736 = vmatprep.subr.bf16.mxu0 0
  %1737 = vmatpush1.bf16.msra.mxu0 0
  %1738 = vmatprep.subr.bf16.mxu0 0
  %1739 = vmatpush1.bf16.msra.mxu0 0
  %1740 = vmatprep.subr.bf16.mxu0 0
  %1741 = vmatpush1.bf16.msra.mxu0 0
  %1742 = vmatprep.subr.bf16.mxu0 0
  %1743 = vmatpush1.bf16.msra.mxu0 0
  %1744 = vmatprep.mubr.bf16.mxu0 0
  %1745 = vmatmul.mubr.bf16.gmra.mrb[0].mxu0 %v1710
  %v1746 = vpop.f32.mrb[0].mxu0
  %v1747 = vadd.f32 %v1707, %v1746
  %v1748 = vpop.f32.mrb[0].mxu0
  %v1749 = vpop.f32.mrb[0].mxu0
  %v1750 = vpop.f32.mrb[0].mxu0
  %1751 = vdwg.mxu0
  %v1752 = vtanh.pop %v1747
  %s1753 = scalar_lea.vmem %s10, 16
  %1754 = vst.msk [vmem:[%s1753] sm:$0xff] %vm340, %v1752
  %v1755 = vld [vmem:[%s6] sm:$0xf]
  %v1756 = vld [vmem:[%s6 + $0x4] sm:$0xf]
  %v1757 = vld [vmem:[%s6 + $0x8] sm:$0xf]
  %v1758 = vld [vmem:[%s6 + $0xc] sm:$0xf]
  %v1759 = vld [vmem:[%s6 + $0x10] sm:$0xf]
  %v1760 = vld [vmem:[%s6 + $0x14] sm:$0xf]
  %v1761 = vld [vmem:[%s6 + $0x18] sm:$0xf]
  %v1762 = vld [vmem:[%s6 + $0x1c] sm:$0xf]
  %v1771 = vunpack.c.l.b16 %v1755
  %v1772 = vunpack.c.l.b16 %v1756
  %v1773 = vunpack.c.l.b16 %v1757
  %v1774 = vunpack.c.l.b16 %v1758
  %v1775 = vunpack.c.l.b16 %v1759
  %v1776 = vunpack.c.l.b16 %v1760
  %v1777 = vunpack.c.l.b16 %v1761
  %v1778 = vunpack.c.l.b16 %v1762
  %v1779 = vpack.c.b16 %v1772, %v1771
  %v1780 = vpack.c.b16 %v1774, %v1773
  %v1781 = vpack.c.b16 %v1776, %v1775
  %v1782 = vpack.c.b16 %v1778, %v1777
  %1787 = vmatprep.subr.bf16.mxu0 0
  %1788 = vmatpush1.bf16.msra.mxu0 %v1779
  %1789 = vmatprep.subr.bf16.mxu0 0
  %1790 = vmatpush1.bf16.msra.mxu0 %v1780
  %1791 = vmatprep.subr.bf16.mxu0 0
  %1792 = vmatpush1.bf16.msra.mxu0 %v1781
  %1793 = vmatprep.subr.bf16.mxu0 0
  %1794 = vmatpush1.bf16.msra.mxu0 %v1782
  %1795 = vmatprep.subr.bf16.mxu0 0
  %1796 = vmatpush1.bf16.msra.mxu0 0
  %1797 = vmatprep.subr.bf16.mxu0 0
  %1798 = vmatpush1.bf16.msra.mxu0 0
  %1799 = vmatprep.subr.bf16.mxu0 0
  %1800 = vmatpush1.bf16.msra.mxu0 0
  %1801 = vmatprep.subr.bf16.mxu0 0
  %1802 = vmatpush1.bf16.msra.mxu0 0
  %1803 = vmatprep.subr.bf16.mxu0 0
  %1804 = vmatpush1.bf16.msra.mxu0 0
  %1805 = vmatprep.subr.bf16.mxu0 0
  %1806 = vmatpush1.bf16.msra.mxu0 0
  %1807 = vmatprep.subr.bf16.mxu0 0
  %1808 = vmatpush1.bf16.msra.mxu0 0
  %1809 = vmatprep.subr.bf16.mxu0 0
  %1810 = vmatpush1.bf16.msra.mxu0 0
  %1811 = vmatprep.subr.bf16.mxu0 0
  %1812 = vmatpush1.bf16.msra.mxu0 0
  %1813 = vmatprep.subr.bf16.mxu0 0
  %1814 = vmatpush1.bf16.msra.mxu0 0
  %1815 = vmatprep.subr.bf16.mxu0 0
  %1816 = vmatpush1.bf16.msra.mxu0 0
  %1817 = vmatprep.subr.bf16.mxu0 0
  %1818 = vmatpush1.bf16.msra.mxu0 0
  %1819 = vmatprep.mubr.bf16.mxu0 0
  %1820 = vmatmul.mubr.bf16.gmra.mrb[0].mxu0 %v1710
  %v1821 = vpop.f32.mrb[0].mxu0
  %v1822 = vadd.f32 0.0, %v1821
  %v1823 = vpop.f32.mrb[0].mxu0
  %v1824 = vpop.f32.mrb[0].mxu0
  %v1825 = vpop.f32.mrb[0].mxu0
  %1826 = vdwg.mxu0
  %s1827 = scalar_lea.vmem %s11, 16
  %1828 = vst.msk [vmem:[%s1827] sm:$0xff] %vm762, %v1822
  %v1829 = vpack.c.bf16 %v1752, %v1752
  %v1830 = vld [vmem:[%s5] sm:$0xf]
  %v1831 = vld [vmem:[%s5 + $0x4] sm:$0xf]
  %v1832 = vld [vmem:[%s5 + $0x8] sm:$0xf]
  %v1833 = vld [vmem:[%s5 + $0xc] sm:$0xf]
  %v1834 = vld [vmem:[%s5 + $0x10] sm:$0xf]
  %v1835 = vld [vmem:[%s5 + $0x14] sm:$0xf]
  %v1836 = vld [vmem:[%s5 + $0x18] sm:$0xf]
  %v1837 = vld [vmem:[%s5 + $0x1c] sm:$0xf]
  %v1838 = vld [vmem:[%s7] sm:$0xff]
  %v1847 = vunpack.c.l.b16 %v1830
  %v1848 = vunpack.c.l.b16 %v1831
  %v1849 = vunpack.c.l.b16 %v1832
  %v1850 = vunpack.c.l.b16 %v1833
  %v1851 = vunpack.c.l.b16 %v1834
  %v1852 = vunpack.c.l.b16 %v1835
  %v1853 = vunpack.c.l.b16 %v1836
  %v1854 = vunpack.c.l.b16 %v1837
  %v1855 = vpack.c.b16 %v1848, %v1847
  %v1856 = vpack.c.b16 %v1850, %v1849
  %v1857 = vpack.c.b16 %v1852, %v1851
  %v1858 = vpack.c.b16 %v1854, %v1853
  %v1864 = vsel %vm340, %v1829, 0
  %1866 = vmatprep.subr.bf16.mxu0 0
  %1867 = vmatpush1.bf16.msra.mxu0 %v1855
  %1868 = vmatprep.subr.bf16.mxu0 0
  %1869 = vmatpush1.bf16.msra.mxu0 %v1856
  %1870 = vmatprep.subr.bf16.mxu0 0
  %1871 = vmatpush1.bf16.msra.mxu0 %v1857
  %1872 = vmatprep.subr.bf16.mxu0 0
  %1873 = vmatpush1.bf16.msra.mxu0 %v1858
  %1874 = vmatprep.subr.bf16.mxu0 0
  %1875 = vmatpush1.bf16.msra.mxu0 0
  %1876 = vmatprep.subr.bf16.mxu0 0
  %1877 = vmatpush1.bf16.msra.mxu0 0
  %1878 = vmatprep.subr.bf16.mxu0 0
  %1879 = vmatpush1.bf16.msra.mxu0 0
  %1880 = vmatprep.subr.bf16.mxu0 0
  %1881 = vmatpush1.bf16.msra.mxu0 0
  %1882 = vmatprep.subr.bf16.mxu0 0
  %1883 = vmatpush1.bf16.msra.mxu0 0
  %1884 = vmatprep.subr.bf16.mxu0 0
  %1885 = vmatpush1.bf16.msra.mxu0 0
  %1886 = vmatprep.subr.bf16.mxu0 0
  %1887 = vmatpush1.bf16.msra.mxu0 0
  %1888 = vmatprep.subr.bf16.mxu0 0
  %1889 = vmatpush1.bf16.msra.mxu0 0
  %1890 = vmatprep.subr.bf16.mxu0 0
  %1891 = vmatpush1.bf16.msra.mxu0 0
  %1892 = vmatprep.subr.bf16.mxu0 0
  %1893 = vmatpush1.bf16.msra.mxu0 0
  %1894 = vmatprep.subr.bf16.mxu0 0
  %1895 = vmatpush1.bf16.msra.mxu0 0
  %1896 = vmatprep.subr.bf16.mxu0 0
  %1897 = vmatpush1.bf16.msra.mxu0 0
  %1898 = vmatprep.mubr.bf16.mxu0 0
  %1899 = vmatmul.mubr.bf16.gmra.mrb[0].mxu0 %v1864
  %v1900 = vpop.f32.mrb[0].mxu0
  %v1901 = vadd.f32 %v1838, %v1900
  %v1902 = vpop.f32.mrb[0].mxu0
  %v1903 = vpop.f32.mrb[0].mxu0
  %v1904 = vpop.f32.mrb[0].mxu0
  %1905 = vdwg.mxu0
  %v1906 = vsel %vm340, %v1901, -inf
  %1907 = vmax.xlane.f32.xlu0 %v1906
  %v1908 = vpop.xlane.xlu0 %1907
  %v1909 = vsub.f32 %v1901, %v1908
  %v1910 = vmul.f32 %v1909, 1.442695
  %v1911 = vpow.pop %v1910
  %v1912 = vsel %vm340, %v1911, 0.0
  %1913 = vadd.xlane.f32.xlu0 %v1912
  %v1914 = vpop.xlane.xlu0 %1913
  %v1915 = vrcp.pop %v1914
  %v1916 = vmul.f32 %v1911, %v1915
  %v1917 = vpack.c.bf16 %v1916, %v1916
  %v1918 = vld [vmem:[%s6] sm:$0xf]
  %v1919 = vld [vmem:[%s6 + $0x4] sm:$0xf]
  %v1920 = vld [vmem:[%s6 + $0x8] sm:$0xf]
  %v1921 = vld [vmem:[%s6 + $0xc] sm:$0xf]
  %v1922 = vld [vmem:[%s6 + $0x10] sm:$0xf]
  %v1923 = vld [vmem:[%s6 + $0x14] sm:$0xf]
  %v1924 = vld [vmem:[%s6 + $0x18] sm:$0xf]
  %v1925 = vld [vmem:[%s6 + $0x1c] sm:$0xf]
  %v1934 = vunpack.c.l.b16 %v1918
  %v1935 = vunpack.c.l.b16 %v1919
  %v1936 = vunpack.c.l.b16 %v1920
  %v1937 = vunpack.c.l.b16 %v1921
  %v1938 = vunpack.c.l.b16 %v1922
  %v1939 = vunpack.c.l.b16 %v1923
  %v1940 = vunpack.c.l.b16 %v1924
  %v1941 = vunpack.c.l.b16 %v1925
  %v1942 = vpack.c.b16 %v1935, %v1934
  %v1943 = vpack.c.b16 %v1937, %v1936
  %v1944 = vpack.c.b16 %v1939, %v1938
  %v1945 = vpack.c.b16 %v1941, %v1940
  %v1951 = vsel %vm340, %v1917, 0
  %1953 = vmatprep.subr.bf16.mxu0 0
  %1954 = vmatpush1.bf16.msra.mxu0 %v1942
  %1955 = vmatprep.subr.bf16.mxu0 0
  %1956 = vmatpush1.bf16.msra.mxu0 %v1943
  %1957 = vmatprep.subr.bf16.mxu0 0
  %1958 = vmatpush1.bf16.msra.mxu0 %v1944
  %1959 = vmatprep.subr.bf16.mxu0 0
  %1960 = vmatpush1.bf16.msra.mxu0 %v1945
  %1961 = vmatprep.subr.bf16.mxu0 0
  %1962 = vmatpush1.bf16.msra.mxu0 0
  %1963 = vmatprep.subr.bf16.mxu0 0
  %1964 = vmatpush1.bf16.msra.mxu0 0
  %1965 = vmatprep.subr.bf16.mxu0 0
  %1966 = vmatpush1.bf16.msra.mxu0 0
  %1967 = vmatprep.subr.bf16.mxu0 0
  %1968 = vmatpush1.bf16.msra.mxu0 0
  %1969 = vmatprep.subr.bf16.mxu0 0
  %1970 = vmatpush1.bf16.msra.mxu0 0
  %1971 = vmatprep.subr.bf16.mxu0 0
  %1972 = vmatpush1.bf16.msra.mxu0 0
  %1973 = vmatprep.subr.bf16.mxu0 0
  %1974 = vmatpush1.bf16.msra.mxu0 0
  %1975 = vmatprep.subr.bf16.mxu0 0
  %1976 = vmatpush1.bf16.msra.mxu0 0
  %1977 = vmatprep.subr.bf16.mxu0 0
  %1978 = vmatpush1.bf16.msra.mxu0 0
  %1979 = vmatprep.subr.bf16.mxu0 0
  %1980 = vmatpush1.bf16.msra.mxu0 0
  %1981 = vmatprep.subr.bf16.mxu0 0
  %1982 = vmatpush1.bf16.msra.mxu0 0
  %1983 = vmatprep.subr.bf16.mxu0 0
  %1984 = vmatpush1.bf16.msra.mxu0 0
  %1985 = vmatprep.mubr.bf16.mxu0 0
  %1986 = vmatmul.mubr.bf16.gmra.mrb[0].mxu0 %v1951
  %v1987 = vpop.f32.mrb[0].mxu0
  %v1988 = vadd.f32 0.0, %v1987
  %v1989 = vpop.f32.mrb[0].mxu0
  %v1990 = vpop.f32.mrb[0].mxu0
  %v1991 = vpop.f32.mrb[0].mxu0
  %1992 = vdwg.mxu0
  %s1993 = scalar_lea.vmem %s12, 16
  %1994 = vst.msk [vmem:[%s1993] sm:$0xff] %vm762, %v1988
  %v1995 = vld [vmem:[#allocation2 + $0x30] sm:$0xff]
  %v1996 = vld [vmem:[#allocation2 + $0x38] sm:$0xff]
  %v1997 = vadd.f32 %v1995, %v1613
  %v1998 = vadd.f32 %v1996, %v1615
  %v1999 = vtanh.pop %v1997
  %v2000 = vtanh.pop %v1998
  %v2001 = vxor.u32 %v1997, 2147483648
  %v2002 = vxor.u32 %v1998, 2147483648
  %v2003 = vmul.f32 %v2001, 1.442695
  %v2004 = vpow.pop %v2003
  %v2005 = vmul.f32 %v2002, 1.442695
  %v2006 = vpow.pop %v2005
  %v2007 = vadd.f32 %v2004, 1.0
  %v2008 = vadd.f32 %v2006, 1.0
  %v2009 = vrcp.pop %v2007
  %v2010 = vmul.f32 1.0, %v2009
  %v2011 = vrcp.pop %v2008
  %v2012 = vmul.f32 1.0, %v2011
  %v2013 = vsel %vm396, %v1999, %v2010
  %v2014 = vsel %vm397, %v2000, %v2012
  %v2015 = vmul.f32 %v2013, %v1488
  %v2016 = vmul.f32 %v2013, %v2014
  %2018 = vrot.lane.b32.xlu0 %v2016, 64
  %v2019 = vpop.permute.xlu0 %2018
  %v2021 = vadd.f32 %v2015, %v2019
  %v2022 = vtanh.pop %v2021
  %v2023 = vmul.f32 %v2014, %v2022
  %v2024 = vpack.c.bf16 %v2023, %v2023
  %v2025 = vld [vmem:[%s3] sm:$0xff]
  %v2026 = vld [vmem:[%s3 + $0x8] sm:$0xf]
  %v2027 = vld [vmem:[%s3 + $0xc] sm:$0xff]
  %v2028 = vld [vmem:[%s3 + $0x14] sm:$0xf]
  %v2029 = vld [vmem:[%s3 + $0x18] sm:$0xff]
  %v2030 = vld [vmem:[%s3 + $0x20] sm:$0xf]
  %v2031 = vld [vmem:[%s3 + $0x24] sm:$0xff]
  %v2032 = vld [vmem:[%s3 + $0x2c] sm:$0xf]
  %v2033 = vld [vmem:[%s3 + $0x30] sm:$0xff]
  %v2034 = vld [vmem:[%s3 + $0x38] sm:$0xf]
  %v2035 = vld [vmem:[%s3 + $0x3c] sm:$0xff]
  %v2036 = vld [vmem:[%s3 + $0x44] sm:$0xf]
  %v2037 = vld [vmem:[%s3 + $0x48] sm:$0xff]
  %v2038 = vld [vmem:[%s3 + $0x50] sm:$0xf]
  %v2039 = vld [vmem:[%s3 + $0x54] sm:$0xff]
  %v2040 = vld [vmem:[%s3 + $0x5c] sm:$0xf]
  %2042 = vrot.lane.b32.xlu0 %v2024, 64
  %v2043 = vpop.permute.xlu0 %2042
  %v2060 = vunpack.c.l.b16 %v2025
  %v2061 = vunpack.c.h.b16 %v2025
  %v2062 = vunpack.c.l.b16 %v2026
  %v2063 = vunpack.c.l.b16 %v2027
  %v2064 = vunpack.c.h.b16 %v2027
  %v2065 = vunpack.c.l.b16 %v2028
  %v2066 = vunpack.c.l.b16 %v2029
  %v2067 = vunpack.c.h.b16 %v2029
  %v2068 = vunpack.c.l.b16 %v2030
  %v2069 = vunpack.c.l.b16 %v2031
  %v2070 = vunpack.c.h.b16 %v2031
  %v2071 = vunpack.c.l.b16 %v2032
  %v2072 = vunpack.c.l.b16 %v2033
  %v2073 = vunpack.c.h.b16 %v2033
  %v2074 = vunpack.c.l.b16 %v2034
  %v2075 = vunpack.c.l.b16 %v2035
  %v2076 = vunpack.c.h.b16 %v2035
  %v2077 = vunpack.c.l.b16 %v2036
  %v2078 = vunpack.c.l.b16 %v2037
  %v2079 = vunpack.c.h.b16 %v2037
  %v2080 = vunpack.c.l.b16 %v2038
  %v2081 = vunpack.c.l.b16 %v2039
  %v2082 = vunpack.c.h.b16 %v2039
  %v2083 = vunpack.c.l.b16 %v2040
  %v2084 = vpack.c.b16 %v2063, %v2060
  %v2085 = vpack.c.b16 %v2064, %v2061
  %v2086 = vpack.c.b16 %v2065, %v2062
  %v2087 = vpack.c.b16 %v2069, %v2066
  %v2088 = vpack.c.b16 %v2070, %v2067
  %v2089 = vpack.c.b16 %v2071, %v2068
  %v2090 = vpack.c.b16 %v2075, %v2072
  %v2091 = vpack.c.b16 %v2076, %v2073
  %v2092 = vpack.c.b16 %v2077, %v2074
  %v2093 = vpack.c.b16 %v2081, %v2078
  %v2094 = vpack.c.b16 %v2082, %v2079
  %v2095 = vpack.c.b16 %v2083, %v2080
  %v2109 = vsel %vm340, %v2043, 0
  %2111 = vmatprep.subr.bf16.mxu0 %v2085
  %2112 = vmatpush1.bf16.msra.mxu0 %v2084
  %2113 = vmatprep.subr.bf16.mxu0 %v2088
  %2114 = vmatpush1.bf16.msra.mxu0 %v2087
  %2115 = vmatprep.subr.bf16.mxu0 %v2091
  %2116 = vmatpush1.bf16.msra.mxu0 %v2090
  %2117 = vmatprep.subr.bf16.mxu0 %v2094
  %2118 = vmatpush1.bf16.msra.mxu0 %v2093
  %2119 = vmatprep.subr.bf16.mxu0 0
  %2120 = vmatpush1.bf16.msra.mxu0 0
  %2121 = vmatprep.subr.bf16.mxu0 0
  %2122 = vmatpush1.bf16.msra.mxu0 0
  %2123 = vmatprep.subr.bf16.mxu0 0
  %2124 = vmatpush1.bf16.msra.mxu0 0
  %2125 = vmatprep.subr.bf16.mxu0 0
  %2126 = vmatpush1.bf16.msra.mxu0 0
  %2127 = vmatprep.subr.bf16.mxu0 0
  %2128 = vmatpush1.bf16.msra.mxu0 0
  %2129 = vmatprep.subr.bf16.mxu0 0
  %2130 = vmatpush1.bf16.msra.mxu0 0
  %2131 = vmatprep.subr.bf16.mxu0 0
  %2132 = vmatpush1.bf16.msra.mxu0 0
  %2133 = vmatprep.subr.bf16.mxu0 0
  %2134 = vmatpush1.bf16.msra.mxu0 0
  %2135 = vmatprep.subr.bf16.mxu0 0
  %2136 = vmatpush1.bf16.msra.mxu0 0
  %2137 = vmatprep.subr.bf16.mxu0 0
  %2138 = vmatpush1.bf16.msra.mxu0 0
  %2139 = vmatprep.subr.bf16.mxu0 0
  %2140 = vmatpush1.bf16.msra.mxu0 0
  %2141 = vmatprep.subr.bf16.mxu0 0
  %2142 = vmatpush1.bf16.msra.mxu0 0
  %2143 = vmatprep.mubr.bf16.mxu0 0
  %2144 = vmatmul.mubr.bf16.gmra.mrb[0].mxu0 %v2109
  %v2145 = vpop.f32.mrb[0].mxu0
  %v2146 = vadd.f32 0.0, %v2145
  %v2147 = vpop.f32.mrb[0].mxu0
  %v2148 = vadd.f32 0.0, %v2147
  %v2149 = vpop.f32.mrb[0].mxu0
  %v2150 = vpop.f32.mrb[0].mxu0
  %2151 = vdwg.mxu0
  %2152 = vmatprep.subr.bf16.mxu0 0
  %2153 = vmatpush1.bf16.msra.mxu0 %v2086
  %2154 = vmatprep.subr.bf16.mxu0 0
  %2155 = vmatpush1.bf16.msra.mxu0 %v2089
  %2156 = vmatprep.subr.bf16.mxu0 0
  %2157 = vmatpush1.bf16.msra.mxu0 %v2092
  %2158 = vmatprep.subr.bf16.mxu0 0
  %2159 = vmatpush1.bf16.msra.mxu0 %v2095
  %2160 = vmatprep.subr.bf16.mxu0 0
  %2161 = vmatpush1.bf16.msra.mxu0 0
  %2162 = vmatprep.subr.bf16.mxu0 0
  %2163 = vmatpush1.bf16.msra.mxu0 0
  %2164 = vmatprep.subr.bf16.mxu0 0
  %2165 = vmatpush1.bf16.msra.mxu0 0
  %2166 = vmatprep.subr.bf16.mxu0 0
  %2167 = vmatpush1.bf16.msra.mxu0 0
  %2168 = vmatprep.subr.bf16.mxu0 0
  %2169 = vmatpush1.bf16.msra.mxu0 0
  %2170 = vmatprep.subr.bf16.mxu0 0
  %2171 = vmatpush1.bf16.msra.mxu0 0
  %2172 = vmatprep.subr.bf16.mxu0 0
  %2173 = vmatpush1.bf16.msra.mxu0 0
  %2174 = vmatprep.subr.bf16.mxu0 0
  %2175 = vmatpush1.bf16.msra.mxu0 0
  %2176 = vmatprep.subr.bf16.mxu0 0
  %2177 = vmatpush1.bf16.msra.mxu0 0
  %2178 = vmatprep.subr.bf16.mxu0 0
  %2179 = vmatpush1.bf16.msra.mxu0 0
  %2180 = vmatprep.subr.bf16.mxu0 0
  %2181 = vmatpush1.bf16.msra.mxu0 0
  %2182 = vmatprep.subr.bf16.mxu0 0
  %2183 = vmatpush1.bf16.msra.mxu0 0
  %2184 = vmatprep.mubr.bf16.mxu0 0
  %2185 = vmatmul.mubr.bf16.gmra.mrb[0].mxu0 %v2109
  %v2186 = vpop.f32.mrb[0].mxu0
  %v2187 = vadd.f32 0.0, %v2186
  %v2188 = vpop.f32.mrb[0].mxu0
  %v2189 = vpop.f32.mrb[0].mxu0
  %v2190 = vpop.f32.mrb[0].mxu0
  %2191 = vdwg.mxu0
  %v2192 = vld [vmem:[%s7] sm:$0xff]
  %v2193 = vadd.f32 %v2187, %v2192
  %v2194 = vsel %vm340, %v2193, -inf
  %2195 = vmax.xlane.f32.xlu0 %v2194
  %v2196 = vpop.xlane.xlu0 %2195
  %v2197 = vsub.f32 %v2193, %v2196
  %v2198 = vmul.f32 %v2197, 1.442695
  %v2199 = vpow.pop %v2198
  %v2200 = vsel %vm340, %v2199, 0.0
  %2201 = vadd.xlane.f32.xlu0 %v2200
  %v2202 = vpop.xlane.xlu0 %2201
  %v2203 = vrcp.pop %v2202
  %v2204 = vmul.f32 %v2199, %v2203
  %v2205 = vpack.c.bf16 %v2204, %v2204
  %v2206 = vld [vmem:[%s4] sm:$0xf]
  %v2207 = vld [vmem:[%s4 + $0x4] sm:$0xf]
  %v2208 = vld [vmem:[%s4 + $0x8] sm:$0xf]
  %v2209 = vld [vmem:[%s4 + $0xc] sm:$0xf]
  %v2210 = vld [vmem:[%s4 + $0x10] sm:$0xf]
  %v2211 = vld [vmem:[%s4 + $0x14] sm:$0xf]
  %v2212 = vld [vmem:[%s4 + $0x18] sm:$0xf]
  %v2213 = vld [vmem:[%s4 + $0x1c] sm:$0xf]
  %v2222 = vunpack.c.l.b16 %v2206
  %v2223 = vunpack.c.l.b16 %v2207
  %v2224 = vunpack.c.l.b16 %v2208
  %v2225 = vunpack.c.l.b16 %v2209
  %v2226 = vunpack.c.l.b16 %v2210
  %v2227 = vunpack.c.l.b16 %v2211
  %v2228 = vunpack.c.l.b16 %v2212
  %v2229 = vunpack.c.l.b16 %v2213
  %v2230 = vpack.c.b16 %v2223, %v2222
  %v2231 = vpack.c.b16 %v2225, %v2224
  %v2232 = vpack.c.b16 %v2227, %v2226
  %v2233 = vpack.c.b16 %v2229, %v2228
  %2239 = vrot.lane.b32.xlu0 %v2187, 64
  %v2240 = vpop.permute.xlu0 %2239
  %v2243 = vsel %vm340, %v2205, 0
  %2245 = vmatprep.subr.bf16.mxu0 0
  %2246 = vmatpush1.bf16.msra.mxu0 %v2230
  %2247 = vmatprep.subr.bf16.mxu0 0
  %2248 = vmatpush1.bf16.msra.mxu0 %v2231
  %2249 = vmatprep.subr.bf16.mxu0 0
  %2250 = vmatpush1.bf16.msra.mxu0 %v2232
  %2251 = vmatprep.subr.bf16.mxu0 0
  %2252 = vmatpush1.bf16.msra.mxu0 %v2233
  %2253 = vmatprep.subr.bf16.mxu0 0
  %2254 = vmatpush1.bf16.msra.mxu0 0
  %2255 = vmatprep.subr.bf16.mxu0 0
  %2256 = vmatpush1.bf16.msra.mxu0 0
  %2257 = vmatprep.subr.bf16.mxu0 0
  %2258 = vmatpush1.bf16.msra.mxu0 0
  %2259 = vmatprep.subr.bf16.mxu0 0
  %2260 = vmatpush1.bf16.msra.mxu0 0
  %2261 = vmatprep.subr.bf16.mxu0 0
  %2262 = vmatpush1.bf16.msra.mxu0 0
  %2263 = vmatprep.subr.bf16.mxu0 0
  %2264 = vmatpush1.bf16.msra.mxu0 0
  %2265 = vmatprep.subr.bf16.mxu0 0
  %2266 = vmatpush1.bf16.msra.mxu0 0
  %2267 = vmatprep.subr.bf16.mxu0 0
  %2268 = vmatpush1.bf16.msra.mxu0 0
  %2269 = vmatprep.subr.bf16.mxu0 0
  %2270 = vmatpush1.bf16.msra.mxu0 0
  %2271 = vmatprep.subr.bf16.mxu0 0
  %2272 = vmatpush1.bf16.msra.mxu0 0
  %2273 = vmatprep.subr.bf16.mxu0 0
  %2274 = vmatpush1.bf16.msra.mxu0 0
  %2275 = vmatprep.subr.bf16.mxu0 0
  %2276 = vmatpush1.bf16.msra.mxu0 0
  %2277 = vmatprep.mubr.bf16.mxu0 0
  %2278 = vmatmul.mubr.bf16.gmra.mrb[0].mxu0 %v2243
  %v2279 = vpop.f32.mrb[0].mxu0
  %v2280 = vadd.f32 %v2240, %v2279
  %v2281 = vpop.f32.mrb[0].mxu0
  %v2282 = vpop.f32.mrb[0].mxu0
  %v2283 = vpop.f32.mrb[0].mxu0
  %2284 = vdwg.mxu0
  %v2285 = vtanh.pop %v2280
  %s2286 = scalar_lea.vmem %s10, 24
  %2287 = vst.msk [vmem:[%s2286] sm:$0xff] %vm340, %v2285
  %v2288 = vld [vmem:[%s6] sm:$0xf]
  %v2289 = vld [vmem:[%s6 + $0x4] sm:$0xf]
  %v2290 = vld [vmem:[%s6 + $0x8] sm:$0xf]
  %v2291 = vld [vmem:[%s6 + $0xc] sm:$0xf]
  %v2292 = vld [vmem:[%s6 + $0x10] sm:$0xf]
  %v2293 = vld [vmem:[%s6 + $0x14] sm:$0xf]
  %v2294 = vld [vmem:[%s6 + $0x18] sm:$0xf]
  %v2295 = vld [vmem:[%s6 + $0x1c] sm:$0xf]
  %v2304 = vunpack.c.l.b16 %v2288
  %v2305 = vunpack.c.l.b16 %v2289
  %v2306 = vunpack.c.l.b16 %v2290
  %v2307 = vunpack.c.l.b16 %v2291
  %v2308 = vunpack.c.l.b16 %v2292
  %v2309 = vunpack.c.l.b16 %v2293
  %v2310 = vunpack.c.l.b16 %v2294
  %v2311 = vunpack.c.l.b16 %v2295
  %v2312 = vpack.c.b16 %v2305, %v2304
  %v2313 = vpack.c.b16 %v2307, %v2306
  %v2314 = vpack.c.b16 %v2309, %v2308
  %v2315 = vpack.c.b16 %v2311, %v2310
  %2320 = vmatprep.subr.bf16.mxu0 0
  %2321 = vmatpush1.bf16.msra.mxu0 %v2312
  %2322 = vmatprep.subr.bf16.mxu0 0
  %2323 = vmatpush1.bf16.msra.mxu0 %v2313
  %2324 = vmatprep.subr.bf16.mxu0 0
  %2325 = vmatpush1.bf16.msra.mxu0 %v2314
  %2326 = vmatprep.subr.bf16.mxu0 0
  %2327 = vmatpush1.bf16.msra.mxu0 %v2315
  %2328 = vmatprep.subr.bf16.mxu0 0
  %2329 = vmatpush1.bf16.msra.mxu0 0
  %2330 = vmatprep.subr.bf16.mxu0 0
  %2331 = vmatpush1.bf16.msra.mxu0 0
  %2332 = vmatprep.subr.bf16.mxu0 0
  %2333 = vmatpush1.bf16.msra.mxu0 0
  %2334 = vmatprep.subr.bf16.mxu0 0
  %2335 = vmatpush1.bf16.msra.mxu0 0
  %2336 = vmatprep.subr.bf16.mxu0 0
  %2337 = vmatpush1.bf16.msra.mxu0 0
  %2338 = vmatprep.subr.bf16.mxu0 0
  %2339 = vmatpush1.bf16.msra.mxu0 0
  %2340 = vmatprep.subr.bf16.mxu0 0
  %2341 = vmatpush1.bf16.msra.mxu0 0
  %2342 = vmatprep.subr.bf16.mxu0 0
  %2343 = vmatpush1.bf16.msra.mxu0 0
  %2344 = vmatprep.subr.bf16.mxu0 0
  %2345 = vmatpush1.bf16.msra.mxu0 0
  %2346 = vmatprep.subr.bf16.mxu0 0
  %2347 = vmatpush1.bf16.msra.mxu0 0
  %2348 = vmatprep.subr.bf16.mxu0 0
  %2349 = vmatpush1.bf16.msra.mxu0 0
  %2350 = vmatprep.subr.bf16.mxu0 0
  %2351 = vmatpush1.bf16.msra.mxu0 0
  %2352 = vmatprep.mubr.bf16.mxu0 0
  %2353 = vmatmul.mubr.bf16.gmra.mrb[0].mxu0 %v2243
  %v2354 = vpop.f32.mrb[0].mxu0
  %v2355 = vadd.f32 0.0, %v2354
  %v2356 = vpop.f32.mrb[0].mxu0
  %v2357 = vpop.f32.mrb[0].mxu0
  %v2358 = vpop.f32.mrb[0].mxu0
  %2359 = vdwg.mxu0
  %s2360 = scalar_lea.vmem %s11, 24
  %2361 = vst.msk [vmem:[%s2360] sm:$0xff] %vm762, %v2355
  %v2362 = vpack.c.bf16 %v2285, %v2285
  %v2363 = vld [vmem:[%s5] sm:$0xf]
  %v2364 = vld [vmem:[%s5 + $0x4] sm:$0xf]
  %v2365 = vld [vmem:[%s5 + $0x8] sm:$0xf]
  %v2366 = vld [vmem:[%s5 + $0xc] sm:$0xf]
  %v2367 = vld [vmem:[%s5 + $0x10] sm:$0xf]
  %v2368 = vld [vmem:[%s5 + $0x14] sm:$0xf]
  %v2369 = vld [vmem:[%s5 + $0x18] sm:$0xf]
  %v2370 = vld [vmem:[%s5 + $0x1c] sm:$0xf]
  %v2371 = vld [vmem:[%s7] sm:$0xff]
  %v2380 = vunpack.c.l.b16 %v2363
  %v2381 = vunpack.c.l.b16 %v2364
  %v2382 = vunpack.c.l.b16 %v2365
  %v2383 = vunpack.c.l.b16 %v2366
  %v2384 = vunpack.c.l.b16 %v2367
  %v2385 = vunpack.c.l.b16 %v2368
  %v2386 = vunpack.c.l.b16 %v2369
  %v2387 = vunpack.c.l.b16 %v2370
  %v2388 = vpack.c.b16 %v2381, %v2380
  %v2389 = vpack.c.b16 %v2383, %v2382
  %v2390 = vpack.c.b16 %v2385, %v2384
  %v2391 = vpack.c.b16 %v2387, %v2386
  %v2397 = vsel %vm340, %v2362, 0
  %2399 = vmatprep.subr.bf16.mxu0 0
  %2400 = vmatpush1.bf16.msra.mxu0 %v2388
  %2401 = vmatprep.subr.bf16.mxu0 0
  %2402 = vmatpush1.bf16.msra.mxu0 %v2389
  %2403 = vmatprep.subr.bf16.mxu0 0
  %2404 = vmatpush1.bf16.msra.mxu0 %v2390
  %2405 = vmatprep.subr.bf16.mxu0 0
  %2406 = vmatpush1.bf16.msra.mxu0 %v2391
  %2407 = vmatprep.subr.bf16.mxu0 0
  %2408 = vmatpush1.bf16.msra.mxu0 0
  %2409 = vmatprep.subr.bf16.mxu0 0
  %2410 = vmatpush1.bf16.msra.mxu0 0
  %2411 = vmatprep.subr.bf16.mxu0 0
  %2412 = vmatpush1.bf16.msra.mxu0 0
  %2413 = vmatprep.subr.bf16.mxu0 0
  %2414 = vmatpush1.bf16.msra.mxu0 0
  %2415 = vmatprep.subr.bf16.mxu0 0
  %2416 = vmatpush1.bf16.msra.mxu0 0
  %2417 = vmatprep.subr.bf16.mxu0 0
  %2418 = vmatpush1.bf16.msra.mxu0 0
  %2419 = vmatprep.subr.bf16.mxu0 0
  %2420 = vmatpush1.bf16.msra.mxu0 0
  %2421 = vmatprep.subr.bf16.mxu0 0
  %2422 = vmatpush1.bf16.msra.mxu0 0
  %2423 = vmatprep.subr.bf16.mxu0 0
  %2424 = vmatpush1.bf16.msra.mxu0 0
  %2425 = vmatprep.subr.bf16.mxu0 0
  %2426 = vmatpush1.bf16.msra.mxu0 0
  %2427 = vmatprep.subr.bf16.mxu0 0
  %2428 = vmatpush1.bf16.msra.mxu0 0
  %2429 = vmatprep.subr.bf16.mxu0 0
  %2430 = vmatpush1.bf16.msra.mxu0 0
  %2431 = vmatprep.mubr.bf16.mxu0 0
  %2432 = vmatmul.mubr.bf16.gmra.mrb[0].mxu0 %v2397
  %v2433 = vpop.f32.mrb[0].mxu0
  %v2434 = vadd.f32 %v2371, %v2433
  %v2435 = vpop.f32.mrb[0].mxu0
  %v2436 = vpop.f32.mrb[0].mxu0
  %v2437 = vpop.f32.mrb[0].mxu0
  %2438 = vdwg.mxu0
  %v2439 = vsel %vm340, %v2434, -inf
  %2440 = vmax.xlane.f32.xlu0 %v2439
  %v2441 = vpop.xlane.xlu0 %2440
  %v2442 = vsub.f32 %v2434, %v2441
  %v2443 = vmul.f32 %v2442, 1.442695
  %v2444 = vpow.pop %v2443
  %v2445 = vsel %vm340, %v2444, 0.0
  %2446 = vadd.xlane.f32.xlu0 %v2445
  %v2447 = vpop.xlane.xlu0 %2446
  %v2448 = vrcp.pop %v2447
  %v2449 = vmul.f32 %v2444, %v2448
  %v2450 = vpack.c.bf16 %v2449, %v2449
  %v2451 = vld [vmem:[%s6] sm:$0xf]
  %v2452 = vld [vmem:[%s6 + $0x4] sm:$0xf]
  %v2453 = vld [vmem:[%s6 + $0x8] sm:$0xf]
  %v2454 = vld [vmem:[%s6 + $0xc] sm:$0xf]
  %v2455 = vld [vmem:[%s6 + $0x10] sm:$0xf]
  %v2456 = vld [vmem:[%s6 + $0x14] sm:$0xf]
  %v2457 = vld [vmem:[%s6 + $0x18] sm:$0xf]
  %v2458 = vld [vmem:[%s6 + $0x1c] sm:$0xf]
  %v2467 = vunpack.c.l.b16 %v2451
  %v2468 = vunpack.c.l.b16 %v2452
  %v2469 = vunpack.c.l.b16 %v2453
  %v2470 = vunpack.c.l.b16 %v2454
  %v2471 = vunpack.c.l.b16 %v2455
  %v2472 = vunpack.c.l.b16 %v2456
  %v2473 = vunpack.c.l.b16 %v2457
  %v2474 = vunpack.c.l.b16 %v2458
  %v2475 = vpack.c.b16 %v2468, %v2467
  %v2476 = vpack.c.b16 %v2470, %v2469
  %v2477 = vpack.c.b16 %v2472, %v2471
  %v2478 = vpack.c.b16 %v2474, %v2473
  %v2484 = vsel %vm340, %v2450, 0
  %2486 = vmatprep.subr.bf16.mxu0 0
  %2487 = vmatpush1.bf16.msra.mxu0 %v2475
  %2488 = vmatprep.subr.bf16.mxu0 0
  %2489 = vmatpush1.bf16.msra.mxu0 %v2476
  %2490 = vmatprep.subr.bf16.mxu0 0
  %2491 = vmatpush1.bf16.msra.mxu0 %v2477
  %2492 = vmatprep.subr.bf16.mxu0 0
  %2493 = vmatpush1.bf16.msra.mxu0 %v2478
  %2494 = vmatprep.subr.bf16.mxu0 0
  %2495 = vmatpush1.bf16.msra.mxu0 0
  %2496 = vmatprep.subr.bf16.mxu0 0
  %2497 = vmatpush1.bf16.msra.mxu0 0
  %2498 = vmatprep.subr.bf16.mxu0 0
  %2499 = vmatpush1.bf16.msra.mxu0 0
  %2500 = vmatprep.subr.bf16.mxu0 0
  %2501 = vmatpush1.bf16.msra.mxu0 0
  %2502 = vmatprep.subr.bf16.mxu0 0
  %2503 = vmatpush1.bf16.msra.mxu0 0
  %2504 = vmatprep.subr.bf16.mxu0 0
  %2505 = vmatpush1.bf16.msra.mxu0 0
  %2506 = vmatprep.subr.bf16.mxu0 0
  %2507 = vmatpush1.bf16.msra.mxu0 0
  %2508 = vmatprep.subr.bf16.mxu0 0
  %2509 = vmatpush1.bf16.msra.mxu0 0
  %2510 = vmatprep.subr.bf16.mxu0 0
  %2511 = vmatpush1.bf16.msra.mxu0 0
  %2512 = vmatprep.subr.bf16.mxu0 0
  %2513 = vmatpush1.bf16.msra.mxu0 0
  %2514 = vmatprep.subr.bf16.mxu0 0
  %2515 = vmatpush1.bf16.msra.mxu0 0
  %2516 = vmatprep.subr.bf16.mxu0 0
  %2517 = vmatpush1.bf16.msra.mxu0 0
  %2518 = vmatprep.mubr.bf16.mxu0 0
  %2519 = vmatmul.mubr.bf16.gmra.mrb[0].mxu0 %v2484
  %v2520 = vpop.f32.mrb[0].mxu0
  %v2521 = vadd.f32 0.0, %v2520
  %v2522 = vpop.f32.mrb[0].mxu0
  %v2523 = vpop.f32.mrb[0].mxu0
  %v2524 = vpop.f32.mrb[0].mxu0
  %2525 = vdwg.mxu0
  %s2526 = scalar_lea.vmem %s12, 24
  %2527 = vst.msk [vmem:[%s2526] sm:$0xff] %vm762, %v2521
  %v2528 = vld [vmem:[#allocation2 + $0x40] sm:$0xff]
  %v2529 = vld [vmem:[#allocation2 + $0x48] sm:$0xff]
  %v2530 = vadd.f32 %v2528, %v2146
  %v2531 = vadd.f32 %v2529, %v2148
  %v2532 = vtanh.pop %v2530
  %v2533 = vtanh.pop %v2531
  %v2534 = vxor.u32 %v2530, 2147483648
  %v2535 = vxor.u32 %v2531, 2147483648
  %v2536 = vmul.f32 %v2534, 1.442695
  %v2537 = vpow.pop %v2536
  %v2538 = vmul.f32 %v2535, 1.442695
  %v2539 = vpow.pop %v2538
  %v2540 = vadd.f32 %v2537, 1.0
  %v2541 = vadd.f32 %v2539, 1.0
  %v2542 = vrcp.pop %v2540
  %v2543 = vmul.f32 1.0, %v2542
  %v2544 = vrcp.pop %v2541
  %v2545 = vmul.f32 1.0, %v2544
  %v2546 = vsel %vm396, %v2532, %v2543
  %v2547 = vsel %vm397, %v2533, %v2545
  %v2548 = vmul.f32 %v2546, %v2021
  %v2549 = vmul.f32 %v2546, %v2547
  %2551 = vrot.lane.b32.xlu0 %v2549, 64
  %v2552 = vpop.permute.xlu0 %2551
  %v2554 = vadd.f32 %v2548, %v2552
  %v2555 = vtanh.pop %v2554
  %v2556 = vmul.f32 %v2547, %v2555
  %v2557 = vpack.c.bf16 %v2556, %v2556
  %v2558 = vld [vmem:[%s3] sm:$0xff]
  %v2559 = vld [vmem:[%s3 + $0x8] sm:$0xf]
  %v2560 = vld [vmem:[%s3 + $0xc] sm:$0xff]
  %v2561 = vld [vmem:[%s3 + $0x14] sm:$0xf]
  %v2562 = vld [vmem:[%s3 + $0x18] sm:$0xff]
  %v2563 = vld [vmem:[%s3 + $0x20] sm:$0xf]
  %v2564 = vld [vmem:[%s3 + $0x24] sm:$0xff]
  %v2565 = vld [vmem:[%s3 + $0x2c] sm:$0xf]
  %v2566 = vld [vmem:[%s3 + $0x30] sm:$0xff]
  %v2567 = vld [vmem:[%s3 + $0x38] sm:$0xf]
  %v2568 = vld [vmem:[%s3 + $0x3c] sm:$0xff]
  %v2569 = vld [vmem:[%s3 + $0x44] sm:$0xf]
  %v2570 = vld [vmem:[%s3 + $0x48] sm:$0xff]
  %v2571 = vld [vmem:[%s3 + $0x50] sm:$0xf]
  %v2572 = vld [vmem:[%s3 + $0x54] sm:$0xff]
  %v2573 = vld [vmem:[%s3 + $0x5c] sm:$0xf]
  %2575 = vrot.lane.b32.xlu0 %v2557, 64
  %v2576 = vpop.permute.xlu0 %2575
  %v2593 = vunpack.c.l.b16 %v2558
  %v2594 = vunpack.c.h.b16 %v2558
  %v2595 = vunpack.c.l.b16 %v2559
  %v2596 = vunpack.c.l.b16 %v2560
  %v2597 = vunpack.c.h.b16 %v2560
  %v2598 = vunpack.c.l.b16 %v2561
  %v2599 = vunpack.c.l.b16 %v2562
  %v2600 = vunpack.c.h.b16 %v2562
  %v2601 = vunpack.c.l.b16 %v2563
  %v2602 = vunpack.c.l.b16 %v2564
  %v2603 = vunpack.c.h.b16 %v2564
  %v2604 = vunpack.c.l.b16 %v2565
  %v2605 = vunpack.c.l.b16 %v2566
  %v2606 = vunpack.c.h.b16 %v2566
  %v2607 = vunpack.c.l.b16 %v2567
  %v2608 = vunpack.c.l.b16 %v2568
  %v2609 = vunpack.c.h.b16 %v2568
  %v2610 = vunpack.c.l.b16 %v2569
  %v2611 = vunpack.c.l.b16 %v2570
  %v2612 = vunpack.c.h.b16 %v2570
  %v2613 = vunpack.c.l.b16 %v2571
  %v2614 = vunpack.c.l.b16 %v2572
  %v2615 = vunpack.c.h.b16 %v2572
  %v2616 = vunpack.c.l.b16 %v2573
  %v2617 = vpack.c.b16 %v2596, %v2593
  %v2618 = vpack.c.b16 %v2597, %v2594
  %v2619 = vpack.c.b16 %v2598, %v2595
  %v2620 = vpack.c.b16 %v2602, %v2599
  %v2621 = vpack.c.b16 %v2603, %v2600
  %v2622 = vpack.c.b16 %v2604, %v2601
  %v2623 = vpack.c.b16 %v2608, %v2605
  %v2624 = vpack.c.b16 %v2609, %v2606
  %v2625 = vpack.c.b16 %v2610, %v2607
  %v2626 = vpack.c.b16 %v2614, %v2611
  %v2627 = vpack.c.b16 %v2615, %v2612
  %v2628 = vpack.c.b16 %v2616, %v2613
  %v2642 = vsel %vm340, %v2576, 0
  %2644 = vmatprep.subr.bf16.mxu0 %v2618
  %2645 = vmatpush1.bf16.msra.mxu0 %v2617
  %2646 = vmatprep.subr.bf16.mxu0 %v2621
  %2647 = vmatpush1.bf16.msra.mxu0 %v2620
  %2648 = vmatprep.subr.bf16.mxu0 %v2624
  %2649 = vmatpush1.bf16.msra.mxu0 %v2623
  %2650 = vmatprep.subr.bf16.mxu0 %v2627
  %2651 = vmatpush1.bf16.msra.mxu0 %v2626
  %2652 = vmatprep.subr.bf16.mxu0 0
  %2653 = vmatpush1.bf16.msra.mxu0 0
  %2654 = vmatprep.subr.bf16.mxu0 0
  %2655 = vmatpush1.bf16.msra.mxu0 0
  %2656 = vmatprep.subr.bf16.mxu0 0
  %2657 = vmatpush1.bf16.msra.mxu0 0
  %2658 = vmatprep.subr.bf16.mxu0 0
  %2659 = vmatpush1.bf16.msra.mxu0 0
  %2660 = vmatprep.subr.bf16.mxu0 0
  %2661 = vmatpush1.bf16.msra.mxu0 0
  %2662 = vmatprep.subr.bf16.mxu0 0
  %2663 = vmatpush1.bf16.msra.mxu0 0
  %2664 = vmatprep.subr.bf16.mxu0 0
  %2665 = vmatpush1.bf16.msra.mxu0 0
  %2666 = vmatprep.subr.bf16.mxu0 0
  %2667 = vmatpush1.bf16.msra.mxu0 0
  %2668 = vmatprep.subr.bf16.mxu0 0
  %2669 = vmatpush1.bf16.msra.mxu0 0
  %2670 = vmatprep.subr.bf16.mxu0 0
  %2671 = vmatpush1.bf16.msra.mxu0 0
  %2672 = vmatprep.subr.bf16.mxu0 0
  %2673 = vmatpush1.bf16.msra.mxu0 0
  %2674 = vmatprep.subr.bf16.mxu0 0
  %2675 = vmatpush1.bf16.msra.mxu0 0
  %2676 = vmatprep.mubr.bf16.mxu0 0
  %2677 = vmatmul.mubr.bf16.gmra.mrb[0].mxu0 %v2642
  %v2678 = vpop.f32.mrb[0].mxu0
  %v2679 = vadd.f32 0.0, %v2678
  %v2680 = vpop.f32.mrb[0].mxu0
  %v2681 = vadd.f32 0.0, %v2680
  %v2682 = vpop.f32.mrb[0].mxu0
  %v2683 = vpop.f32.mrb[0].mxu0
  %2684 = vdwg.mxu0
  %2685 = vmatprep.subr.bf16.mxu0 0
  %2686 = vmatpush1.bf16.msra.mxu0 %v2619
  %2687 = vmatprep.subr.bf16.mxu0 0
  %2688 = vmatpush1.bf16.msra.mxu0 %v2622
  %2689 = vmatprep.subr.bf16.mxu0 0
  %2690 = vmatpush1.bf16.msra.mxu0 %v2625
  %2691 = vmatprep.subr.bf16.mxu0 0
  %2692 = vmatpush1.bf16.msra.mxu0 %v2628
  %2693 = vmatprep.subr.bf16.mxu0 0
  %2694 = vmatpush1.bf16.msra.mxu0 0
  %2695 = vmatprep.subr.bf16.mxu0 0
  %2696 = vmatpush1.bf16.msra.mxu0 0
  %2697 = vmatprep.subr.bf16.mxu0 0
  %2698 = vmatpush1.bf16.msra.mxu0 0
  %2699 = vmatprep.subr.bf16.mxu0 0
  %2700 = vmatpush1.bf16.msra.mxu0 0
  %2701 = vmatprep.subr.bf16.mxu0 0
  %2702 = vmatpush1.bf16.msra.mxu0 0
  %2703 = vmatprep.subr.bf16.mxu0 0
  %2704 = vmatpush1.bf16.msra.mxu0 0
  %2705 = vmatprep.subr.bf16.mxu0 0
  %2706 = vmatpush1.bf16.msra.mxu0 0
  %2707 = vmatprep.subr.bf16.mxu0 0
  %2708 = vmatpush1.bf16.msra.mxu0 0
  %2709 = vmatprep.subr.bf16.mxu0 0
  %2710 = vmatpush1.bf16.msra.mxu0 0
  %2711 = vmatprep.subr.bf16.mxu0 0
  %2712 = vmatpush1.bf16.msra.mxu0 0
  %2713 = vmatprep.subr.bf16.mxu0 0
  %2714 = vmatpush1.bf16.msra.mxu0 0
  %2715 = vmatprep.subr.bf16.mxu0 0
  %2716 = vmatpush1.bf16.msra.mxu0 0
  %2717 = vmatprep.mubr.bf16.mxu0 0
  %2718 = vmatmul.mubr.bf16.gmra.mrb[0].mxu0 %v2642
  %v2719 = vpop.f32.mrb[0].mxu0
  %v2720 = vadd.f32 0.0, %v2719
  %v2721 = vpop.f32.mrb[0].mxu0
  %v2722 = vpop.f32.mrb[0].mxu0
  %v2723 = vpop.f32.mrb[0].mxu0
  %2724 = vdwg.mxu0
  %v2725 = vld [vmem:[%s7] sm:$0xff]
  %v2726 = vadd.f32 %v2720, %v2725
  %v2727 = vsel %vm340, %v2726, -inf
  %2728 = vmax.xlane.f32.xlu0 %v2727
  %v2729 = vpop.xlane.xlu0 %2728
  %v2730 = vsub.f32 %v2726, %v2729
  %v2731 = vmul.f32 %v2730, 1.442695
  %v2732 = vpow.pop %v2731
  %v2733 = vsel %vm340, %v2732, 0.0
  %2734 = vadd.xlane.f32.xlu0 %v2733
  %v2735 = vpop.xlane.xlu0 %2734
  %v2736 = vrcp.pop %v2735
  %v2737 = vmul.f32 %v2732, %v2736
  %v2738 = vpack.c.bf16 %v2737, %v2737
  %v2739 = vld [vmem:[%s4] sm:$0xf]
  %v2740 = vld [vmem:[%s4 + $0x4] sm:$0xf]
  %v2741 = vld [vmem:[%s4 + $0x8] sm:$0xf]
  %v2742 = vld [vmem:[%s4 + $0xc] sm:$0xf]
  %v2743 = vld [vmem:[%s4 + $0x10] sm:$0xf]
  %v2744 = vld [vmem:[%s4 + $0x14] sm:$0xf]
  %v2745 = vld [vmem:[%s4 + $0x18] sm:$0xf]
  %v2746 = vld [vmem:[%s4 + $0x1c] sm:$0xf]
  %v2755 = vunpack.c.l.b16 %v2739
  %v2756 = vunpack.c.l.b16 %v2740
  %v2757 = vunpack.c.l.b16 %v2741
  %v2758 = vunpack.c.l.b16 %v2742
  %v2759 = vunpack.c.l.b16 %v2743
  %v2760 = vunpack.c.l.b16 %v2744
  %v2761 = vunpack.c.l.b16 %v2745
  %v2762 = vunpack.c.l.b16 %v2746
  %v2763 = vpack.c.b16 %v2756, %v2755
  %v2764 = vpack.c.b16 %v2758, %v2757
  %v2765 = vpack.c.b16 %v2760, %v2759
  %v2766 = vpack.c.b16 %v2762, %v2761
  %2772 = vrot.lane.b32.xlu0 %v2720, 64
  %v2773 = vpop.permute.xlu0 %2772
  %v2776 = vsel %vm340, %v2738, 0
  %2778 = vmatprep.subr.bf16.mxu0 0
  %2779 = vmatpush1.bf16.msra.mxu0 %v2763
  %2780 = vmatprep.subr.bf16.mxu0 0
  %2781 = vmatpush1.bf16.msra.mxu0 %v2764
  %2782 = vmatprep.subr.bf16.mxu0 0
  %2783 = vmatpush1.bf16.msra.mxu0 %v2765
  %2784 = vmatprep.subr.bf16.mxu0 0
  %2785 = vmatpush1.bf16.msra.mxu0 %v2766
  %2786 = vmatprep.subr.bf16.mxu0 0
  %2787 = vmatpush1.bf16.msra.mxu0 0
  %2788 = vmatprep.subr.bf16.mxu0 0
  %2789 = vmatpush1.bf16.msra.mxu0 0
  %2790 = vmatprep.subr.bf16.mxu0 0
  %2791 = vmatpush1.bf16.msra.mxu0 0
  %2792 = vmatprep.subr.bf16.mxu0 0
  %2793 = vmatpush1.bf16.msra.mxu0 0
  %2794 = vmatprep.subr.bf16.mxu0 0
  %2795 = vmatpush1.bf16.msra.mxu0 0
  %2796 = vmatprep.subr.bf16.mxu0 0
  %2797 = vmatpush1.bf16.msra.mxu0 0
  %2798 = vmatprep.subr.bf16.mxu0 0
  %2799 = vmatpush1.bf16.msra.mxu0 0
  %2800 = vmatprep.subr.bf16.mxu0 0
  %2801 = vmatpush1.bf16.msra.mxu0 0
  %2802 = vmatprep.subr.bf16.mxu0 0
  %2803 = vmatpush1.bf16.msra.mxu0 0
  %2804 = vmatprep.subr.bf16.mxu0 0
  %2805 = vmatpush1.bf16.msra.mxu0 0
  %2806 = vmatprep.subr.bf16.mxu0 0
  %2807 = vmatpush1.bf16.msra.mxu0 0
  %2808 = vmatprep.subr.bf16.mxu0 0
  %2809 = vmatpush1.bf16.msra.mxu0 0
  %2810 = vmatprep.mubr.bf16.mxu0 0
  %2811 = vmatmul.mubr.bf16.gmra.mrb[0].mxu0 %v2776
  %v2812 = vpop.f32.mrb[0].mxu0
  %v2813 = vadd.f32 %v2773, %v2812
  %v2814 = vpop.f32.mrb[0].mxu0
  %v2815 = vpop.f32.mrb[0].mxu0
  %v2816 = vpop.f32.mrb[0].mxu0
  %2817 = vdwg.mxu0
  %v2818 = vtanh.pop %v2813
  %s2819 = scalar_lea.vmem %s10, 32
  %2820 = vst.msk [vmem:[%s2819] sm:$0xff] %vm340, %v2818
  %v2821 = vld [vmem:[%s6] sm:$0xf]
  %v2822 = vld [vmem:[%s6 + $0x4] sm:$0xf]
  %v2823 = vld [vmem:[%s6 + $0x8] sm:$0xf]
  %v2824 = vld [vmem:[%s6 + $0xc] sm:$0xf]
  %v2825 = vld [vmem:[%s6 + $0x10] sm:$0xf]
  %v2826 = vld [vmem:[%s6 + $0x14] sm:$0xf]
  %v2827 = vld [vmem:[%s6 + $0x18] sm:$0xf]
  %v2828 = vld [vmem:[%s6 + $0x1c] sm:$0xf]
  %v2837 = vunpack.c.l.b16 %v2821
  %v2838 = vunpack.c.l.b16 %v2822
  %v2839 = vunpack.c.l.b16 %v2823
  %v2840 = vunpack.c.l.b16 %v2824
  %v2841 = vunpack.c.l.b16 %v2825
  %v2842 = vunpack.c.l.b16 %v2826
  %v2843 = vunpack.c.l.b16 %v2827
  %v2844 = vunpack.c.l.b16 %v2828
  %v2845 = vpack.c.b16 %v2838, %v2837
  %v2846 = vpack.c.b16 %v2840, %v2839
  %v2847 = vpack.c.b16 %v2842, %v2841
  %v2848 = vpack.c.b16 %v2844, %v2843
  %2853 = vmatprep.subr.bf16.mxu0 0
  %2854 = vmatpush1.bf16.msra.mxu0 %v2845
  %2855 = vmatprep.subr.bf16.mxu0 0
  %2856 = vmatpush1.bf16.msra.mxu0 %v2846
  %2857 = vmatprep.subr.bf16.mxu0 0
  %2858 = vmatpush1.bf16.msra.mxu0 %v2847
  %2859 = vmatprep.subr.bf16.mxu0 0
  %2860 = vmatpush1.bf16.msra.mxu0 %v2848
  %2861 = vmatprep.subr.bf16.mxu0 0
  %2862 = vmatpush1.bf16.msra.mxu0 0
  %2863 = vmatprep.subr.bf16.mxu0 0
  %2864 = vmatpush1.bf16.msra.mxu0 0
  %2865 = vmatprep.subr.bf16.mxu0 0
  %2866 = vmatpush1.bf16.msra.mxu0 0
  %2867 = vmatprep.subr.bf16.mxu0 0
  %2868 = vmatpush1.bf16.msra.mxu0 0
  %2869 = vmatprep.subr.bf16.mxu0 0
  %2870 = vmatpush1.bf16.msra.mxu0 0
  %2871 = vmatprep.subr.bf16.mxu0 0
  %2872 = vmatpush1.bf16.msra.mxu0 0
  %2873 = vmatprep.subr.bf16.mxu0 0
  %2874 = vmatpush1.bf16.msra.mxu0 0
  %2875 = vmatprep.subr.bf16.mxu0 0
  %2876 = vmatpush1.bf16.msra.mxu0 0
  %2877 = vmatprep.subr.bf16.mxu0 0
  %2878 = vmatpush1.bf16.msra.mxu0 0
  %2879 = vmatprep.subr.bf16.mxu0 0
  %2880 = vmatpush1.bf16.msra.mxu0 0
  %2881 = vmatprep.subr.bf16.mxu0 0
  %2882 = vmatpush1.bf16.msra.mxu0 0
  %2883 = vmatprep.subr.bf16.mxu0 0
  %2884 = vmatpush1.bf16.msra.mxu0 0
  %2885 = vmatprep.mubr.bf16.mxu0 0
  %2886 = vmatmul.mubr.bf16.gmra.mrb[0].mxu0 %v2776
  %v2887 = vpop.f32.mrb[0].mxu0
  %v2888 = vadd.f32 0.0, %v2887
  %v2889 = vpop.f32.mrb[0].mxu0
  %v2890 = vpop.f32.mrb[0].mxu0
  %v2891 = vpop.f32.mrb[0].mxu0
  %2892 = vdwg.mxu0
  %s2893 = scalar_lea.vmem %s11, 32
  %2894 = vst.msk [vmem:[%s2893] sm:$0xff] %vm762, %v2888
  %v2895 = vpack.c.bf16 %v2818, %v2818
  %v2896 = vld [vmem:[%s5] sm:$0xf]
  %v2897 = vld [vmem:[%s5 + $0x4] sm:$0xf]
  %v2898 = vld [vmem:[%s5 + $0x8] sm:$0xf]
  %v2899 = vld [vmem:[%s5 + $0xc] sm:$0xf]
  %v2900 = vld [vmem:[%s5 + $0x10] sm:$0xf]
  %v2901 = vld [vmem:[%s5 + $0x14] sm:$0xf]
  %v2902 = vld [vmem:[%s5 + $0x18] sm:$0xf]
  %v2903 = vld [vmem:[%s5 + $0x1c] sm:$0xf]
  %v2904 = vld [vmem:[%s7] sm:$0xff]
  %v2913 = vunpack.c.l.b16 %v2896
  %v2914 = vunpack.c.l.b16 %v2897
  %v2915 = vunpack.c.l.b16 %v2898
  %v2916 = vunpack.c.l.b16 %v2899
  %v2917 = vunpack.c.l.b16 %v2900
  %v2918 = vunpack.c.l.b16 %v2901
  %v2919 = vunpack.c.l.b16 %v2902
  %v2920 = vunpack.c.l.b16 %v2903
  %v2921 = vpack.c.b16 %v2914, %v2913
  %v2922 = vpack.c.b16 %v2916, %v2915
  %v2923 = vpack.c.b16 %v2918, %v2917
  %v2924 = vpack.c.b16 %v2920, %v2919
  %v2930 = vsel %vm340, %v2895, 0
  %2932 = vmatprep.subr.bf16.mxu0 0
  %2933 = vmatpush1.bf16.msra.mxu0 %v2921
  %2934 = vmatprep.subr.bf16.mxu0 0
  %2935 = vmatpush1.bf16.msra.mxu0 %v2922
  %2936 = vmatprep.subr.bf16.mxu0 0
  %2937 = vmatpush1.bf16.msra.mxu0 %v2923
  %2938 = vmatprep.subr.bf16.mxu0 0
  %2939 = vmatpush1.bf16.msra.mxu0 %v2924
  %2940 = vmatprep.subr.bf16.mxu0 0
  %2941 = vmatpush1.bf16.msra.mxu0 0
  %2942 = vmatprep.subr.bf16.mxu0 0
  %2943 = vmatpush1.bf16.msra.mxu0 0
  %2944 = vmatprep.subr.bf16.mxu0 0
  %2945 = vmatpush1.bf16.msra.mxu0 0
  %2946 = vmatprep.subr.bf16.mxu0 0
  %2947 = vmatpush1.bf16.msra.mxu0 0
  %2948 = vmatprep.subr.bf16.mxu0 0
  %2949 = vmatpush1.bf16.msra.mxu0 0
  %2950 = vmatprep.subr.bf16.mxu0 0
  %2951 = vmatpush1.bf16.msra.mxu0 0
  %2952 = vmatprep.subr.bf16.mxu0 0
  %2953 = vmatpush1.bf16.msra.mxu0 0
  %2954 = vmatprep.subr.bf16.mxu0 0
  %2955 = vmatpush1.bf16.msra.mxu0 0
  %2956 = vmatprep.subr.bf16.mxu0 0
  %2957 = vmatpush1.bf16.msra.mxu0 0
  %2958 = vmatprep.subr.bf16.mxu0 0
  %2959 = vmatpush1.bf16.msra.mxu0 0
  %2960 = vmatprep.subr.bf16.mxu0 0
  %2961 = vmatpush1.bf16.msra.mxu0 0
  %2962 = vmatprep.subr.bf16.mxu0 0
  %2963 = vmatpush1.bf16.msra.mxu0 0
  %2964 = vmatprep.mubr.bf16.mxu0 0
  %2965 = vmatmul.mubr.bf16.gmra.mrb[0].mxu0 %v2930
  %v2966 = vpop.f32.mrb[0].mxu0
  %v2967 = vadd.f32 %v2904, %v2966
  %v2968 = vpop.f32.mrb[0].mxu0
  %v2969 = vpop.f32.mrb[0].mxu0
  %v2970 = vpop.f32.mrb[0].mxu0
  %2971 = vdwg.mxu0
  %v2972 = vsel %vm340, %v2967, -inf
  %2973 = vmax.xlane.f32.xlu0 %v2972
  %v2974 = vpop.xlane.xlu0 %2973
  %v2975 = vsub.f32 %v2967, %v2974
  %v2976 = vmul.f32 %v2975, 1.442695
  %v2977 = vpow.pop %v2976
  %v2978 = vsel %vm340, %v2977, 0.0
  %2979 = vadd.xlane.f32.xlu0 %v2978
  %v2980 = vpop.xlane.xlu0 %2979
  %v2981 = vrcp.pop %v2980
  %v2982 = vmul.f32 %v2977, %v2981
  %v2983 = vpack.c.bf16 %v2982, %v2982
  %v2984 = vld [vmem:[%s6] sm:$0xf]
  %v2985 = vld [vmem:[%s6 + $0x4] sm:$0xf]
  %v2986 = vld [vmem:[%s6 + $0x8] sm:$0xf]
  %v2987 = vld [vmem:[%s6 + $0xc] sm:$0xf]
  %v2988 = vld [vmem:[%s6 + $0x10] sm:$0xf]
  %v2989 = vld [vmem:[%s6 + $0x14] sm:$0xf]
  %v2990 = vld [vmem:[%s6 + $0x18] sm:$0xf]
  %v2991 = vld [vmem:[%s6 + $0x1c] sm:$0xf]
  %v3000 = vunpack.c.l.b16 %v2984
  %v3001 = vunpack.c.l.b16 %v2985
  %v3002 = vunpack.c.l.b16 %v2986
  %v3003 = vunpack.c.l.b16 %v2987
  %v3004 = vunpack.c.l.b16 %v2988
  %v3005 = vunpack.c.l.b16 %v2989
  %v3006 = vunpack.c.l.b16 %v2990
  %v3007 = vunpack.c.l.b16 %v2991
  %v3008 = vpack.c.b16 %v3001, %v3000
  %v3009 = vpack.c.b16 %v3003, %v3002
  %v3010 = vpack.c.b16 %v3005, %v3004
  %v3011 = vpack.c.b16 %v3007, %v3006
  %v3017 = vsel %vm340, %v2983, 0
  %3019 = vmatprep.subr.bf16.mxu0 0
  %3020 = vmatpush1.bf16.msra.mxu0 %v3008
  %3021 = vmatprep.subr.bf16.mxu0 0
  %3022 = vmatpush1.bf16.msra.mxu0 %v3009
  %3023 = vmatprep.subr.bf16.mxu0 0
  %3024 = vmatpush1.bf16.msra.mxu0 %v3010
  %3025 = vmatprep.subr.bf16.mxu0 0
  %3026 = vmatpush1.bf16.msra.mxu0 %v3011
  %3027 = vmatprep.subr.bf16.mxu0 0
  %3028 = vmatpush1.bf16.msra.mxu0 0
  %3029 = vmatprep.subr.bf16.mxu0 0
  %3030 = vmatpush1.bf16.msra.mxu0 0
  %3031 = vmatprep.subr.bf16.mxu0 0
  %3032 = vmatpush1.bf16.msra.mxu0 0
  %3033 = vmatprep.subr.bf16.mxu0 0
  %3034 = vmatpush1.bf16.msra.mxu0 0
  %3035 = vmatprep.subr.bf16.mxu0 0
  %3036 = vmatpush1.bf16.msra.mxu0 0
  %3037 = vmatprep.subr.bf16.mxu0 0
  %3038 = vmatpush1.bf16.msra.mxu0 0
  %3039 = vmatprep.subr.bf16.mxu0 0
  %3040 = vmatpush1.bf16.msra.mxu0 0
  %3041 = vmatprep.subr.bf16.mxu0 0
  %3042 = vmatpush1.bf16.msra.mxu0 0
  %3043 = vmatprep.subr.bf16.mxu0 0
  %3044 = vmatpush1.bf16.msra.mxu0 0
  %3045 = vmatprep.subr.bf16.mxu0 0
  %3046 = vmatpush1.bf16.msra.mxu0 0
  %3047 = vmatprep.subr.bf16.mxu0 0
  %3048 = vmatpush1.bf16.msra.mxu0 0
  %3049 = vmatprep.subr.bf16.mxu0 0
  %3050 = vmatpush1.bf16.msra.mxu0 0
  %3051 = vmatprep.mubr.bf16.mxu0 0
  %3052 = vmatmul.mubr.bf16.gmra.mrb[0].mxu0 %v3017
  %v3053 = vpop.f32.mrb[0].mxu0
  %v3054 = vadd.f32 0.0, %v3053
  %v3055 = vpop.f32.mrb[0].mxu0
  %v3056 = vpop.f32.mrb[0].mxu0
  %v3057 = vpop.f32.mrb[0].mxu0
  %3058 = vdwg.mxu0
  %s3059 = scalar_lea.vmem %s12, 32
  %3060 = vst.msk [vmem:[%s3059] sm:$0xff] %vm762, %v3054
  %v3061 = vld [vmem:[#allocation2 + $0x50] sm:$0xff]
  %v3062 = vld [vmem:[#allocation2 + $0x58] sm:$0xff]
  %v3063 = vadd.f32 %v3061, %v2679
  %v3064 = vadd.f32 %v3062, %v2681
  %v3065 = vtanh.pop %v3063
  %v3066 = vtanh.pop %v3064
  %v3067 = vxor.u32 %v3063, 2147483648
  %v3068 = vxor.u32 %v3064, 2147483648
  %v3069 = vmul.f32 %v3067, 1.442695
  %v3070 = vpow.pop %v3069
  %v3071 = vmul.f32 %v3068, 1.442695
  %v3072 = vpow.pop %v3071
  %v3073 = vadd.f32 %v3070, 1.0
  %v3074 = vadd.f32 %v3072, 1.0
  %v3075 = vrcp.pop %v3073
  %v3076 = vmul.f32 1.0, %v3075
  %v3077 = vrcp.pop %v3074
  %v3078 = vmul.f32 1.0, %v3077
  %v3079 = vsel %vm396, %v3065, %v3076
  %v3080 = vsel %vm397, %v3066, %v3078
  %v3081 = vmul.f32 %v3079, %v2554
  %v3082 = vmul.f32 %v3079, %v3080
  %3084 = vrot.lane.b32.xlu0 %v3082, 64
  %v3085 = vpop.permute.xlu0 %3084
  %v3087 = vadd.f32 %v3081, %v3085
  %v3088 = vtanh.pop %v3087
  %v3089 = vmul.f32 %v3080, %v3088
  %v3090 = vpack.c.bf16 %v3089, %v3089
  %v3091 = vld [vmem:[%s3 + $0x8] sm:$0xf]
  %v3092 = vld [vmem:[%s3 + $0x14] sm:$0xf]
  %v3093 = vld [vmem:[%s3 + $0x20] sm:$0xf]
  %v3094 = vld [vmem:[%s3 + $0x2c] sm:$0xf]
  %v3095 = vld [vmem:[%s3 + $0x38] sm:$0xf]
  %v3096 = vld [vmem:[%s3 + $0x44] sm:$0xf]
  %v3097 = vld [vmem:[%s3 + $0x50] sm:$0xf]
  %v3098 = vld [vmem:[%s3 + $0x5c] sm:$0xf]
  %3100 = vrot.lane.b32.xlu0 %v3090, 64
  %v3101 = vpop.permute.xlu0 %3100
  %v3110 = vunpack.c.l.b16 %v3091
  %v3111 = vunpack.c.l.b16 %v3092
  %v3112 = vunpack.c.l.b16 %v3093
  %v3113 = vunpack.c.l.b16 %v3094
  %v3114 = vunpack.c.l.b16 %v3095
  %v3115 = vunpack.c.l.b16 %v3096
  %v3116 = vunpack.c.l.b16 %v3097
  %v3117 = vunpack.c.l.b16 %v3098
  %v3118 = vpack.c.b16 %v3111, %v3110
  %v3119 = vpack.c.b16 %v3113, %v3112
  %v3120 = vpack.c.b16 %v3115, %v3114
  %v3121 = vpack.c.b16 %v3117, %v3116
  %v3127 = vsel %vm340, %v3101, 0
  %3129 = vmatprep.subr.bf16.mxu0 0
  %3130 = vmatpush1.bf16.msra.mxu0 %v3118
  %3131 = vmatprep.subr.bf16.mxu0 0
  %3132 = vmatpush1.bf16.msra.mxu0 %v3119
  %3133 = vmatprep.subr.bf16.mxu0 0
  %3134 = vmatpush1.bf16.msra.mxu0 %v3120
  %3135 = vmatprep.subr.bf16.mxu0 0
  %3136 = vmatpush1.bf16.msra.mxu0 %v3121
  %3137 = vmatprep.subr.bf16.mxu0 0
  %3138 = vmatpush1.bf16.msra.mxu0 0
  %3139 = vmatprep.subr.bf16.mxu0 0
  %3140 = vmatpush1.bf16.msra.mxu0 0
  %3141 = vmatprep.subr.bf16.mxu0 0
  %3142 = vmatpush1.bf16.msra.mxu0 0
  %3143 = vmatprep.subr.bf16.mxu0 0
  %3144 = vmatpush1.bf16.msra.mxu0 0
  %3145 = vmatprep.subr.bf16.mxu0 0
  %3146 = vmatpush1.bf16.msra.mxu0 0
  %3147 = vmatprep.subr.bf16.mxu0 0
  %3148 = vmatpush1.bf16.msra.mxu0 0
  %3149 = vmatprep.subr.bf16.mxu0 0
  %3150 = vmatpush1.bf16.msra.mxu0 0
  %3151 = vmatprep.subr.bf16.mxu0 0
  %3152 = vmatpush1.bf16.msra.mxu0 0
  %3153 = vmatprep.subr.bf16.mxu0 0
  %3154 = vmatpush1.bf16.msra.mxu0 0
  %3155 = vmatprep.subr.bf16.mxu0 0
  %3156 = vmatpush1.bf16.msra.mxu0 0
  %3157 = vmatprep.subr.bf16.mxu0 0
  %3158 = vmatpush1.bf16.msra.mxu0 0
  %3159 = vmatprep.subr.bf16.mxu0 0
  %3160 = vmatpush1.bf16.msra.mxu0 0
  %3161 = vmatprep.mubr.bf16.mxu0 0
  %3162 = vmatmul.mubr.bf16.gmra.mrb[0].mxu0 %v3127
  %v3163 = vpop.f32.mrb[0].mxu0
  %v3164 = vadd.f32 0.0, %v3163
  %v3165 = vpop.f32.mrb[0].mxu0
  %v3166 = vpop.f32.mrb[0].mxu0
  %v3167 = vpop.f32.mrb[0].mxu0
  %3168 = vdwg.mxu0
  %v3169 = vld [vmem:[%s7] sm:$0xff]
  %v3170 = vadd.f32 %v3164, %v3169
  %v3171 = vsel %vm340, %v3170, -inf
  %3172 = vmax.xlane.f32.xlu0 %v3171
  %v3173 = vpop.xlane.xlu0 %3172
  %v3174 = vsub.f32 %v3170, %v3173
  %v3175 = vmul.f32 %v3174, 1.442695
  %v3176 = vpow.pop %v3175
  %v3177 = vsel %vm340, %v3176, 0.0
  %3178 = vadd.xlane.f32.xlu0 %v3177
  %v3179 = vpop.xlane.xlu0 %3178
  %v3180 = vrcp.pop %v3179
  %v3181 = vmul.f32 %v3176, %v3180
  %v3182 = vpack.c.bf16 %v3181, %v3181
  %v3183 = vld [vmem:[%s4] sm:$0xf]
  %v3184 = vld [vmem:[%s4 + $0x4] sm:$0xf]
  %v3185 = vld [vmem:[%s4 + $0x8] sm:$0xf]
  %v3186 = vld [vmem:[%s4 + $0xc] sm:$0xf]
  %v3187 = vld [vmem:[%s4 + $0x10] sm:$0xf]
  %v3188 = vld [vmem:[%s4 + $0x14] sm:$0xf]
  %v3189 = vld [vmem:[%s4 + $0x18] sm:$0xf]
  %v3190 = vld [vmem:[%s4 + $0x1c] sm:$0xf]
  %v3199 = vunpack.c.l.b16 %v3183
  %v3200 = vunpack.c.l.b16 %v3184
  %v3201 = vunpack.c.l.b16 %v3185
  %v3202 = vunpack.c.l.b16 %v3186
  %v3203 = vunpack.c.l.b16 %v3187
  %v3204 = vunpack.c.l.b16 %v3188
  %v3205 = vunpack.c.l.b16 %v3189
  %v3206 = vunpack.c.l.b16 %v3190
  %v3207 = vpack.c.b16 %v3200, %v3199
  %v3208 = vpack.c.b16 %v3202, %v3201
  %v3209 = vpack.c.b16 %v3204, %v3203
  %v3210 = vpack.c.b16 %v3206, %v3205
  %3216 = vrot.lane.b32.xlu0 %v3164, 64
  %v3217 = vpop.permute.xlu0 %3216
  %v3220 = vsel %vm340, %v3182, 0
  %3222 = vmatprep.subr.bf16.mxu0 0
  %3223 = vmatpush1.bf16.msra.mxu0 %v3207
  %3224 = vmatprep.subr.bf16.mxu0 0
  %3225 = vmatpush1.bf16.msra.mxu0 %v3208
  %3226 = vmatprep.subr.bf16.mxu0 0
  %3227 = vmatpush1.bf16.msra.mxu0 %v3209
  %3228 = vmatprep.subr.bf16.mxu0 0
  %3229 = vmatpush1.bf16.msra.mxu0 %v3210
  %3230 = vmatprep.subr.bf16.mxu0 0
  %3231 = vmatpush1.bf16.msra.mxu0 0
  %3232 = vmatprep.subr.bf16.mxu0 0
  %3233 = vmatpush1.bf16.msra.mxu0 0
  %3234 = vmatprep.subr.bf16.mxu0 0
  %3235 = vmatpush1.bf16.msra.mxu0 0
  %3236 = vmatprep.subr.bf16.mxu0 0
  %3237 = vmatpush1.bf16.msra.mxu0 0
  %3238 = vmatprep.subr.bf16.mxu0 0
  %3239 = vmatpush1.bf16.msra.mxu0 0
  %3240 = vmatprep.subr.bf16.mxu0 0
  %3241 = vmatpush1.bf16.msra.mxu0 0
  %3242 = vmatprep.subr.bf16.mxu0 0
  %3243 = vmatpush1.bf16.msra.mxu0 0
  %3244 = vmatprep.subr.bf16.mxu0 0
  %3245 = vmatpush1.bf16.msra.mxu0 0
  %3246 = vmatprep.subr.bf16.mxu0 0
  %3247 = vmatpush1.bf16.msra.mxu0 0
  %3248 = vmatprep.subr.bf16.mxu0 0
  %3249 = vmatpush1.bf16.msra.mxu0 0
  %3250 = vmatprep.subr.bf16.mxu0 0
  %3251 = vmatpush1.bf16.msra.mxu0 0
  %3252 = vmatprep.subr.bf16.mxu0 0
  %3253 = vmatpush1.bf16.msra.mxu0 0
  %3254 = vmatprep.mubr.bf16.mxu0 0
  %3255 = vmatmul.mubr.bf16.gmra.mrb[0].mxu0 %v3220
  %v3256 = vpop.f32.mrb[0].mxu0
  %v3257 = vadd.f32 %v3217, %v3256
  %v3258 = vpop.f32.mrb[0].mxu0
  %v3259 = vpop.f32.mrb[0].mxu0
  %v3260 = vpop.f32.mrb[0].mxu0
  %3261 = vdwg.mxu0
  %v3262 = vtanh.pop %v3257
  %s3263 = scalar_lea.vmem %s10, 40
  %3264 = vst.msk [vmem:[%s3263] sm:$0xff] %vm340, %v3262
  %v3265 = vld [vmem:[%s6] sm:$0xf]
  %v3266 = vld [vmem:[%s6 + $0x4] sm:$0xf]
  %v3267 = vld [vmem:[%s6 + $0x8] sm:$0xf]
  %v3268 = vld [vmem:[%s6 + $0xc] sm:$0xf]
  %v3269 = vld [vmem:[%s6 + $0x10] sm:$0xf]
  %v3270 = vld [vmem:[%s6 + $0x14] sm:$0xf]
  %v3271 = vld [vmem:[%s6 + $0x18] sm:$0xf]
  %v3272 = vld [vmem:[%s6 + $0x1c] sm:$0xf]
  %v3281 = vunpack.c.l.b16 %v3265
  %v3282 = vunpack.c.l.b16 %v3266
  %v3283 = vunpack.c.l.b16 %v3267
  %v3284 = vunpack.c.l.b16 %v3268
  %v3285 = vunpack.c.l.b16 %v3269
  %v3286 = vunpack.c.l.b16 %v3270
  %v3287 = vunpack.c.l.b16 %v3271
  %v3288 = vunpack.c.l.b16 %v3272
  %v3289 = vpack.c.b16 %v3282, %v3281
  %v3290 = vpack.c.b16 %v3284, %v3283
  %v3291 = vpack.c.b16 %v3286, %v3285
  %v3292 = vpack.c.b16 %v3288, %v3287
  %3297 = vmatprep.subr.bf16.mxu0 0
  %3298 = vmatpush1.bf16.msra.mxu0 %v3289
  %3299 = vmatprep.subr.bf16.mxu0 0
  %3300 = vmatpush1.bf16.msra.mxu0 %v3290
  %3301 = vmatprep.subr.bf16.mxu0 0
  %3302 = vmatpush1.bf16.msra.mxu0 %v3291
  %3303 = vmatprep.subr.bf16.mxu0 0
  %3304 = vmatpush1.bf16.msra.mxu0 %v3292
  %3305 = vmatprep.subr.bf16.mxu0 0
  %3306 = vmatpush1.bf16.msra.mxu0 0
  %3307 = vmatprep.subr.bf16.mxu0 0
  %3308 = vmatpush1.bf16.msra.mxu0 0
  %3309 = vmatprep.subr.bf16.mxu0 0
  %3310 = vmatpush1.bf16.msra.mxu0 0
  %3311 = vmatprep.subr.bf16.mxu0 0
  %3312 = vmatpush1.bf16.msra.mxu0 0
  %3313 = vmatprep.subr.bf16.mxu0 0
  %3314 = vmatpush1.bf16.msra.mxu0 0
  %3315 = vmatprep.subr.bf16.mxu0 0
  %3316 = vmatpush1.bf16.msra.mxu0 0
  %3317 = vmatprep.subr.bf16.mxu0 0
  %3318 = vmatpush1.bf16.msra.mxu0 0
  %3319 = vmatprep.subr.bf16.mxu0 0
  %3320 = vmatpush1.bf16.msra.mxu0 0
  %3321 = vmatprep.subr.bf16.mxu0 0
  %3322 = vmatpush1.bf16.msra.mxu0 0
  %3323 = vmatprep.subr.bf16.mxu0 0
  %3324 = vmatpush1.bf16.msra.mxu0 0
  %3325 = vmatprep.subr.bf16.mxu0 0
  %3326 = vmatpush1.bf16.msra.mxu0 0
  %3327 = vmatprep.subr.bf16.mxu0 0
  %3328 = vmatpush1.bf16.msra.mxu0 0
  %3329 = vmatprep.mubr.bf16.mxu0 0
  %3330 = vmatmul.mubr.bf16.gmra.mrb[0].mxu0 %v3220
  %v3331 = vpop.f32.mrb[0].mxu0
  %v3332 = vadd.f32 0.0, %v3331
  %v3333 = vpop.f32.mrb[0].mxu0
  %v3334 = vpop.f32.mrb[0].mxu0
  %v3335 = vpop.f32.mrb[0].mxu0
  %3336 = vdwg.mxu0
  %s3337 = scalar_lea.vmem %s11, 40
  %3338 = vst.msk [vmem:[%s3337] sm:$0xff] %vm762, %v3332
  %v3339 = vpack.c.bf16 %v3262, %v3262
  %v3340 = vld [vmem:[%s5] sm:$0xf]
  %v3341 = vld [vmem:[%s5 + $0x4] sm:$0xf]
  %v3342 = vld [vmem:[%s5 + $0x8] sm:$0xf]
  %v3343 = vld [vmem:[%s5 + $0xc] sm:$0xf]
  %v3344 = vld [vmem:[%s5 + $0x10] sm:$0xf]
  %v3345 = vld [vmem:[%s5 + $0x14] sm:$0xf]
  %v3346 = vld [vmem:[%s5 + $0x18] sm:$0xf]
  %v3347 = vld [vmem:[%s5 + $0x1c] sm:$0xf]
  %v3348 = vld [vmem:[%s7] sm:$0xff]
  %v3357 = vunpack.c.l.b16 %v3340
  %v3358 = vunpack.c.l.b16 %v3341
  %v3359 = vunpack.c.l.b16 %v3342
  %v3360 = vunpack.c.l.b16 %v3343
  %v3361 = vunpack.c.l.b16 %v3344
  %v3362 = vunpack.c.l.b16 %v3345
  %v3363 = vunpack.c.l.b16 %v3346
  %v3364 = vunpack.c.l.b16 %v3347
  %v3365 = vpack.c.b16 %v3358, %v3357
  %v3366 = vpack.c.b16 %v3360, %v3359
  %v3367 = vpack.c.b16 %v3362, %v3361
  %v3368 = vpack.c.b16 %v3364, %v3363
  %v3374 = vsel %vm340, %v3339, 0
  %3376 = vmatprep.subr.bf16.mxu0 0
  %3377 = vmatpush1.bf16.msra.mxu0 %v3365
  %3378 = vmatprep.subr.bf16.mxu0 0
  %3379 = vmatpush1.bf16.msra.mxu0 %v3366
  %3380 = vmatprep.subr.bf16.mxu0 0
  %3381 = vmatpush1.bf16.msra.mxu0 %v3367
  %3382 = vmatprep.subr.bf16.mxu0 0
  %3383 = vmatpush1.bf16.msra.mxu0 %v3368
  %3384 = vmatprep.subr.bf16.mxu0 0
  %3385 = vmatpush1.bf16.msra.mxu0 0
  %3386 = vmatprep.subr.bf16.mxu0 0
  %3387 = vmatpush1.bf16.msra.mxu0 0
  %3388 = vmatprep.subr.bf16.mxu0 0
  %3389 = vmatpush1.bf16.msra.mxu0 0
  %3390 = vmatprep.subr.bf16.mxu0 0
  %3391 = vmatpush1.bf16.msra.mxu0 0
  %3392 = vmatprep.subr.bf16.mxu0 0
  %3393 = vmatpush1.bf16.msra.mxu0 0
  %3394 = vmatprep.subr.bf16.mxu0 0
  %3395 = vmatpush1.bf16.msra.mxu0 0
  %3396 = vmatprep.subr.bf16.mxu0 0
  %3397 = vmatpush1.bf16.msra.mxu0 0
  %3398 = vmatprep.subr.bf16.mxu0 0
  %3399 = vmatpush1.bf16.msra.mxu0 0
  %3400 = vmatprep.subr.bf16.mxu0 0
  %3401 = vmatpush1.bf16.msra.mxu0 0
  %3402 = vmatprep.subr.bf16.mxu0 0
  %3403 = vmatpush1.bf16.msra.mxu0 0
  %3404 = vmatprep.subr.bf16.mxu0 0
  %3405 = vmatpush1.bf16.msra.mxu0 0
  %3406 = vmatprep.subr.bf16.mxu0 0
  %3407 = vmatpush1.bf16.msra.mxu0 0
  %3408 = vmatprep.mubr.bf16.mxu0 0
  %3409 = vmatmul.mubr.bf16.gmra.mrb[0].mxu0 %v3374
  %v3410 = vpop.f32.mrb[0].mxu0
  %v3411 = vadd.f32 %v3348, %v3410
  %v3412 = vpop.f32.mrb[0].mxu0
  %v3413 = vpop.f32.mrb[0].mxu0
  %v3414 = vpop.f32.mrb[0].mxu0
  %3415 = vdwg.mxu0
  %v3416 = vsel %vm340, %v3411, -inf
  %3417 = vmax.xlane.f32.xlu0 %v3416
  %v3418 = vpop.xlane.xlu0 %3417
  %v3419 = vsub.f32 %v3411, %v3418
  %v3420 = vmul.f32 %v3419, 1.442695
  %v3421 = vpow.pop %v3420
  %v3422 = vsel %vm340, %v3421, 0.0
  %3423 = vadd.xlane.f32.xlu0 %v3422
  %v3424 = vpop.xlane.xlu0 %3423
  %v3425 = vrcp.pop %v3424
  %v3426 = vmul.f32 %v3421, %v3425
  %v3427 = vpack.c.bf16 %v3426, %v3426
  %v3428 = vld [vmem:[%s6] sm:$0xf]
  %v3429 = vld [vmem:[%s6 + $0x4] sm:$0xf]
  %v3430 = vld [vmem:[%s6 + $0x8] sm:$0xf]
  %v3431 = vld [vmem:[%s6 + $0xc] sm:$0xf]
  %v3432 = vld [vmem:[%s6 + $0x10] sm:$0xf]
  %v3433 = vld [vmem:[%s6 + $0x14] sm:$0xf]
  %v3434 = vld [vmem:[%s6 + $0x18] sm:$0xf]
  %v3435 = vld [vmem:[%s6 + $0x1c] sm:$0xf]
  %v3444 = vunpack.c.l.b16 %v3428
  %v3445 = vunpack.c.l.b16 %v3429
  %v3446 = vunpack.c.l.b16 %v3430
  %v3447 = vunpack.c.l.b16 %v3431
  %v3448 = vunpack.c.l.b16 %v3432
  %v3449 = vunpack.c.l.b16 %v3433
  %v3450 = vunpack.c.l.b16 %v3434
  %v3451 = vunpack.c.l.b16 %v3435
  %v3452 = vpack.c.b16 %v3445, %v3444
  %v3453 = vpack.c.b16 %v3447, %v3446
  %v3454 = vpack.c.b16 %v3449, %v3448
  %v3455 = vpack.c.b16 %v3451, %v3450
  %v3461 = vsel %vm340, %v3427, 0
  %3463 = vmatprep.subr.bf16.mxu0 0
  %3464 = vmatpush1.bf16.msra.mxu0 %v3452
  %3465 = vmatprep.subr.bf16.mxu0 0
  %3466 = vmatpush1.bf16.msra.mxu0 %v3453
  %3467 = vmatprep.subr.bf16.mxu0 0
  %3468 = vmatpush1.bf16.msra.mxu0 %v3454
  %3469 = vmatprep.subr.bf16.mxu0 0
  %3470 = vmatpush1.bf16.msra.mxu0 %v3455
  %3471 = vmatprep.subr.bf16.mxu0 0
  %3472 = vmatpush1.bf16.msra.mxu0 0
  %3473 = vmatprep.subr.bf16.mxu0 0
  %3474 = vmatpush1.bf16.msra.mxu0 0
  %3475 = vmatprep.subr.bf16.mxu0 0
  %3476 = vmatpush1.bf16.msra.mxu0 0
  %3477 = vmatprep.subr.bf16.mxu0 0
  %3478 = vmatpush1.bf16.msra.mxu0 0
  %3479 = vmatprep.subr.bf16.mxu0 0
  %3480 = vmatpush1.bf16.msra.mxu0 0
  %3481 = vmatprep.subr.bf16.mxu0 0
  %3482 = vmatpush1.bf16.msra.mxu0 0
  %3483 = vmatprep.subr.bf16.mxu0 0
  %3484 = vmatpush1.bf16.msra.mxu0 0
  %3485 = vmatprep.subr.bf16.mxu0 0
  %3486 = vmatpush1.bf16.msra.mxu0 0
  %3487 = vmatprep.subr.bf16.mxu0 0
  %3488 = vmatpush1.bf16.msra.mxu0 0
  %3489 = vmatprep.subr.bf16.mxu0 0
  %3490 = vmatpush1.bf16.msra.mxu0 0
  %3491 = vmatprep.subr.bf16.mxu0 0
  %3492 = vmatpush1.bf16.msra.mxu0 0
  %3493 = vmatprep.subr.bf16.mxu0 0
  %3494 = vmatpush1.bf16.msra.mxu0 0
  %3495 = vmatprep.mubr.bf16.mxu0 0
  %3496 = vmatmul.mubr.bf16.gmra.mrb[0].mxu0 %v3461
  %v3497 = vpop.f32.mrb[0].mxu0
  %v3498 = vadd.f32 0.0, %v3497
  %v3499 = vpop.f32.mrb[0].mxu0
  %v3500 = vpop.f32.mrb[0].mxu0
  %v3501 = vpop.f32.mrb[0].mxu0
  %3502 = vdwg.mxu0
  %s3503 = scalar_lea.vmem %s12, 40
  %3504 = vst.msk [vmem:[%s3503] sm:$0xff] %vm762, %v3498
  // Predicated region
  $region42: #{prod_decoder_forward.1} parent=0 // pred_check
    _
  $region43: #{prod_decoder_forward.1} parent=0 // pred_check_branch
    %3506 = sbr.rel (0) target = $region45
  $region44: #{prod_decoder_forward.1} parent=0 // pred_region
    _
  $region45: #{prod_decoder_forward.1} parent=0 // pred_fallthru
    _
  // Predicated region
  $region46: #{prod_decoder_forward.1} parent=0 // pred_check
    _
  $region47: #{prod_decoder_forward.1} parent=0 // pred_check_branch
    %3508 = sbr.rel (0) target = $region49
  $region48: #{prod_decoder_forward.1} parent=0 // pred_region
    _
  $region49: #{prod_decoder_forward.1} parent=0 // pred_fallthru
    _
  // Predicated region
  $region50: #{prod_decoder_forward.1} parent=0 // pred_check
    _
  $region51: #{prod_decoder_forward.1} parent=0 // pred_check_branch
    %3510 = sbr.rel (0) target = $region53
  $region52: #{prod_decoder_forward.1} parent=0 // pred_region
    _
  $region53: #{prod_decoder_forward.1} parent=0 // pred_fallthru
    _
  // Predicated region
  $region54: #{prod_decoder_forward.1} parent=0 // pred_check
    _
  $region55: #{prod_decoder_forward.1} parent=0 // pred_check_branch
    %3512 = sbr.rel (0) target = $region57
  $region56: #{prod_decoder_forward.1} parent=0 // pred_region
    _
  $region57: #{prod_decoder_forward.1} parent=0 // pred_fallthru
    _
  // Predicated region
  $region58: #{prod_decoder_forward.1} parent=0 // pred_check
    _
  $region59: #{prod_decoder_forward.1} parent=0 // pred_check_branch
    %3514 = sbr.rel (0) target = $region61
  $region60: #{prod_decoder_forward.1} parent=0 // pred_region
    _
  $region61: #{prod_decoder_forward.1} parent=0 // pred_fallthru
    _
  // Predicated region
  $region62: #{prod_decoder_forward.1} parent=0 // pred_check
    _
  $region63: #{prod_decoder_forward.1} parent=0 // pred_check_branch
    %3516 = sbr.rel (0) target = $region65
  $region64: #{prod_decoder_forward.1} parent=0 // pred_region
    _
  $region65: #{prod_decoder_forward.1} parent=0 // pred_fallthru
    _

</llo_original>
